<compile_context>
chip_gen: v6e
topology: v6e:2x2x1
jax: 0.10.0
libtpu: 0.0.40
codegen_flags: <defaults>
</compile_context>

<pallas_src>
import math
import functools

import jax
import jax.numpy as jnp
from jax import lax
from jax.experimental import pallas as pl
from jax.experimental.pallas import tpu as pltpu

EPS = 1e-3        # LayerNorm eps used by EncoderLayer / Encoder
NEG_INF = -1e30   # additive mask bias (finite; masked exp() underflows to 0)


def _layer_norm(x, g, b, eps=EPS):
    """LayerNorm matching the PyTorch module (unbiased std, eps added to std).

    One-pass statistics (sum and sum-of-squares) to halve cross-lane reductions;
    division done via approx reciprocal on the EUP.
    """
    n = x.shape[-1]
    s1 = jnp.sum(x, axis=-1, keepdims=True)
    s2 = jnp.sum(x * x, axis=-1, keepdims=True)
    mean = s1 * (1.0 / n)
    var = jnp.maximum((s2 - s1 * mean) * (1.0 / (n - 1)), 0.0)
    inv = pl.reciprocal(jnp.sqrt(var) + eps, approx=True)
    return g * ((x - mean) * inv) + b


def encoder_kernel(lens_ref,                       # scalar prefetch: (B,) int32 in SMEM
                   e_ref,                          # (1, S, D) input activations
                   ln1_g, ln1_b, wqkv, wo,
                   ln2_g, ln2_b, w1, b1, w2, b2,   # per-layer blocks (layer axis squeezed)
                   lnf_g, lnf_b,                   # final LayerNorm params
                   out_ref,                        # (1, S, D) output
                   e_scr,                          # VMEM (S, D) f32 activation carry
                   *, n_heads):
    b = pl.program_id(0)
    l = pl.program_id(1)
    n_layers = pl.num_programs(1)

    S, D = e_scr.shape
    dh = D // n_heads

    # Load the input activation once per batch element (layer 0 only); it then
    # stays resident in VMEM scratch across all layers.
    @pl.when(l == 0)
    def _():
        e_scr[...] = e_ref[0]

    e = e_scr[...]                                           # (S, D) f32

    # ---- padding mask rebuilt in-kernel from the sequence length ----
    length = lens_ref[b]
    kpos = lax.broadcasted_iota(jnp.int32, (1, S), 1)
    qpos = lax.broadcasted_iota(jnp.int32, (S, 1), 0)
    key_bias = jnp.where(kpos < length, 0.0, NEG_INF)        # (1, S) additive bias
    q_valid = (qpos < length).astype(jnp.float32)            # (S, 1)

    # ---- self attention on ln_1(e) ----
    x2 = _layer_norm(e, ln1_g[...], ln1_b[...])
    # Fused QKV projection; 1/sqrt(dh) already folded into the Q columns.
    qkv = jnp.dot(x2.astype(jnp.bfloat16), wqkv[...],
                  preferred_element_type=jnp.float32)        # (S, 3D) f32
    Qh = jnp.swapaxes(qkv[:, :D].reshape(S, n_heads, dh), 0, 1)        # (H, S, dh)
    Kh = jnp.swapaxes(qkv[:, D:2 * D].reshape(S, n_heads, dh), 0, 1)   # (H, S, dh)
    Vh = jnp.swapaxes(qkv[:, 2 * D:].reshape(S, n_heads, dh), 0, 1)    # (H, S, dh)

    s = jnp.einsum('hqd,hkd->hqk',
                   Qh.astype(jnp.bfloat16), Kh.astype(jnp.bfloat16),
                   preferred_element_type=jnp.float32)       # (H, S, S) f32
    s = s + key_bias[None, :, :]
    m = jnp.max(s, axis=-1, keepdims=True)
    p = jnp.exp(s - m)                                       # masked keys underflow to 0
    denom = jnp.sum(p, axis=-1, keepdims=True)               # >= 1 (max entry contributes 1)
    att = p * pl.reciprocal(denom, approx=True)
    att = att * q_valid[None, :, :]                          # fully-masked rows -> 0 (torch NaN->0)

    ctx = jnp.einsum('hqk,hkd->hqd',
                     att.astype(jnp.bfloat16), Vh.astype(jnp.bfloat16),
                     preferred_element_type=jnp.float32)     # (H, S, dh)
    ctx = jnp.swapaxes(ctx, 0, 1).reshape(S, D)              # (S, D)
    attn_out = jnp.dot(ctx.astype(jnp.bfloat16), wo[...],
                       preferred_element_type=jnp.float32)
    e = e + attn_out                                         # residual 1 (f32)

    # ---- feed forward on ln_2(e) ----
    x3 = _layer_norm(e, ln2_g[...], ln2_b[...])
    h = jnp.dot(x3.astype(jnp.bfloat16), w1[...],
                preferred_element_type=jnp.float32) + b1[...]
    h = jnp.maximum(h, 0.0)
    ffn = jnp.dot(h.astype(jnp.bfloat16), w2[...],
                  preferred_element_type=jnp.float32) + b2[...]
    e = e + ffn                                              # residual 2 (f32)

    e_scr[...] = e

    # ---- final LayerNorm folded into the last layer iteration ----
    @pl.when(l == n_layers - 1)
    def _():
        out_ref[0] = _layer_norm(e, lnf_g[...], lnf_b[...])


def encoder_forward(e, lengths, layer_params, ln_g, ln_b, n_heads):
    """Full encoder stack in one pallas_call. grid = (batch, layer)."""
    B, S, D = e.shape
    L = len(layer_params)
    dh = D // n_heads
    scale = 1.0 / math.sqrt(dh)

    def stack(name):
        return jnp.stack([p[name] for p in layer_params], axis=0)

    # Fused QKV weight (scale folded into Q columns); MXU-path weights in bf16.
    wqkv = jnp.stack(
        [jnp.concatenate([p["wq"] * scale, p["wk"], p["wv"]], axis=1)
         for p in layer_params], axis=0).astype(jnp.bfloat16)         # (L, D, 3D)
    wo = stack("wo").astype(jnp.bfloat16)                             # (L, D, D)
    w1 = stack("w1").astype(jnp.bfloat16)                             # (L, D, NH)
    w2 = stack("w2").astype(jnp.bfloat16)                             # (L, NH, D)
    ln1_g, ln1_b = stack("ln1_g"), stack("ln1_b")                     # (L, 1, D) f32
    ln2_g, ln2_b = stack("ln2_g"), stack("ln2_b")                     # (L, 1, D) f32
    b1, b2 = stack("b1"), stack("b2")                                 # (L,1,NH) / (L,1,D) f32

    def lspec(shape):
        # Per-layer block: squeeze the leading layer axis, full extent otherwise.
        nrest = len(shape) - 1
        return pl.BlockSpec((None,) + tuple(shape[1:]),
                            lambda bi, li, lens, _n=nrest: (li,) + (0,) * _n)

    def fullspec(shape):
        nd = len(shape)
        return pl.BlockSpec(tuple(shape), lambda bi, li, lens, _n=nd: (0,) * _n)

    in_specs = [
        pl.BlockSpec((1, S, D), lambda bi, li, lens: (bi, 0, 0)),  # e: fetched once per batch
        lspec(ln1_g.shape), lspec(ln1_b.shape),
        lspec(wqkv.shape), lspec(wo.shape),
        lspec(ln2_g.shape), lspec(ln2_b.shape),
        lspec(w1.shape), lspec(b1.shape), lspec(w2.shape), lspec(b2.shape),
        fullspec(ln_g.shape), fullspec(ln_b.shape),
    ]

    grid_spec = pltpu.PrefetchScalarGridSpec(
        num_scalar_prefetch=1,
        grid=(B, L),
        in_specs=in_specs,
        out_specs=pl.BlockSpec((1, S, D), lambda bi, li, lens: (bi, 0, 0)),
        scratch_shapes=[pltpu.VMEM((S, D), jnp.float32)],
    )

    return pl.pallas_call(
        functools.partial(encoder_kernel, n_heads=n_heads),
        out_shape=jax.ShapeDtypeStruct((B, S, D), jnp.float32),
        grid_spec=grid_spec,
        compiler_params=pltpu.CompilerParams(
            dimension_semantics=("parallel", "arbitrary")),
    )(lengths.astype(jnp.int32), e,
      ln1_g, ln1_b, wqkv, wo, ln2_g, ln2_b, w1, b1, w2, b2, ln_g, ln_b)


# ---------------- pure-JAX f32 reference (exact PyTorch semantics) ----------------
def reference_forward(e, mask_bool, layer_params, ln_g, ln_b, n_heads):
    def ln(x, g, b):
        n = x.shape[-1]
        mean = x.mean(-1, keepdims=True)
        var = ((x - mean) ** 2).sum(-1, keepdims=True) / (n - 1)
        return g * (x - mean) / (jnp.sqrt(var) + EPS) + b

    B, S, D = e.shape
    dh = D // n_heads
    scale = 1.0 / math.sqrt(dh)
    m4 = mask_bool[:, None]  # (B,1,S,S)
    for p in layer_params:
        x2 = ln(e, p["ln1_g"], p["ln1_b"])
        Q = (x2 @ p["wq"]).reshape(B, S, n_heads, dh).transpose(0, 2, 1, 3)
        K = (x2 @ p["wk"]).reshape(B, S, n_heads, dh).transpose(0, 2, 1, 3)
        V = (x2 @ p["wv"]).reshape(B, S, n_heads, dh).transpose(0, 2, 1, 3)
        s = jnp.einsum("bhqd,bhkd->bhqk", Q * scale, K)
        s = jnp.where(m4, s, -jnp.inf)
        mx = s.max(-1, keepdims=True)
        mxs = jnp.where(jnp.isfinite(mx), mx, 0.0)
        pu = jnp.where(m4, jnp.exp(s - mxs), 0.0)
        den = pu.sum(-1, keepdims=True)
        att = jnp.where(den > 0, pu / den, 0.0)
        C = jnp.einsum("bhqk,bhkd->bhqd", att, V).transpose(0, 2, 1, 3).reshape(B, S, D)
        e = e + C @ p["wo"]
        x3 = ln(e, p["ln2_g"], p["ln2_b"])
        h_mid = jnp.maximum(x3 @ p["w1"] + p["b1"], 0.0)
        e = e + (h_mid @ p["w2"] + p["b2"])
    return ln(e, ln_g, ln_b)


# ---------------- deterministic parameter init ----------------
def init_params(key, n_layers, D, NH):
    layer_params = []
    for _ in range(n_layers):
        key, *ks = jax.random.split(key, 9)
        sc = 0.06
        layer_params.append(dict(
            ln1_g=jnp.ones((1, D), jnp.float32),
            ln1_b=jnp.zeros((1, D), jnp.float32),
            wq=sc * jax.random.normal(ks[0], (D, D), jnp.float32),
            wk=sc * jax.random.normal(ks[1], (D, D), jnp.float32),
            wv=sc * jax.random.normal(ks[2], (D, D), jnp.float32),
            wo=sc * jax.random.normal(ks[3], (D, D), jnp.float32),
            ln2_g=jnp.ones((1, D), jnp.float32),
            ln2_b=jnp.zeros((1, D), jnp.float32),
            w1=sc * jax.random.normal(ks[4], (D, NH), jnp.float32),
            b1=0.01 * jax.random.normal(ks[5], (1, NH), jnp.float32),
            w2=sc * jax.random.normal(ks[6], (NH, D), jnp.float32),
            b2=0.01 * jax.random.normal(ks[7], (1, D), jnp.float32),
        ))
    ln_g = jnp.ones((1, D), jnp.float32)
    ln_b = jnp.zeros((1, D), jnp.float32)
    return layer_params, ln_g, ln_b


if __name__ == "__main__":
    # small but lane-dense shapes: batch=2, seq=8, n_units=128, heads=8,
    # ffn hidden=256, 2 layers
    B, S, D, H, NH, L = 2, 8, 128, 8, 256, 2

    key = jax.random.PRNGKey(0)
    key, ke = jax.random.split(key)
    e = jax.random.normal(ke, (B, S, D), jnp.float32)

    # padding mask: batch 0 fully valid, batch 1 has only first 5 positions valid
    lengths = jnp.array([S, 5], dtype=jnp.int32)
    valid = jnp.arange(S)[None, :] < lengths[:, None]          # (B, S)
    mask_bool = valid[:, :, None] & valid[:, None, :]          # (B, S, S)

    layer_params, ln_g, ln_b = init_params(key, L, D, NH)

    out = encoder_forward(e, lengths, layer_params, ln_g, ln_b, H)
    out = jax.block_until_ready(out)

    ref = reference_forward(e, mask_bool, layer_params, ln_g, ln_b, H)
    assert out.shape == (B, S, D)
    # bf16 MXU inputs (f32 accumulation) -> tolerance relaxed vs the pure-f32 reference.
    assert jnp.allclose(out, ref, atol=5e-2, rtol=5e-2), "mismatch vs reference"

    print("KERNEL_OK")
</pallas_src>

<mosaic_0001>
module attributes {stable_mosaic.version = 11 : i64} {
  func.func @encoder_kernel(%arg0: i32, %arg1: i32, %arg2: memref<2xi32, #tpu.memory_space<smem>>, %arg3: memref<1x8x128xf32, #tpu.memory_space<vmem>>, %arg4: memref<1x1x128xf32, #tpu.memory_space<vmem>>, %arg5: memref<1x1x128xf32, #tpu.memory_space<vmem>>, %arg6: memref<1x128x384xbf16, #tpu.memory_space<vmem>>, %arg7: memref<1x128x128xbf16, #tpu.memory_space<vmem>>, %arg8: memref<1x1x128xf32, #tpu.memory_space<vmem>>, %arg9: memref<1x1x128xf32, #tpu.memory_space<vmem>>, %arg10: memref<1x128x256xbf16, #tpu.memory_space<vmem>>, %arg11: memref<1x1x256xf32, #tpu.memory_space<vmem>>, %arg12: memref<1x256x128xbf16, #tpu.memory_space<vmem>>, %arg13: memref<1x1x128xf32, #tpu.memory_space<vmem>>, %arg14: memref<1x128xf32, #tpu.memory_space<vmem>>, %arg15: memref<1x128xf32, #tpu.memory_space<vmem>>, %arg16: memref<1x8x128xf32, #tpu.memory_space<vmem>>, %arg17: memref<8x128xf32, #tpu.memory_space<vmem>>) attributes {dimension_semantics = [#tpu.dimension_semantics<parallel>, #tpu.dimension_semantics<arbitrary>], iteration_bounds = array<i64: 2, 2>, scalar_prefetch = 1 : i64, scratch_operands = 1 : i64, tpu.core_type = #tpu.core_type<tc>, window_params = [{transform_indices = @transform_0, window_bounds = array<i64: 1, 8, 128>}, {transform_indices = @transform_1, window_bounds = array<i64: 1, 1, 128>}, {transform_indices = @transform_2, window_bounds = array<i64: 1, 1, 128>}, {transform_indices = @transform_3, window_bounds = array<i64: 1, 128, 384>}, {transform_indices = @transform_4, window_bounds = array<i64: 1, 128, 128>}, {transform_indices = @transform_5, window_bounds = array<i64: 1, 1, 128>}, {transform_indices = @transform_6, window_bounds = array<i64: 1, 1, 128>}, {transform_indices = @transform_7, window_bounds = array<i64: 1, 128, 256>}, {transform_indices = @transform_8, window_bounds = array<i64: 1, 1, 256>}, {transform_indices = @transform_9, window_bounds = array<i64: 1, 256, 128>}, {transform_indices = @transform_10, window_bounds = array<i64: 1, 1, 128>}, {pipeline_mode = #tpu.pipeline_mode<synchronous>, transform_indices = @transform_11, window_bounds = array<i64: 1, 128>}, {pipeline_mode = #tpu.pipeline_mode<synchronous>, transform_indices = @transform_12, window_bounds = array<i64: 1, 128>}, {transform_indices = @transform_13, window_bounds = array<i64: 1, 8, 128>}]} {
    %c0_i32 = arith.constant 0 : i32
    %0 = arith.cmpi eq, %arg1, %c0_i32 : i32
    %1 = arith.extui %0 : i1 to i32
    %c0_i32_0 = arith.constant 0 : i32
    %2 = arith.cmpi ne, %1, %c0_i32_0 : i32
    scf.if %2 {
      %c0_57 = arith.constant 0 : index
      %c0_58 = arith.constant 0 : index
      %c0_59 = arith.constant 0 : index
      %140 = vector.load %arg3[%c0_57, %c0_58, %c0_59] : memref<1x8x128xf32, #tpu.memory_space<vmem>>, vector<1x8x128xf32>
      %141 = vector.shape_cast %140 : vector<1x8x128xf32> to vector<8x128xf32>
      %c0_60 = arith.constant 0 : index
      %c0_61 = arith.constant 0 : index
      %142 = vector.load %arg17[%c0_60, %c0_61] : memref<8x128xf32, #tpu.memory_space<vmem>>, vector<8x128xf32>
      tpu.vector_store %arg17[%c0_60, %c0_61], %141 {strides = array<i32>} : memref<8x128xf32, #tpu.memory_space<vmem>>, vector<8x128xf32>,
    } else {
    }
    %c0 = arith.constant 0 : index
    %c0_1 = arith.constant 0 : index
    %3 = vector.load %arg17[%c0, %c0_1] : memref<8x128xf32, #tpu.memory_space<vmem>>, vector<8x128xf32>
    %4 = arith.index_cast %arg0 : i32 to index
    %5 = memref.load %arg2[%4] : memref<2xi32, #tpu.memory_space<smem>>
    %6 = tpu.iota {dimensions = array<i32: 1>} : vector<1x8xi32>
    %7 = tpu.iota {dimensions = array<i32: 0>} : vector<8x1xi32>
    %8 = vector.broadcast %5 : i32 to vector<1x8xi32>
    %9 = arith.cmpi slt, %6, %8 : vector<1x8xi32>
    %cst = arith.constant 0.000000e+00 : f32
    %cst_2 = arith.constant -1.000000e+30 : f32
    %10 = vector.broadcast %cst : f32 to vector<1x8xf32>
    %11 = vector.broadcast %cst_2 : f32 to vector<1x8xf32>
    %12 = arith.select %9, %10, %11 : vector<1x8xi1>, vector<1x8xf32>
    %13 = vector.broadcast %5 : i32 to vector<8x1xi32>
    %14 = arith.cmpi slt, %7, %13 : vector<8x1xi32>
    %15 = arith.extui %14 : vector<8x1xi1> to vector<8x1xi32>
    %16 = arith.sitofp %15 : vector<8x1xi32> to vector<8x1xf32>
    %c0_3 = arith.constant 0 : index
    %c0_4 = arith.constant 0 : index
    %c0_5 = arith.constant 0 : index
    %17 = vector.load %arg4[%c0_3, %c0_4, %c0_5] : memref<1x1x128xf32, #tpu.memory_space<vmem>>, vector<1x1x128xf32>
    %18 = vector.shape_cast %17 : vector<1x1x128xf32> to vector<1x128xf32>
    %c0_6 = arith.constant 0 : index
    %c0_7 = arith.constant 0 : index
    %c0_8 = arith.constant 0 : index
    %19 = vector.load %arg5[%c0_6, %c0_7, %c0_8] : memref<1x1x128xf32, #tpu.memory_space<vmem>>, vector<1x1x128xf32>
    %20 = vector.shape_cast %19 : vector<1x1x128xf32> to vector<1x128xf32>
    %cst_9 = arith.constant dense<0.000000e+00> : vector<8xf32>
    %21 = vector.multi_reduction <add>, %3, %cst_9 [1] : vector<8x128xf32> to vector<8xf32>
    %22 = vector.shape_cast %21 : vector<8xf32> to vector<8x1xf32>
    %23 = arith.mulf %3, %3 : vector<8x128xf32>
    %cst_10 = arith.constant dense<0.000000e+00> : vector<8xf32>
    %24 = vector.multi_reduction <add>, %23, %cst_10 [1] : vector<8x128xf32> to vector<8xf32>
    %25 = vector.shape_cast %24 : vector<8xf32> to vector<8x1xf32>
    %cst_11 = arith.constant 7.812500e-03 : f32
    %26 = vector.broadcast %cst_11 : f32 to vector<8x1xf32>
    %27 = arith.mulf %22, %26 : vector<8x1xf32>
    %28 = arith.mulf %22, %27 : vector<8x1xf32>
    %29 = arith.subf %25, %28 : vector<8x1xf32>
    %cst_12 = arith.constant 0.00787401571 : f32
    %30 = vector.broadcast %cst_12 : f32 to vector<8x1xf32>
    %31 = arith.mulf %29, %30 : vector<8x1xf32>
    %cst_13 = arith.constant 0.000000e+00 : f32
    %32 = vector.broadcast %cst_13 : f32 to vector<8x1xf32>
    %33 = arith.maximumf %31, %32 : vector<8x1xf32>
    %34 = math.sqrt %33 : vector<8x1xf32>
    %cst_14 = arith.constant 1.000000e-03 : f32
    %35 = vector.broadcast %cst_14 : f32 to vector<8x1xf32>
    %36 = arith.addf %34, %35 : vector<8x1xf32>
    %37 = tpu.reciprocal %36 {approx = true} : vector<8x1xf32> -> vector<8x1xf32>
    %38 = vector.broadcast %27 : vector<8x1xf32> to vector<8x128xf32>
    %39 = arith.subf %3, %38 : vector<8x128xf32>
    %40 = vector.broadcast %37 : vector<8x1xf32> to vector<8x128xf32>
    %41 = arith.mulf %39, %40 : vector<8x128xf32>
    %42 = vector.broadcast %18 : vector<1x128xf32> to vector<8x128xf32>
    %43 = arith.mulf %42, %41 : vector<8x128xf32>
    %44 = vector.broadcast %20 : vector<1x128xf32> to vector<8x128xf32>
    %45 = arith.addf %43, %44 : vector<8x128xf32>
    %46 = arith.truncf %45 : vector<8x128xf32> to vector<8x128xbf16>
    %c0_15 = arith.constant 0 : index
    %c0_16 = arith.constant 0 : index
    %c0_17 = arith.constant 0 : index
    %47 = vector.load %arg6[%c0_15, %c0_16, %c0_17] : memref<1x128x384xbf16, #tpu.memory_space<vmem>>, vector<1x128x384xbf16>
    %48 = vector.shape_cast %47 : vector<1x128x384xbf16> to vector<128x384xbf16>
    %cst_18 = arith.constant dense<0.000000e+00> : vector<8x384xf32>
    %49 = tpu.matmul %46, %48, %cst_18 {dimension_numbers = #tpu.dot_dimension_numbers<[1], [0], [0], [1], [0, 0, 1, 1], [], []>} : vector<8x128xbf16>, vector<128x384xbf16>, vector<8x384xf32> -> vector<8x384xf32>
    %50 = vector.extract_strided_slice %49 {offsets = [0, 0], sizes = [8, 128], strides = [1, 1]} : vector<8x384xf32> to vector<8x128xf32>
    %51 = vector.shape_cast %50 : vector<8x128xf32> to vector<8x8x16xf32>
    %52 = tpu.transpose %51, [1, 0, 2] : vector<8x8x16xf32> -> vector<8x8x16xf32>
    %53 = vector.extract_strided_slice %49 {offsets = [0, 128], sizes = [8, 128], strides = [1, 1]} : vector<8x384xf32> to vector<8x128xf32>
    %54 = vector.shape_cast %53 : vector<8x128xf32> to vector<8x8x16xf32>
    %55 = tpu.transpose %54, [1, 0, 2] : vector<8x8x16xf32> -> vector<8x8x16xf32>
    %56 = vector.extract_strided_slice %49 {offsets = [0, 256], sizes = [8, 128], strides = [1, 1]} : vector<8x384xf32> to vector<8x128xf32>
    %57 = vector.shape_cast %56 : vector<8x128xf32> to vector<8x8x16xf32>
    %58 = tpu.transpose %57, [1, 0, 2] : vector<8x8x16xf32> -> vector<8x8x16xf32>
    %59 = arith.truncf %52 : vector<8x8x16xf32> to vector<8x8x16xbf16>
    %60 = arith.truncf %55 : vector<8x8x16xf32> to vector<8x8x16xbf16>
    "tpu.trace_start"() <{level = 10 : i32, message = "hqd,hkd->hqk"}> : () -> ()
    %cst_19 = arith.constant dense<0.000000e+00> : vector<8x8x8xf32>
    %61 = tpu.matmul %59, %60, %cst_19 {dimension_numbers = #tpu.dot_dimension_numbers<[2], [2], [1], [1], [0, 0, 0, 1, 1, 1], [0], [0]>} : vector<8x8x16xbf16>, vector<8x8x16xbf16>, vector<8x8x8xf32> -> vector<8x8x8xf32>
    "tpu.trace_stop"() : () -> ()
    %62 = vector.shape_cast %12 : vector<1x8xf32> to vector<1x1x8xf32>
    %63 = vector.broadcast %62 : vector<1x1x8xf32> to vector<8x8x8xf32>
    %64 = arith.addf %61, %63 : vector<8x8x8xf32>
    %cst_20 = arith.constant dense<0xFF800000> : vector<8x8xf32>
    %65 = vector.multi_reduction <maximumf>, %64, %cst_20 [2] : vector<8x8x8xf32> to vector<8x8xf32>
    %66 = vector.shape_cast %65 : vector<8x8xf32> to vector<8x8x1xf32>
    %67 = vector.broadcast %66 : vector<8x8x1xf32> to vector<8x8x8xf32>
    %68 = arith.subf %64, %67 : vector<8x8x8xf32>
    %69 = math.exp %68 : vector<8x8x8xf32>
    %cst_21 = arith.constant dense<0.000000e+00> : vector<8x8xf32>
    %70 = vector.multi_reduction <add>, %69, %cst_21 [2] : vector<8x8x8xf32> to vector<8x8xf32>
    %71 = vector.shape_cast %70 : vector<8x8xf32> to vector<8x8x1xf32>
    %72 = tpu.reciprocal %71 {approx = true} : vector<8x8x1xf32> -> vector<8x8x1xf32>
    %73 = vector.broadcast %72 : vector<8x8x1xf32> to vector<8x8x8xf32>
    %74 = arith.mulf %69, %73 : vector<8x8x8xf32>
    %75 = vector.shape_cast %16 : vector<8x1xf32> to vector<1x8x1xf32>
    %76 = vector.broadcast %75 : vector<1x8x1xf32> to vector<8x8x8xf32>
    %77 = arith.mulf %74, %76 : vector<8x8x8xf32>
    %78 = arith.truncf %77 : vector<8x8x8xf32> to vector<8x8x8xbf16>
    %79 = arith.truncf %58 : vector<8x8x16xf32> to vector<8x8x16xbf16>
    "tpu.trace_start"() <{level = 10 : i32, message = "hqk,hkd->hqd"}> : () -> ()
    %cst_22 = arith.constant dense<0.000000e+00> : vector<8x8x16xf32>
    %80 = tpu.matmul %78, %79, %cst_22 {dimension_numbers = #tpu.dot_dimension_numbers<[2], [1], [1], [2], [0, 0, 0, 1, 1, 2], [0], [0]>} : vector<8x8x8xbf16>, vector<8x8x16xbf16>, vector<8x8x16xf32> -> vector<8x8x16xf32>
    "tpu.trace_stop"() : () -> ()
    %81 = tpu.transpose %80, [1, 0, 2] : vector<8x8x16xf32> -> vector<8x8x16xf32>
    %82 = vector.shape_cast %81 : vector<8x8x16xf32> to vector<8x128xf32>
    %83 = arith.truncf %82 : vector<8x128xf32> to vector<8x128xbf16>
    %c0_23 = arith.constant 0 : index
    %c0_24 = arith.constant 0 : index
    %c0_25 = arith.constant 0 : index
    %84 = vector.load %arg7[%c0_23, %c0_24, %c0_25] : memref<1x128x128xbf16, #tpu.memory_space<vmem>>, vector<1x128x128xbf16>
    %85 = vector.shape_cast %84 : vector<1x128x128xbf16> to vector<128x128xbf16>
    %cst_26 = arith.constant dense<0.000000e+00> : vector<8x128xf32>
    %86 = tpu.matmul %83, %85, %cst_26 {dimension_numbers = #tpu.dot_dimension_numbers<[1], [0], [0], [1], [0, 0, 1, 1], [], []>} : vector<8x128xbf16>, vector<128x128xbf16>, vector<8x128xf32> -> vector<8x128xf32>
    %87 = arith.addf %3, %86 : vector<8x128xf32>
    %c0_27 = arith.constant 0 : index
    %c0_28 = arith.constant 0 : index
    %c0_29 = arith.constant 0 : index
    %88 = vector.load %arg8[%c0_27, %c0_28, %c0_29] : memref<1x1x128xf32, #tpu.memory_space<vmem>>, vector<1x1x128xf32>
    %89 = vector.shape_cast %88 : vector<1x1x128xf32> to vector<1x128xf32>
    %c0_30 = arith.constant 0 : index
    %c0_31 = arith.constant 0 : index
    %c0_32 = arith.constant 0 : index
    %90 = vector.load %arg9[%c0_30, %c0_31, %c0_32] : memref<1x1x128xf32, #tpu.memory_space<vmem>>, vector<1x1x128xf32>
    %91 = vector.shape_cast %90 : vector<1x1x128xf32> to vector<1x128xf32>
    %cst_33 = arith.constant dense<0.000000e+00> : vector<8xf32>
    %92 = vector.multi_reduction <add>, %87, %cst_33 [1] : vector<8x128xf32> to vector<8xf32>
    %93 = vector.shape_cast %92 : vector<8xf32> to vector<8x1xf32>
    %94 = arith.mulf %87, %87 : vector<8x128xf32>
    %cst_34 = arith.constant dense<0.000000e+00> : vector<8xf32>
    %95 = vector.multi_reduction <add>, %94, %cst_34 [1] : vector<8x128xf32> to vector<8xf32>
    %96 = vector.shape_cast %95 : vector<8xf32> to vector<8x1xf32>
    %cst_35 = arith.constant 7.812500e-03 : f32
    %97 = vector.broadcast %cst_35 : f32 to vector<8x1xf32>
    %98 = arith.mulf %93, %97 : vector<8x1xf32>
    %99 = arith.mulf %93, %98 : vector<8x1xf32>
    %100 = arith.subf %96, %99 : vector<8x1xf32>
    %cst_36 = arith.constant 0.00787401571 : f32
    %101 = vector.broadcast %cst_36 : f32 to vector<8x1xf32>
    %102 = arith.mulf %100, %101 : vector<8x1xf32>
    %cst_37 = arith.constant 0.000000e+00 : f32
    %103 = vector.broadcast %cst_37 : f32 to vector<8x1xf32>
    %104 = arith.maximumf %102, %103 : vector<8x1xf32>
    %105 = math.sqrt %104 : vector<8x1xf32>
    %cst_38 = arith.constant 1.000000e-03 : f32
    %106 = vector.broadcast %cst_38 : f32 to vector<8x1xf32>
    %107 = arith.addf %105, %106 : vector<8x1xf32>
    %108 = tpu.reciprocal %107 {approx = true} : vector<8x1xf32> -> vector<8x1xf32>
    %109 = vector.broadcast %98 : vector<8x1xf32> to vector<8x128xf32>
    %110 = arith.subf %87, %109 : vector<8x128xf32>
    %111 = vector.broadcast %108 : vector<8x1xf32> to vector<8x128xf32>
    %112 = arith.mulf %110, %111 : vector<8x128xf32>
    %113 = vector.broadcast %89 : vector<1x128xf32> to vector<8x128xf32>
    %114 = arith.mulf %113, %112 : vector<8x128xf32>
    %115 = vector.broadcast %91 : vector<1x128xf32> to vector<8x128xf32>
    %116 = arith.addf %114, %115 : vector<8x128xf32>
    %117 = arith.truncf %116 : vector<8x128xf32> to vector<8x128xbf16>
    %c0_39 = arith.constant 0 : index
    %c0_40 = arith.constant 0 : index
    %c0_41 = arith.constant 0 : index
    %118 = vector.load %arg10[%c0_39, %c0_40, %c0_41] : memref<1x128x256xbf16, #tpu.memory_space<vmem>>, vector<1x128x256xbf16>
    %119 = vector.shape_cast %118 : vector<1x128x256xbf16> to vector<128x256xbf16>
    %cst_42 = arith.constant dense<0.000000e+00> : vector<8x256xf32>
    %120 = tpu.matmul %117, %119, %cst_42 {dimension_numbers = #tpu.dot_dimension_numbers<[1], [0], [0], [1], [0, 0, 1, 1], [], []>} : vector<8x128xbf16>, vector<128x256xbf16>, vector<8x256xf32> -> vector<8x256xf32>
    %c0_43 = arith.constant 0 : index
    %c0_44 = arith.constant 0 : index
    %c0_45 = arith.constant 0 : index
    %121 = vector.load %arg11[%c0_43, %c0_44, %c0_45] : memref<1x1x256xf32, #tpu.memory_space<vmem>>, vector<1x1x256xf32>
    %122 = vector.shape_cast %121 : vector<1x1x256xf32> to vector<1x256xf32>
    %123 = vector.broadcast %122 : vector<1x256xf32> to vector<8x256xf32>
    %124 = arith.addf %120, %123 : vector<8x256xf32>
    %cst_46 = arith.constant 0.000000e+00 : f32
    %125 = vector.broadcast %cst_46 : f32 to vector<8x256xf32>
    %126 = arith.maximumf %124, %125 : vector<8x256xf32>
    %127 = arith.truncf %126 : vector<8x256xf32> to vector<8x256xbf16>
    %c0_47 = arith.constant 0 : index
    %c0_48 = arith.constant 0 : index
    %c0_49 = arith.constant 0 : index
    %128 = vector.load %arg12[%c0_47, %c0_48, %c0_49] : memref<1x256x128xbf16, #tpu.memory_space<vmem>>, vector<1x256x128xbf16>
    %129 = vector.shape_cast %128 : vector<1x256x128xbf16> to vector<256x128xbf16>
    %cst_50 = arith.constant dense<0.000000e+00> : vector<8x128xf32>
    %130 = tpu.matmul %127, %129, %cst_50 {dimension_numbers = #tpu.dot_dimension_numbers<[1], [0], [0], [1], [0, 0, 1, 1], [], []>} : vector<8x256xbf16>, vector<256x128xbf16>, vector<8x128xf32> -> vector<8x128xf32>
    %c0_51 = arith.constant 0 : index
    %c0_52 = arith.constant 0 : index
    %c0_53 = arith.constant 0 : index
    %131 = vector.load %arg13[%c0_51, %c0_52, %c0_53] : memref<1x1x128xf32, #tpu.memory_space<vmem>>, vector<1x1x128xf32>
    %132 = vector.shape_cast %131 : vector<1x1x128xf32> to vector<1x128xf32>
    %133 = vector.broadcast %132 : vector<1x128xf32> to vector<8x128xf32>
    %134 = arith.addf %130, %133 : vector<8x128xf32>
    %135 = arith.addf %87, %134 : vector<8x128xf32>
    %c0_54 = arith.constant 0 : index
    %c0_55 = arith.constant 0 : index
    %136 = vector.load %arg17[%c0_54, %c0_55] : memref<8x128xf32, #tpu.memory_space<vmem>>, vector<8x128xf32>
    tpu.vector_store %arg17[%c0_54, %c0_55], %135 {strides = array<i32>} : memref<8x128xf32, #tpu.memory_space<vmem>>, vector<8x128xf32>,
    %c1_i32 = arith.constant 1 : i32
    %137 = arith.cmpi eq, %arg1, %c1_i32 : i32
    %138 = arith.extui %137 : i1 to i32
    %c0_i32_56 = arith.constant 0 : i32
    %139 = arith.cmpi ne, %138, %c0_i32_56 : i32
    scf.if %139 {
      %c0_57 = arith.constant 0 : index
      %c0_58 = arith.constant 0 : index
      %140 = vector.load %arg14[%c0_57, %c0_58] : memref<1x128xf32, #tpu.memory_space<vmem>>, vector<1x128xf32>
      %c0_59 = arith.constant 0 : index
      %c0_60 = arith.constant 0 : index
      %141 = vector.load %arg15[%c0_59, %c0_60] : memref<1x128xf32, #tpu.memory_space<vmem>>, vector<1x128xf32>
      %cst_61 = arith.constant dense<0.000000e+00> : vector<8xf32>
      %142 = vector.multi_reduction <add>, %135, %cst_61 [1] : vector<8x128xf32> to vector<8xf32>
      %143 = vector.shape_cast %142 : vector<8xf32> to vector<8x1xf32>
      %144 = arith.mulf %135, %135 : vector<8x128xf32>
      %cst_62 = arith.constant dense<0.000000e+00> : vector<8xf32>
      %145 = vector.multi_reduction <add>, %144, %cst_62 [1] : vector<8x128xf32> to vector<8xf32>
      %146 = vector.shape_cast %145 : vector<8xf32> to vector<8x1xf32>
      %cst_63 = arith.constant 7.812500e-03 : f32
      %147 = vector.broadcast %cst_63 : f32 to vector<8x1xf32>
      %148 = arith.mulf %143, %147 : vector<8x1xf32>
      %149 = arith.mulf %143, %148 : vector<8x1xf32>
      %150 = arith.subf %146, %149 : vector<8x1xf32>
      %cst_64 = arith.constant 0.00787401571 : f32
      %151 = vector.broadcast %cst_64 : f32 to vector<8x1xf32>
      %152 = arith.mulf %150, %151 : vector<8x1xf32>
      %cst_65 = arith.constant 0.000000e+00 : f32
      %153 = vector.broadcast %cst_65 : f32 to vector<8x1xf32>
      %154 = arith.maximumf %152, %153 : vector<8x1xf32>
      %155 = math.sqrt %154 : vector<8x1xf32>
      %cst_66 = arith.constant 1.000000e-03 : f32
      %156 = vector.broadcast %cst_66 : f32 to vector<8x1xf32>
      %157 = arith.addf %155, %156 : vector<8x1xf32>
      %158 = tpu.reciprocal %157 {approx = true} : vector<8x1xf32> -> vector<8x1xf32>
      %159 = vector.broadcast %148 : vector<8x1xf32> to vector<8x128xf32>
      %160 = arith.subf %135, %159 : vector<8x128xf32>
      %161 = vector.broadcast %158 : vector<8x1xf32> to vector<8x128xf32>
      %162 = arith.mulf %160, %161 : vector<8x128xf32>
      %163 = vector.broadcast %140 : vector<1x128xf32> to vector<8x128xf32>
      %164 = arith.mulf %163, %162 : vector<8x128xf32>
      %165 = vector.broadcast %141 : vector<1x128xf32> to vector<8x128xf32>
      %166 = arith.addf %164, %165 : vector<8x128xf32>
      %c0_67 = arith.constant 0 : index
      %c0_68 = arith.constant 0 : index
      %c0_69 = arith.constant 0 : index
      %167 = vector.load %arg16[%c0_67, %c0_68, %c0_69] : memref<1x8x128xf32, #tpu.memory_space<vmem>>, vector<1x8x128xf32>
      %168 = vector.shape_cast %167 : vector<1x8x128xf32> to vector<8x128xf32>
      %169 = vector.shape_cast %166 : vector<8x128xf32> to vector<1x8x128xf32>
      tpu.vector_store %arg16[%c0_67, %c0_68, %c0_69], %169 {strides = array<i32>} : memref<1x8x128xf32, #tpu.memory_space<vmem>>, vector<1x8x128xf32>,
    } else {
    }
    return
  }
  func.func @transform_0(%arg0: i32, %arg1: i32, %arg2: memref<2xi32, #tpu.memory_space<smem>>) -> (i32, i32, i32) {
    %c0_i32 = arith.constant 0 : i32
    %c0_i32_0 = arith.constant 0 : i32
    %c0_i32_1 = arith.constant 0 : i32
    return %arg0, %c0_i32, %c0_i32_0 : i32, i32, i32
  }
  func.func @transform_1(%arg0: i32, %arg1: i32, %arg2: memref<2xi32, #tpu.memory_space<smem>>) -> (i32, i32, i32) {
    %c0_i32 = arith.constant 0 : i32
    %c0_i32_0 = arith.constant 0 : i32
    %c0_i32_1 = arith.constant 0 : i32
    return %arg1, %c0_i32, %c0_i32_0 : i32, i32, i32
  }
  func.func @transform_2(%arg0: i32, %arg1: i32, %arg2: memref<2xi32, #tpu.memory_space<smem>>) -> (i32, i32, i32) {
    %c0_i32 = arith.constant 0 : i32
    %c0_i32_0 = arith.constant 0 : i32
    %c0_i32_1 = arith.constant 0 : i32
    return %arg1, %c0_i32, %c0_i32_0 : i32, i32, i32
  }
  func.func @transform_3(%arg0: i32, %arg1: i32, %arg2: memref<2xi32, #tpu.memory_space<smem>>) -> (i32, i32, i32) {
    %c0_i32 = arith.constant 0 : i32
    %c0_i32_0 = arith.constant 0 : i32
    %c0_i32_1 = arith.constant 0 : i32
    return %arg1, %c0_i32, %c0_i32_0 : i32, i32, i32
  }
  func.func @transform_4(%arg0: i32, %arg1: i32, %arg2: memref<2xi32, #tpu.memory_space<smem>>) -> (i32, i32, i32) {
    %c0_i32 = arith.constant 0 : i32
    %c0_i32_0 = arith.constant 0 : i32
    %c0_i32_1 = arith.constant 0 : i32
    return %arg1, %c0_i32, %c0_i32_0 : i32, i32, i32
  }
  func.func @transform_5(%arg0: i32, %arg1: i32, %arg2: memref<2xi32, #tpu.memory_space<smem>>) -> (i32, i32, i32) {
    %c0_i32 = arith.constant 0 : i32
    %c0_i32_0 = arith.constant 0 : i32
    %c0_i32_1 = arith.constant 0 : i32
    return %arg1, %c0_i32, %c0_i32_0 : i32, i32, i32
  }
  func.func @transform_6(%arg0: i32, %arg1: i32, %arg2: memref<2xi32, #tpu.memory_space<smem>>) -> (i32, i32, i32) {
    %c0_i32 = arith.constant 0 : i32
    %c0_i32_0 = arith.constant 0 : i32
    %c0_i32_1 = arith.constant 0 : i32
    return %arg1, %c0_i32, %c0_i32_0 : i32, i32, i32
  }
  func.func @transform_7(%arg0: i32, %arg1: i32, %arg2: memref<2xi32, #tpu.memory_space<smem>>) -> (i32, i32, i32) {
    %c0_i32 = arith.constant 0 : i32
    %c0_i32_0 = arith.constant 0 : i32
    %c0_i32_1 = arith.constant 0 : i32
    return %arg1, %c0_i32, %c0_i32_0 : i32, i32, i32
  }
  func.func @transform_8(%arg0: i32, %arg1: i32, %arg2: memref<2xi32, #tpu.memory_space<smem>>) -> (i32, i32, i32) {
    %c0_i32 = arith.constant 0 : i32
    %c0_i32_0 = arith.constant 0 : i32
    %c0_i32_1 = arith.constant 0 : i32
    return %arg1, %c0_i32, %c0_i32_0 : i32, i32, i32
  }
  func.func @transform_9(%arg0: i32, %arg1: i32, %arg2: memref<2xi32, #tpu.memory_space<smem>>) -> (i32, i32, i32) {
    %c0_i32 = arith.constant 0 : i32
    %c0_i32_0 = arith.constant 0 : i32
    %c0_i32_1 = arith.constant 0 : i32
    return %arg1, %c0_i32, %c0_i32_0 : i32, i32, i32
  }
  func.func @transform_10(%arg0: i32, %arg1: i32, %arg2: memref<2xi32, #tpu.memory_space<smem>>) -> (i32, i32, i32) {
    %c0_i32 = arith.constant 0 : i32
    %c0_i32_0 = arith.constant 0 : i32
    %c0_i32_1 = arith.constant 0 : i32
    return %arg1, %c0_i32, %c0_i32_0 : i32, i32, i32
  }
  func.func @transform_11(%arg0: i32, %arg1: i32, %arg2: memref<2xi32, #tpu.memory_space<smem>>) -> (i32, i32) {
    %c0_i32 = arith.constant 0 : i32
    %c0_i32_0 = arith.constant 0 : i32
    %c0_i32_1 = arith.constant 0 : i32
    return %c0_i32, %c0_i32_0 : i32, i32
  }
  func.func @transform_12(%arg0: i32, %arg1: i32, %arg2: memref<2xi32, #tpu.memory_space<smem>>) -> (i32, i32) {
    %c0_i32 = arith.constant 0 : i32
    %c0_i32_0 = arith.constant 0 : i32
    %c0_i32_1 = arith.constant 0 : i32
    return %c0_i32, %c0_i32_0 : i32, i32
  }
  func.func @transform_13(%arg0: i32, %arg1: i32, %arg2: memref<2xi32, #tpu.memory_space<smem>>) -> (i32, i32, i32) {
    %c0_i32 = arith.constant 0 : i32
    %c0_i32_0 = arith.constant 0 : i32
    %c0_i32_1 = arith.constant 0 : i32
    return %arg0, %c0_i32, %c0_i32_0 : i32, i32, i32
  }
}

</mosaic_0001>

<llo_original>
// kernel: tpu_custom_call.1
$region0: #{tpu_custom_call.1}
  #allocation0 [shape = 'u32[]', space=smem, size = 0x4, offset = 0x4, fixed_abs, tag = 'smem constant byte address 0x4 - core index']
  #allocation1 [shape = 'u32[144,128]{1,0:T(1,128)}', space=vmem, size = 0x12000, scoped, tag = 'internal scratch']
  #allocation2 [shape = 'f32[8,128]{1,0:T(8,128)}', space=vmem, size = 0x1000, scoped, tag = 'scratch operand']
  #allocation3 [shape = 's32[1]{0}', space=sflag, size = 0x4, scoped, tag = 'scoped memory for tpu_custom_call.1']
  #allocation4 [shape = 'u8[512]{0}', space=smem, size = 0x200, scoped, tag = 'prefetched SMEM operand 0']
  %s0 = inlined_call_operand.hbm [shape: s32[2], index: 0, kind: input, shape index: {}]
  %s1 = inlined_call_operand.hbm [shape: f32[2,8,128], index: 1, kind: input, shape index: {}]
  %s2 = inlined_call_operand.vmem [shape: f32[2,1,128], index: 2, kind: input, shape index: {}]
  %s3 = inlined_call_operand.hbm [shape: f32[2,1,128], index: 3, kind: input, shape index: {}]
  %s4 = inlined_call_operand.hbm [shape: bf16[2,128,384], index: 4, kind: input, shape index: {}]
  %s5 = inlined_call_operand.hbm [shape: bf16[2,128,128], index: 5, kind: input, shape index: {}]
  %s6 = inlined_call_operand.vmem [shape: f32[2,1,128], index: 6, kind: input, shape index: {}]
  %s7 = inlined_call_operand.vmem [shape: f32[2,1,128], index: 7, kind: input, shape index: {}]
  %s8 = inlined_call_operand.hbm [shape: bf16[2,128,256], index: 8, kind: input, shape index: {}]
  %s9 = inlined_call_operand.vmem [shape: f32[2,1,256], index: 9, kind: input, shape index: {}]
  %s10 = inlined_call_operand.hbm [shape: bf16[2,256,128], index: 10, kind: input, shape index: {}]
  %s11 = inlined_call_operand.vmem [shape: f32[2,1,128], index: 11, kind: input, shape index: {}]
  %s12 = inlined_call_operand.vmem [shape: f32[1,128], index: 12, kind: input, shape index: {}]
  %s13 = inlined_call_operand.vmem [shape: f32[1,128], index: 13, kind: input, shape index: {}]
  %s14 = inlined_call_operand.hbm [shape: f32[2,8,128], index: 14, kind: output, shape index: {}]
  %s15 = sld [smem:[#allocation0]]
  $region117: #{tpu_custom_call.1} parent=0
    _
  %s17 = ssub.s32 1, %s15
  %s18 = scalar_select 0, %s17, %s15
  %20 = dma.hbm_to_smem %s0, 16, [#allocation4], [#allocation3]
  %21 = dma.done [#allocation3], 16
  %22 = sfence
  $region1: #{tpu_custom_call.1} parent=0
    #allocation5 [shape = 'u8[8192]{0}', space=vmem, size = 0x2000, scoped, tag = 'input window, operand 1']
    #allocation6 [shape = 's32[2]{0}', space=sflag, size = 0x8, scoped, tag = 'scoped memory for tpu_custom_call.1']
    #allocation7 [shape = 's32[2]{0}', space=sflag, size = 0x8, scoped, tag = 'scoped memory for tpu_custom_call.1']
    #allocation8 [shape = 'u8[1024]{0}', space=vmem, size = 0x400, scoped, tag = 'input window, operand 3']
    #allocation9 [shape = 's32[2]{0}', space=sflag, size = 0x8, scoped, tag = 'scoped memory for tpu_custom_call.1']
    #allocation10 [shape = 'u8[196608]{0}', space=vmem, size = 0x30000, scoped, tag = 'input window, operand 4']
    #allocation11 [shape = 'u8[65536]{0}', space=vmem, size = 0x10000, scoped, tag = 'input window, operand 5']
    #allocation12 [shape = 's32[2]{0}', space=sflag, size = 0x8, scoped, tag = 'scoped memory for tpu_custom_call.1']
    #allocation13 [shape = 'u8[131072]{0}', space=vmem, size = 0x20000, scoped, tag = 'input window, operand 8']
    #allocation14 [shape = 'u8[131072]{0}', space=vmem, size = 0x20000, scoped, tag = 'input window, operand 10']
    #allocation15 [shape = 's32[2]{0}', space=sflag, size = 0x8, scoped, tag = 'scoped memory for tpu_custom_call.1']
    #allocation16 [shape = 'u8[8192]{0}', space=vmem, size = 0x2000, scoped, tag = 'output window, operand 0']
    %23 = vsyncpa [#allocation6], 0
    %s24 = scalar_lea.sflag [#allocation6], 1
    %25 = vsyncpa %s24, 0
    %26 = vsyncpa [#allocation9], 0
    %s27 = scalar_lea.sflag [#allocation9], 1
    %28 = vsyncpa %s27, 0
    %29 = vsyncpa [#allocation12], 0
    %s30 = scalar_lea.sflag [#allocation12], 1
    %31 = vsyncpa %s30, 0
    %32 = vsyncpa [#allocation15], 0
    %s33 = scalar_lea.sflag [#allocation15], 1
    %34 = vsyncpa %s33, 0
    %35 = vsyncpa [#allocation7], 0
    %s36 = scalar_lea.sflag [#allocation7], 1
    %37 = vsyncpa %s36, 0
    loop: start=0, step=1, limit=6
    $region2: #{tpu_custom_call.1} parent=1 // loop_pre_header
      _
    $region3: #{tpu_custom_call.1} parent=1 // loop_header
      %s39 = sphi 0, %s43
      %p40 = scmp.ge.s32.totalorder %s39, 6
      %s46 = sphi 0, %s58
      %s47 = sphi 0, %s54
      %s48 = sphi 0, %s46
      %s49 = sphi 0, %s47
      %s50 = sphi 0, %s48
      %s51 = sphi 0, %s49
      %s61 = sphi 0, %s63
      %s64 = sphi 0, %s61
      %s65 = sphi 0, %s64
      %s81 = sphi 0, %s65
      %s87 = sphi 0, %s89
      %s90 = sphi 0, %s87
      %s91 = sphi 0, %s90
      %s107 = sphi 0, %s91
      %s113 = sphi 0, %s115
      %s116 = sphi 0, %s113
      %s117 = sphi 0, %s116
      %s133 = sphi 0, %s117
      %s139 = sphi 0, %s141
      %s142 = sphi 0, %s139
      %s143 = sphi 0, %s142
      %s159 = sphi 0, %s143
      %s165 = sphi 0, %s167
      %s168 = sphi 0, %s165
      %s169 = sphi 0, %s168
      %s185 = sphi 0, %s169
      %s191 = sphi 0, %s193
      %s194 = sphi 0, %s191
      %s195 = sphi 0, %s194
      %s211 = sphi 0, %s195
      %s217 = sphi 0, %s219
      %s220 = sphi 0, %s217
      %s221 = sphi 0, %s220
      %s237 = sphi 0, %s221
      %s243 = sphi 0, %s245
      %s246 = sphi 0, %s243
      %s247 = sphi 0, %s246
      %s263 = sphi 0, %s247
      %s269 = sphi 0, %s271
      %s272 = sphi 0, %s269
      %s273 = sphi 0, %s272
      %s289 = sphi 0, %s273
      %s295 = sphi 0, %s297
      %s298 = sphi 0, %s295
      %s299 = sphi 0, %s298
      %s315 = sphi 0, %s299
      %s321 = sphi 0, %s323
      %s324 = sphi 0, %s321
      %s325 = sphi 0, %s324
      %s341 = sphi 0, %s325
      %s345 = sphi 0, %s345
      %s347 = sphi 0, %s345
      %s348 = sphi 0, %s347
      %s362 = sphi 0, %s348
      %s366 = sphi 0, %s366
      %s368 = sphi 0, %s366
      %s369 = sphi 0, %s368
      %s383 = sphi 0, %s369
      %s389 = sphi 0, %s391
      %s392 = sphi 0, %s389
      %s393 = sphi 0, %s392
      %s409 = sphi 0, %s393
    $region4: #{tpu_custom_call.1} parent=1 // loop_header_branch
      %42 = sbr.rel (%p40) target = $region8
    $region5: #{tpu_custom_call.1} parent=1 // loop_body
      %s44 = ssub.s32 %s39, 1
      %s45 = ssub.s32 %s39, 2
      %s52 = sadd.s32 1, %s47
      %p53 = scmp.ge.s32.totalorder %s52, 2
      %s54 = scalar_select %p53, 0, %s52
      %s55 = sadd.s32 1, %s46
      %s56 = scalar_select %p53, %s55, %s46
      %p57 = scmp.ge.s32.totalorder %s56, 2
      %s58 = scalar_select %p57, 0, %s56
      %s59 = ssub.s32 %s46, %s58
      %p60 = scmp.eq.s32.totalorder %s59, 0
      %s62 = sadd.s32 %s61, 1
      %s63 = scalar_select %p60, %s61, %s62
      %p66 = pneg %p60
      %p67 = scmp.eq.s32.totalorder %s39, 3
      %p68 = por %p66, %p67
      %p69 = scmp.ne.s32.totalorder %s61, %s64
      %p70 = scmp.eq.s32.totalorder %s39, 0
      %p71 = por %p69, %p70
      %p72 = scmp.ne.s32.totalorder %s61, %s64
      %p73 = scmp.eq.s32.totalorder %s44, 3
      %p74 = por %p72, %p73
      %p75 = scmp.ne.s32.totalorder %s64, %s65
      %p76 = scmp.eq.s32.totalorder %s44, 0
      %p77 = por %p75, %p76
      %p78 = scmp.ne.s32.totalorder %s64, %s65
      %p79 = scmp.eq.s32.totalorder %s45, 3
      %p80 = por %p78, %p79
      %p82 = scmp.ne.s32.totalorder %s65, %s81
      %p83 = scmp.eq.s32.totalorder %s45, 0
      %p84 = por %p82, %p83
      %s85 = ssub.s32 %s47, %s54
      %p86 = scmp.eq.s32.totalorder %s85, 0
      %s88 = sadd.s32 %s87, 1
      %s89 = scalar_select %p86, %s87, %s88
      %p92 = pneg %p86
      %p93 = scmp.eq.s32.totalorder %s39, 3
      %p94 = por %p92, %p93
      %p95 = scmp.ne.s32.totalorder %s87, %s90
      %p96 = scmp.eq.s32.totalorder %s39, 0
      %p97 = por %p95, %p96
      %p98 = scmp.ne.s32.totalorder %s87, %s90
      %p99 = scmp.eq.s32.totalorder %s44, 3
      %p100 = por %p98, %p99
      %p101 = scmp.ne.s32.totalorder %s90, %s91
      %p102 = scmp.eq.s32.totalorder %s44, 0
      %p103 = por %p101, %p102
      %p104 = scmp.ne.s32.totalorder %s90, %s91
      %p105 = scmp.eq.s32.totalorder %s45, 3
      %p106 = por %p104, %p105
      %p108 = scmp.ne.s32.totalorder %s91, %s107
      %p109 = scmp.eq.s32.totalorder %s45, 0
      %p110 = por %p108, %p109
      %s111 = ssub.s32 %s47, %s54
      %p112 = scmp.eq.s32.totalorder %s111, 0
      %s114 = sadd.s32 %s113, 1
      %s115 = scalar_select %p112, %s113, %s114
      %p118 = pneg %p112
      %p119 = scmp.eq.s32.totalorder %s39, 3
      %p120 = por %p118, %p119
      %p121 = scmp.ne.s32.totalorder %s113, %s116
      %p122 = scmp.eq.s32.totalorder %s39, 0
      %p123 = por %p121, %p122
      %p124 = scmp.ne.s32.totalorder %s113, %s116
      %p125 = scmp.eq.s32.totalorder %s44, 3
      %p126 = por %p124, %p125
      %p127 = scmp.ne.s32.totalorder %s116, %s117
      %p128 = scmp.eq.s32.totalorder %s44, 0
      %p129 = por %p127, %p128
      %p130 = scmp.ne.s32.totalorder %s116, %s117
      %p131 = scmp.eq.s32.totalorder %s45, 3
      %p132 = por %p130, %p131
      %p134 = scmp.ne.s32.totalorder %s117, %s133
      %p135 = scmp.eq.s32.totalorder %s45, 0
      %p136 = por %p134, %p135
      %s137 = ssub.s32 %s47, %s54
      %p138 = scmp.eq.s32.totalorder %s137, 0
      %s140 = sadd.s32 %s139, 1
      %s141 = scalar_select %p138, %s139, %s140
      %p144 = pneg %p138
      %p145 = scmp.eq.s32.totalorder %s39, 3
      %p146 = por %p144, %p145
      %p147 = scmp.ne.s32.totalorder %s139, %s142
      %p148 = scmp.eq.s32.totalorder %s39, 0
      %p149 = por %p147, %p148
      %p150 = scmp.ne.s32.totalorder %s139, %s142
      %p151 = scmp.eq.s32.totalorder %s44, 3
      %p152 = por %p150, %p151
      %p153 = scmp.ne.s32.totalorder %s142, %s143
      %p154 = scmp.eq.s32.totalorder %s44, 0
      %p155 = por %p153, %p154
      %p156 = scmp.ne.s32.totalorder %s142, %s143
      %p157 = scmp.eq.s32.totalorder %s45, 3
      %p158 = por %p156, %p157
      %p160 = scmp.ne.s32.totalorder %s143, %s159
      %p161 = scmp.eq.s32.totalorder %s45, 0
      %p162 = por %p160, %p161
      %s163 = ssub.s32 %s47, %s54
      %p164 = scmp.eq.s32.totalorder %s163, 0
      %s166 = sadd.s32 %s165, 1
      %s167 = scalar_select %p164, %s165, %s166
      %p170 = pneg %p164
      %p171 = scmp.eq.s32.totalorder %s39, 3
      %p172 = por %p170, %p171
      %p173 = scmp.ne.s32.totalorder %s165, %s168
      %p174 = scmp.eq.s32.totalorder %s39, 0
      %p175 = por %p173, %p174
      %p176 = scmp.ne.s32.totalorder %s165, %s168
      %p177 = scmp.eq.s32.totalorder %s44, 3
      %p178 = por %p176, %p177
      %p179 = scmp.ne.s32.totalorder %s168, %s169
      %p180 = scmp.eq.s32.totalorder %s44, 0
      %p181 = por %p179, %p180
      %p182 = scmp.ne.s32.totalorder %s168, %s169
      %p183 = scmp.eq.s32.totalorder %s45, 3
      %p184 = por %p182, %p183
      %p186 = scmp.ne.s32.totalorder %s169, %s185
      %p187 = scmp.eq.s32.totalorder %s45, 0
      %p188 = por %p186, %p187
      %s189 = ssub.s32 %s47, %s54
      %p190 = scmp.eq.s32.totalorder %s189, 0
      %s192 = sadd.s32 %s191, 1
      %s193 = scalar_select %p190, %s191, %s192
      %p196 = pneg %p190
      %p197 = scmp.eq.s32.totalorder %s39, 3
      %p198 = por %p196, %p197
      %p199 = scmp.ne.s32.totalorder %s191, %s194
      %p200 = scmp.eq.s32.totalorder %s39, 0
      %p201 = por %p199, %p200
      %p202 = scmp.ne.s32.totalorder %s191, %s194
      %p203 = scmp.eq.s32.totalorder %s44, 3
      %p204 = por %p202, %p203
      %p205 = scmp.ne.s32.totalorder %s194, %s195
      %p206 = scmp.eq.s32.totalorder %s44, 0
      %p207 = por %p205, %p206
      %p208 = scmp.ne.s32.totalorder %s194, %s195
      %p209 = scmp.eq.s32.totalorder %s45, 3
      %p210 = por %p208, %p209
      %p212 = scmp.ne.s32.totalorder %s195, %s211
      %p213 = scmp.eq.s32.totalorder %s45, 0
      %p214 = por %p212, %p213
      %s215 = ssub.s32 %s47, %s54
      %p216 = scmp.eq.s32.totalorder %s215, 0
      %s218 = sadd.s32 %s217, 1
      %s219 = scalar_select %p216, %s217, %s218
      %p222 = pneg %p216
      %p223 = scmp.eq.s32.totalorder %s39, 3
      %p224 = por %p222, %p223
      %p225 = scmp.ne.s32.totalorder %s217, %s220
      %p226 = scmp.eq.s32.totalorder %s39, 0
      %p227 = por %p225, %p226
      %p228 = scmp.ne.s32.totalorder %s217, %s220
      %p229 = scmp.eq.s32.totalorder %s44, 3
      %p230 = por %p228, %p229
      %p231 = scmp.ne.s32.totalorder %s220, %s221
      %p232 = scmp.eq.s32.totalorder %s44, 0
      %p233 = por %p231, %p232
      %p234 = scmp.ne.s32.totalorder %s220, %s221
      %p235 = scmp.eq.s32.totalorder %s45, 3
      %p236 = por %p234, %p235
      %p238 = scmp.ne.s32.totalorder %s221, %s237
      %p239 = scmp.eq.s32.totalorder %s45, 0
      %p240 = por %p238, %p239
      %s241 = ssub.s32 %s47, %s54
      %p242 = scmp.eq.s32.totalorder %s241, 0
      %s244 = sadd.s32 %s243, 1
      %s245 = scalar_select %p242, %s243, %s244
      %p248 = pneg %p242
      %p249 = scmp.eq.s32.totalorder %s39, 3
      %p250 = por %p248, %p249
      %p251 = scmp.ne.s32.totalorder %s243, %s246
      %p252 = scmp.eq.s32.totalorder %s39, 0
      %p253 = por %p251, %p252
      %p254 = scmp.ne.s32.totalorder %s243, %s246
      %p255 = scmp.eq.s32.totalorder %s44, 3
      %p256 = por %p254, %p255
      %p257 = scmp.ne.s32.totalorder %s246, %s247
      %p258 = scmp.eq.s32.totalorder %s44, 0
      %p259 = por %p257, %p258
      %p260 = scmp.ne.s32.totalorder %s246, %s247
      %p261 = scmp.eq.s32.totalorder %s45, 3
      %p262 = por %p260, %p261
      %p264 = scmp.ne.s32.totalorder %s247, %s263
      %p265 = scmp.eq.s32.totalorder %s45, 0
      %p266 = por %p264, %p265
      %s267 = ssub.s32 %s47, %s54
      %p268 = scmp.eq.s32.totalorder %s267, 0
      %s270 = sadd.s32 %s269, 1
      %s271 = scalar_select %p268, %s269, %s270
      %p274 = pneg %p268
      %p275 = scmp.eq.s32.totalorder %s39, 3
      %p276 = por %p274, %p275
      %p277 = scmp.ne.s32.totalorder %s269, %s272
      %p278 = scmp.eq.s32.totalorder %s39, 0
      %p279 = por %p277, %p278
      %p280 = scmp.ne.s32.totalorder %s269, %s272
      %p281 = scmp.eq.s32.totalorder %s44, 3
      %p282 = por %p280, %p281
      %p283 = scmp.ne.s32.totalorder %s272, %s273
      %p284 = scmp.eq.s32.totalorder %s44, 0
      %p285 = por %p283, %p284
      %p286 = scmp.ne.s32.totalorder %s272, %s273
      %p287 = scmp.eq.s32.totalorder %s45, 3
      %p288 = por %p286, %p287
      %p290 = scmp.ne.s32.totalorder %s273, %s289
      %p291 = scmp.eq.s32.totalorder %s45, 0
      %p292 = por %p290, %p291
      %s293 = ssub.s32 %s47, %s54
      %p294 = scmp.eq.s32.totalorder %s293, 0
      %s296 = sadd.s32 %s295, 1
      %s297 = scalar_select %p294, %s295, %s296
      %p300 = pneg %p294
      %p301 = scmp.eq.s32.totalorder %s39, 3
      %p302 = por %p300, %p301
      %p303 = scmp.ne.s32.totalorder %s295, %s298
      %p304 = scmp.eq.s32.totalorder %s39, 0
      %p305 = por %p303, %p304
      %p306 = scmp.ne.s32.totalorder %s295, %s298
      %p307 = scmp.eq.s32.totalorder %s44, 3
      %p308 = por %p306, %p307
      %p309 = scmp.ne.s32.totalorder %s298, %s299
      %p310 = scmp.eq.s32.totalorder %s44, 0
      %p311 = por %p309, %p310
      %p312 = scmp.ne.s32.totalorder %s298, %s299
      %p313 = scmp.eq.s32.totalorder %s45, 3
      %p314 = por %p312, %p313
      %p316 = scmp.ne.s32.totalorder %s299, %s315
      %p317 = scmp.eq.s32.totalorder %s45, 0
      %p318 = por %p316, %p317
      %s319 = ssub.s32 %s47, %s54
      %p320 = scmp.eq.s32.totalorder %s319, 0
      %s322 = sadd.s32 %s321, 1
      %s323 = scalar_select %p320, %s321, %s322
      %p326 = pneg %p320
      %p327 = scmp.eq.s32.totalorder %s39, 3
      %p328 = por %p326, %p327
      %p329 = scmp.ne.s32.totalorder %s321, %s324
      %p330 = scmp.eq.s32.totalorder %s39, 0
      %p331 = por %p329, %p330
      %p332 = scmp.ne.s32.totalorder %s321, %s324
      %p333 = scmp.eq.s32.totalorder %s44, 3
      %p334 = por %p332, %p333
      %p335 = scmp.ne.s32.totalorder %s324, %s325
      %p336 = scmp.eq.s32.totalorder %s44, 0
      %p337 = por %p335, %p336
      %p338 = scmp.ne.s32.totalorder %s324, %s325
      %p339 = scmp.eq.s32.totalorder %s45, 3
      %p340 = por %p338, %p339
      %p342 = scmp.ne.s32.totalorder %s325, %s341
      %p343 = scmp.eq.s32.totalorder %s45, 0
      %p344 = por %p342, %p343
      %s346 = sadd.s32 %s345, 1
      %p349 = scmp.eq.s32.totalorder %s39, 3
      %p350 = scmp.ne.s32.totalorder %s345, %s347
      %p351 = scmp.eq.s32.totalorder %s39, 0
      %p352 = por %p350, %p351
      %p353 = scmp.ne.s32.totalorder %s345, %s347
      %p354 = scmp.eq.s32.totalorder %s44, 3
      %p355 = por %p353, %p354
      %p356 = scmp.ne.s32.totalorder %s347, %s348
      %p357 = scmp.eq.s32.totalorder %s44, 0
      %p358 = por %p356, %p357
      %p359 = scmp.ne.s32.totalorder %s347, %s348
      %p360 = scmp.eq.s32.totalorder %s45, 3
      %p361 = por %p359, %p360
      %p363 = scmp.ne.s32.totalorder %s348, %s362
      %p364 = scmp.eq.s32.totalorder %s45, 0
      %p365 = por %p363, %p364
      %s367 = sadd.s32 %s366, 1
      %p370 = scmp.eq.s32.totalorder %s39, 3
      %p371 = scmp.ne.s32.totalorder %s366, %s368
      %p372 = scmp.eq.s32.totalorder %s39, 0
      %p373 = por %p371, %p372
      %p374 = scmp.ne.s32.totalorder %s366, %s368
      %p375 = scmp.eq.s32.totalorder %s44, 3
      %p376 = por %p374, %p375
      %p377 = scmp.ne.s32.totalorder %s368, %s369
      %p378 = scmp.eq.s32.totalorder %s44, 0
      %p379 = por %p377, %p378
      %p380 = scmp.ne.s32.totalorder %s368, %s369
      %p381 = scmp.eq.s32.totalorder %s45, 3
      %p382 = por %p380, %p381
      %p384 = scmp.ne.s32.totalorder %s369, %s383
      %p385 = scmp.eq.s32.totalorder %s45, 0
      %p386 = por %p384, %p385
      %s387 = ssub.s32 %s46, %s58
      %p388 = scmp.eq.s32.totalorder %s387, 0
      %s390 = sadd.s32 %s389, 1
      %s391 = scalar_select %p388, %s389, %s390
      %p394 = pneg %p388
      %p395 = scmp.eq.s32.totalorder %s39, 3
      %p396 = por %p394, %p395
      %p397 = scmp.ne.s32.totalorder %s389, %s392
      %p398 = scmp.eq.s32.totalorder %s39, 0
      %p399 = por %p397, %p398
      %p400 = scmp.ne.s32.totalorder %s389, %s392
      %p401 = scmp.eq.s32.totalorder %s44, 3
      %p402 = por %p400, %p401
      %p403 = scmp.ne.s32.totalorder %s392, %s393
      %p404 = scmp.eq.s32.totalorder %s44, 0
      %p405 = por %p403, %p404
      %p406 = scmp.ne.s32.totalorder %s392, %s393
      %p407 = scmp.eq.s32.totalorder %s45, 3
      %p408 = por %p406, %p407
      %p410 = scmp.ne.s32.totalorder %s393, %s409
      %p411 = scmp.eq.s32.totalorder %s45, 0
      %p412 = por %p410, %p411
      %p413 = scmp.le.s32.totalorder 1, %s39
      %p414 = scmp.lt.s32.totalorder %s39, 5
      %p415 = pnand %p413, %p414
      %p416 = pneg %p415
      // Predicated region
      $region9: #{tpu_custom_call.1} parent=5 // pred_check
        _
      $region10: #{tpu_custom_call.1} parent=5 // pred_check_branch
        %418 = sbr.rel (%p415) target = $region12
      $region11: #{tpu_custom_call.1} parent=5 // pred_region
        %s419 = ssub.s32 %s39, 1
        // Predicated region
        $region13: #{tpu_custom_call.1} parent=11 // pred_check
          %p420 = pneg %p358
        $region14: #{tpu_custom_call.1} parent=11 // pred_check_branch
          %422 = sbr.rel (%p420) target = $region16
        $region15: #{tpu_custom_call.1} parent=11 // pred_region
          _
        $region16: #{tpu_custom_call.1} parent=11 // pred_fallthru
          _
        // Predicated region
        $region17: #{tpu_custom_call.1} parent=11 // pred_check
          %p423 = pneg %p379
        $region18: #{tpu_custom_call.1} parent=11 // pred_check_branch
          %425 = sbr.rel (%p423) target = $region20
        $region19: #{tpu_custom_call.1} parent=11 // pred_region
          _
        $region20: #{tpu_custom_call.1} parent=11 // pred_fallthru
          _
      $region12: #{tpu_custom_call.1} parent=5 // pred_fallthru
        _
      %p426 = scmp.lt.s32.totalorder %s39, 4
      // Predicated region
      $region21: #{tpu_custom_call.1} parent=5 // pred_check
        %p427 = pneg %p426
      $region22: #{tpu_custom_call.1} parent=5 // pred_check_branch
        %429 = sbr.rel (%p427) target = $region24
      $region23: #{tpu_custom_call.1} parent=5 // pred_region
        // Predicated region
        $region25: #{tpu_custom_call.1} parent=23 // pred_check
          %p430 = pneg %p71
        $region26: #{tpu_custom_call.1} parent=23 // pred_check_branch
          %432 = sbr.rel (%p430) target = $region28
        $region27: #{tpu_custom_call.1} parent=23 // pred_region
          %s433 = sand.u32 %s61, 1
          %s434 = scalar_lea.sflag [#allocation6], %s433
          %s435 = sand.u32 %s61, 1
          %s436 = smul.addr %s435, 8
          %s437 = scalar_lea.vmem [#allocation5], %s436
          %s439 = ssub.s32 128, 128
          %440 = vsyncadd %s434, %s439
          %s441 = smul.addr %s46, 128
          %s442 = scalar_lea.hbm %s1, %s441
          %s444 = sshll.u32 %s437, 4
          %s445 = int_to_ptr.vmem [resolvable:$true] %s444
          %447 = dma.hbm_to_vmem [thread:$0]  %s442, 128, %s445, %s434
        $region28: #{tpu_custom_call.1} parent=23 // pred_fallthru
          _
        // Predicated region
        $region29: #{tpu_custom_call.1} parent=23 // pred_check
          %p448 = pneg %p97
        $region30: #{tpu_custom_call.1} parent=23 // pred_check_branch
          %450 = sbr.rel (%p448) target = $region32
        $region31: #{tpu_custom_call.1} parent=23 // pred_region
          %p451 = scmp.lt.s32.totalorder %s47, 1
          %s452 = scalar_select %p451, %s47, 1
          %s453 = scalar_lea.vmem %s2, %s452
        $region32: #{tpu_custom_call.1} parent=23 // pred_fallthru
          _
        // Predicated region
        $region33: #{tpu_custom_call.1} parent=23 // pred_check
          %p454 = pneg %p123
        $region34: #{tpu_custom_call.1} parent=23 // pred_check_branch
          %456 = sbr.rel (%p454) target = $region36
        $region35: #{tpu_custom_call.1} parent=23 // pred_region
          %s457 = sand.u32 %s39, 1
          %s458 = scalar_lea.sflag [#allocation9], %s457
          %s459 = sand.u32 %s113, 1
          %s460 = scalar_lea.vmem [#allocation8], %s459
          %s462 = ssub.s32 16, 16
          %463 = vsyncadd %s458, %s462
          %s464 = smul.addr %s47, 16
          %s465 = scalar_lea.hbm %s3, %s464
          %s467 = sshll.u32 %s460, 4
          %s468 = int_to_ptr.vmem [resolvable:$true] %s467
          %470 = dma.hbm_to_vmem [thread:$0]  %s465, 16, %s468, %s458
        $region36: #{tpu_custom_call.1} parent=23 // pred_fallthru
          _
        // Predicated region
        $region37: #{tpu_custom_call.1} parent=23 // pred_check
          %p471 = pneg %p149
        $region38: #{tpu_custom_call.1} parent=23 // pred_check_branch
          %473 = sbr.rel (%p471) target = $region40
        $region39: #{tpu_custom_call.1} parent=23 // pred_region
          %s474 = sand.u32 %s39, 1
          %s475 = scalar_lea.sflag [#allocation9], %s474
          %s476 = sand.u32 %s139, 1
          %s477 = smul.addr %s476, 192
          %s478 = scalar_lea.vmem [#allocation10], %s477
          %s480 = ssub.s32 3072, 3072
          %481 = vsyncadd %s475, %s480
          %s482 = smul.addr %s47, 48
          %s483 = smul.addr %s482, 64
          %s484 = scalar_lea.hbm %s4, %s483
          %s485 = sshll.u32 %s478, 4
          %s486 = int_to_ptr.vmem [resolvable:$true] %s485
          %491 = dma.hbm_to_vmem [thread:$0]  %s484, 3072, %s486, %s475, 192, 192, 12
        $region40: #{tpu_custom_call.1} parent=23 // pred_fallthru
          _
        // Predicated region
        $region41: #{tpu_custom_call.1} parent=23 // pred_check
          %p492 = pneg %p175
        $region42: #{tpu_custom_call.1} parent=23 // pred_check_branch
          %494 = sbr.rel (%p492) target = $region44
        $region43: #{tpu_custom_call.1} parent=23 // pred_region
          %s495 = sand.u32 %s39, 1
          %s496 = scalar_lea.sflag [#allocation12], %s495
          %s497 = sand.u32 %s165, 1
          %s498 = smul.addr %s497, 64
          %s499 = scalar_lea.vmem [#allocation11], %s498
          %s501 = ssub.s32 1024, 1024
          %502 = vsyncadd %s496, %s501
          %s503 = smul.addr %s47, 16
          %s504 = smul.addr %s503, 64
          %s505 = scalar_lea.hbm %s5, %s504
          %s506 = sshll.u32 %s499, 4
          %s507 = int_to_ptr.vmem [resolvable:$true] %s506
          %512 = dma.hbm_to_vmem [thread:$0]  %s505, 1024, %s507, %s496, 64, 64, 4
        $region44: #{tpu_custom_call.1} parent=23 // pred_fallthru
          _
        // Predicated region
        $region45: #{tpu_custom_call.1} parent=23 // pred_check
          %p513 = pneg %p201
        $region46: #{tpu_custom_call.1} parent=23 // pred_check_branch
          %515 = sbr.rel (%p513) target = $region48
        $region47: #{tpu_custom_call.1} parent=23 // pred_region
          %p516 = scmp.lt.s32.totalorder %s47, 1
          %s517 = scalar_select %p516, %s47, 1
          %s518 = scalar_lea.vmem %s6, %s517
        $region48: #{tpu_custom_call.1} parent=23 // pred_fallthru
          _
        // Predicated region
        $region49: #{tpu_custom_call.1} parent=23 // pred_check
          %p519 = pneg %p227
        $region50: #{tpu_custom_call.1} parent=23 // pred_check_branch
          %521 = sbr.rel (%p519) target = $region52
        $region51: #{tpu_custom_call.1} parent=23 // pred_region
          %p522 = scmp.lt.s32.totalorder %s47, 1
          %s523 = scalar_select %p522, %s47, 1
          %s524 = scalar_lea.vmem %s7, %s523
        $region52: #{tpu_custom_call.1} parent=23 // pred_fallthru
          _
        // Predicated region
        $region53: #{tpu_custom_call.1} parent=23 // pred_check
          %p525 = pneg %p253
        $region54: #{tpu_custom_call.1} parent=23 // pred_check_branch
          %527 = sbr.rel (%p525) target = $region56
        $region55: #{tpu_custom_call.1} parent=23 // pred_region
          %s528 = sand.u32 %s39, 1
          %s529 = scalar_lea.sflag [#allocation12], %s528
          %s530 = sand.u32 %s243, 1
          %s531 = smul.addr %s530, 128
          %s532 = scalar_lea.vmem [#allocation13], %s531
          %s534 = ssub.s32 2048, 2048
          %535 = vsyncadd %s529, %s534
          %s536 = smul.addr %s47, 32
          %s537 = smul.addr %s536, 64
          %s538 = scalar_lea.hbm %s8, %s537
          %s539 = sshll.u32 %s532, 4
          %s540 = int_to_ptr.vmem [resolvable:$true] %s539
          %545 = dma.hbm_to_vmem [thread:$0]  %s538, 2048, %s540, %s529, 128, 128, 8
        $region56: #{tpu_custom_call.1} parent=23 // pred_fallthru
          _
        // Predicated region
        $region57: #{tpu_custom_call.1} parent=23 // pred_check
          %p546 = pneg %p279
        $region58: #{tpu_custom_call.1} parent=23 // pred_check_branch
          %548 = sbr.rel (%p546) target = $region60
        $region59: #{tpu_custom_call.1} parent=23 // pred_region
          %p549 = scmp.lt.s32.totalorder %s47, 1
          %s550 = scalar_select %p549, %s47, 1
          %s551 = smul.addr %s550, 2
          %s552 = scalar_lea.vmem %s9, %s551
        $region60: #{tpu_custom_call.1} parent=23 // pred_fallthru
          _
        // Predicated region
        $region61: #{tpu_custom_call.1} parent=23 // pred_check
          %p553 = pneg %p305
        $region62: #{tpu_custom_call.1} parent=23 // pred_check_branch
          %555 = sbr.rel (%p553) target = $region64
        $region63: #{tpu_custom_call.1} parent=23 // pred_region
          %s556 = sand.u32 %s295, 1
          %s557 = scalar_lea.sflag [#allocation15], %s556
          %s558 = sand.u32 %s295, 1
          %s559 = smul.addr %s558, 128
          %s560 = scalar_lea.vmem [#allocation14], %s559
          %s562 = ssub.s32 2048, 2048
          %563 = vsyncadd %s557, %s562
          %s564 = smul.addr %s47, 32
          %s565 = smul.addr %s564, 64
          %s566 = scalar_lea.hbm %s10, %s565
          %s567 = sshll.u32 %s560, 4
          %s568 = int_to_ptr.vmem [resolvable:$true] %s567
          %573 = dma.hbm_to_vmem [thread:$0]  %s566, 2048, %s568, %s557, 64, 64, 4
        $region64: #{tpu_custom_call.1} parent=23 // pred_fallthru
          _
        // Predicated region
        $region65: #{tpu_custom_call.1} parent=23 // pred_check
          %p574 = pneg %p331
        $region66: #{tpu_custom_call.1} parent=23 // pred_check_branch
          %576 = sbr.rel (%p574) target = $region68
        $region67: #{tpu_custom_call.1} parent=23 // pred_region
          %p577 = scmp.lt.s32.totalorder %s47, 1
          %s578 = scalar_select %p577, %s47, 1
          %s579 = scalar_lea.vmem %s11, %s578
        $region68: #{tpu_custom_call.1} parent=23 // pred_fallthru
          _
      $region24: #{tpu_custom_call.1} parent=5 // pred_fallthru
        _
      %p580 = scmp.le.s32.totalorder 1, %s39
      %p581 = scmp.lt.s32.totalorder %s39, 5
      %p582 = pnand %p580, %p581
      %p583 = pneg %p582
      // Predicated region
      $region69: #{tpu_custom_call.1} parent=5 // pred_check
        _
      $region70: #{tpu_custom_call.1} parent=5 // pred_check_branch
        %585 = sbr.rel (%p582) target = $region72
      $region71: #{tpu_custom_call.1} parent=5 // pred_region
        %s586 = ssub.s32 %s39, 1
        %s587 = sand.u32 %s64, 1
        %s588 = scalar_lea.sflag [#allocation6], %s587
        %s589 = sand.u32 %s64, 1
        %s590 = smul.addr %s589, 8
        %s591 = scalar_lea.vmem [#allocation5], %s590
        // Predicated region
        $region73: #{tpu_custom_call.1} parent=71 // pred_check
          %p592 = pneg %p77
        $region74: #{tpu_custom_call.1} parent=71 // pred_check_branch
          %594 = sbr.rel (%p592) target = $region76
        $region75: #{tpu_custom_call.1} parent=71 // pred_region
          %595 = dma.done %s588, 128
        $region76: #{tpu_custom_call.1} parent=71 // pred_fallthru
          _
        %s596 = sand.u32 %s44, 1
        %s597 = scalar_lea.sflag [#allocation9], %s596
        %s598 = sand.u32 %s116, 1
        %s599 = scalar_lea.vmem [#allocation8], %s598
        // Predicated region
        $region77: #{tpu_custom_call.1} parent=71 // pred_check
          %p600 = pneg %p129
        $region78: #{tpu_custom_call.1} parent=71 // pred_check_branch
          %602 = sbr.rel (%p600) target = $region80
        $region79: #{tpu_custom_call.1} parent=71 // pred_region
          %603 = dma.done %s597, 16
        $region80: #{tpu_custom_call.1} parent=71 // pred_fallthru
          _
        %s604 = sand.u32 %s44, 1
        %s605 = scalar_lea.sflag [#allocation9], %s604
        %s606 = sand.u32 %s142, 1
        %s607 = smul.addr %s606, 192
        %s608 = scalar_lea.vmem [#allocation10], %s607
        // Predicated region
        $region81: #{tpu_custom_call.1} parent=71 // pred_check
          %p609 = pneg %p155
        $region82: #{tpu_custom_call.1} parent=71 // pred_check_branch
          %611 = sbr.rel (%p609) target = $region84
        $region83: #{tpu_custom_call.1} parent=71 // pred_region
          %612 = dma.done %s605, 3072
        $region84: #{tpu_custom_call.1} parent=71 // pred_fallthru
          _
        %s613 = sand.u32 %s44, 1
        %s614 = scalar_lea.sflag [#allocation12], %s613
        %s615 = sand.u32 %s168, 1
        %s616 = smul.addr %s615, 64
        %s617 = scalar_lea.vmem [#allocation11], %s616
        // Predicated region
        $region85: #{tpu_custom_call.1} parent=71 // pred_check
          %p618 = pneg %p181
        $region86: #{tpu_custom_call.1} parent=71 // pred_check_branch
          %620 = sbr.rel (%p618) target = $region88
        $region87: #{tpu_custom_call.1} parent=71 // pred_region
          %621 = dma.done %s614, 1024
        $region88: #{tpu_custom_call.1} parent=71 // pred_fallthru
          _
        %s622 = sand.u32 %s44, 1
        %s623 = scalar_lea.sflag [#allocation12], %s622
        %s624 = sand.u32 %s246, 1
        %s625 = smul.addr %s624, 128
        %s626 = scalar_lea.vmem [#allocation13], %s625
        // Predicated region
        $region89: #{tpu_custom_call.1} parent=71 // pred_check
          %p627 = pneg %p259
        $region90: #{tpu_custom_call.1} parent=71 // pred_check_branch
          %629 = sbr.rel (%p627) target = $region92
        $region91: #{tpu_custom_call.1} parent=71 // pred_region
          %630 = dma.done %s623, 2048
        $region92: #{tpu_custom_call.1} parent=71 // pred_fallthru
          _
        %s631 = sand.u32 %s298, 1
        %s632 = scalar_lea.sflag [#allocation15], %s631
        %s633 = sand.u32 %s298, 1
        %s634 = smul.addr %s633, 128
        %s635 = scalar_lea.vmem [#allocation14], %s634
        // Predicated region
        $region93: #{tpu_custom_call.1} parent=71 // pred_check
          %p636 = pneg %p311
        $region94: #{tpu_custom_call.1} parent=71 // pred_check_branch
          %638 = sbr.rel (%p636) target = $region96
        $region95: #{tpu_custom_call.1} parent=71 // pred_region
          %639 = dma.done %s632, 2048
        $region96: #{tpu_custom_call.1} parent=71 // pred_fallthru
          _
        %s640 = sand.u32 %s64, 1
        %s641 = scalar_lea.sflag [#allocation6], %s640
        %s642 = sand.u32 %s64, 1
        %s643 = smul.addr %s642, 8
        %s644 = scalar_lea.vmem [#allocation5], %s643
        %p645 = pneg %p77
        %p646 = pneg %p74
        %p647 = scmp.lt.s32.totalorder %s49, 1
        %s648 = scalar_select %p647, %s49, 1
        %s649 = scalar_lea.vmem %s2, %s648
        %p650 = pneg %p103
        %p651 = pneg %p100
        %s652 = sand.u32 %s44, 1
        %s653 = scalar_lea.sflag [#allocation9], %s652
        %s654 = sand.u32 %s116, 1
        %s655 = scalar_lea.vmem [#allocation8], %s654
        %p656 = pneg %p129
        %p657 = pneg %p126
        %s658 = sand.u32 %s44, 1
        %s659 = scalar_lea.sflag [#allocation9], %s658
        %s660 = sand.u32 %s142, 1
        %s661 = smul.addr %s660, 192
        %s662 = scalar_lea.vmem [#allocation10], %s661
        %p663 = pneg %p155
        %p664 = pneg %p152
        %s665 = sand.u32 %s44, 1
        %s666 = scalar_lea.sflag [#allocation12], %s665
        %s667 = sand.u32 %s168, 1
        %s668 = smul.addr %s667, 64
        %s669 = scalar_lea.vmem [#allocation11], %s668
        %p670 = pneg %p181
        %p671 = pneg %p178
        %p672 = scmp.lt.s32.totalorder %s49, 1
        %s673 = scalar_select %p672, %s49, 1
        %s674 = scalar_lea.vmem %s6, %s673
        %p675 = pneg %p207
        %p676 = pneg %p204
        %p677 = scmp.lt.s32.totalorder %s49, 1
        %s678 = scalar_select %p677, %s49, 1
        %s679 = scalar_lea.vmem %s7, %s678
        %p680 = pneg %p233
        %p681 = pneg %p230
        %s682 = sand.u32 %s44, 1
        %s683 = scalar_lea.sflag [#allocation12], %s682
        %s684 = sand.u32 %s246, 1
        %s685 = smul.addr %s684, 128
        %s686 = scalar_lea.vmem [#allocation13], %s685
        %p687 = pneg %p259
        %p688 = pneg %p256
        %p689 = scmp.lt.s32.totalorder %s49, 1
        %s690 = scalar_select %p689, %s49, 1
        %s691 = smul.addr %s690, 2
        %s692 = scalar_lea.vmem %s9, %s691
        %p693 = pneg %p285
        %p694 = pneg %p282
        %s695 = sand.u32 %s298, 1
        %s696 = scalar_lea.sflag [#allocation15], %s695
        %s697 = sand.u32 %s298, 1
        %s698 = smul.addr %s697, 128
        %s699 = scalar_lea.vmem [#allocation14], %s698
        %p700 = pneg %p311
        %p701 = pneg %p308
        %p702 = scmp.lt.s32.totalorder %s49, 1
        %s703 = scalar_select %p702, %s49, 1
        %s704 = scalar_lea.vmem %s11, %s703
        %p705 = pneg %p337
        %p706 = pneg %p334
        %p707 = pneg %p358
        %p708 = pneg %p355
        %p709 = pneg %p379
        %p710 = pneg %p376
        %p711 = pneg %p405
        %p712 = pneg %p402
        %s713 = sand.u32 %s392, 1
        %s714 = scalar_lea.sflag [#allocation7], %s713
        %s715 = sand.u32 %s392, 1
        %s716 = smul.addr %s715, 8
        %s717 = scalar_lea.vmem [#allocation16], %s716
        %p718 = scmp.lt.s32.totalorder %s49, 1
        %s719 = scalar_select %p718, %s49, 1
        %s720 = scalar_lea.vmem %s2, %s719
        %p721 = scmp.lt.s32.totalorder %s49, 1
        %s722 = scalar_select %p721, %s49, 1
        %s723 = scalar_lea.vmem %s6, %s722
        %p724 = scmp.lt.s32.totalorder %s49, 1
        %s725 = scalar_select %p724, %s49, 1
        %s726 = scalar_lea.vmem %s7, %s725
        %p727 = scmp.lt.s32.totalorder %s49, 1
        %s728 = scalar_select %p727, %s49, 1
        %s729 = smul.addr %s728, 2
        %s730 = scalar_lea.vmem %s9, %s729
        %p731 = scmp.lt.s32.totalorder %s49, 1
        %s732 = scalar_select %p731, %s49, 1
        %s733 = scalar_lea.vmem %s11, %s732
        %p735 = scmp.eq.s32.totalorder %s49, 0
        // Predicated region
        $region97: #{tpu_custom_call.1} parent=71 // pred_check
          %p736 = pneg %p735
        $region98: #{tpu_custom_call.1} parent=71 // pred_check_branch
          %738 = sbr.rel (%p736) target = $region100
        $region99: #{tpu_custom_call.1} parent=71 // pred_region
          %v739 = vld [vmem:[%s591] sm:$0xff]
          %740 = vst [vmem:[#allocation2] sm:$0xff] %v739
        $region100: #{tpu_custom_call.1} parent=71 // pred_fallthru
          _
        %v741 = vld [vmem:[#allocation2] sm:$0xff]
        %s742 = sld [smem:[#allocation4 + %s48]]
        %v743 = vlaneseq
        %v744 = vand.u32 %v743, 127
        %v745 = vlaneseq
        %v746 = vshrl.u32 %v745, 7
        %v747 = vstv %s742
        %vm748 = vcmp.lt.s32.totalorder %v744, %v747
        %v749 = vsel %vm748, 0.0, -1e+30
        %vm750 = vcmp.lt.s32.totalorder %v746, %v747
        %v751 = vsel %vm750, 1, 0
        %v752 = vcvt.s32.f32 %v751
        %v753 = vld [vmem:[%s720] sm:$0x1]
        %v754 = vld [vmem:[%s599] sm:$0x1]
        %755 = vadd.xlane.f32.xlu0 %v741
        %v756 = vpop.xlane.xlu0 %755
        %v757 = vmul.f32 %v741, %v741
        %758 = vadd.xlane.f32.xlu0 %v757
        %v759 = vpop.xlane.xlu0 %758
        %v760 = vmul.f32 %v756, 0.0078125
        %v761 = vmul.f32 %v756, %v760
        %v762 = vsub.f32 %v759, %v761
        %v763 = vmul.f32 %v762, 0.007874016
        %v764 = vmax.f32 %v763, 0.0
        %v765 = vrsqrt.pop %v764
        %v766 = vmul.f32 %v764, %v765
        %vm767 = vcmp.eq.f32.partialorder %v764, inf
        %v768 = vsel %vm767, %v764, %v766
        %vm769 = vcmp.eq.f32.partialorder %v764, 0.0
        %v770 = vand.u32 %v764, 2147483648
        %v771 = vsel %vm769, %v770, %v768
        %v772 = vadd.f32 %v771, 0.001
        %v773 = vrcp.pop %v772
        %v774 = vsub.f32 %v741, %v760
        %v775 = vmul.f32 %v774, %v773
        %v777 = vlaneseq
        %v778 = vshrl.u32 %v777, 7
        %v779 = vsub.s32 0, %v778
        %v780 = vrot.slane %v753, %v779
        %v782 = vmul.f32 %v780, %v775
        %v784 = vlaneseq
        %v785 = vshrl.u32 %v784, 7
        %v786 = vsub.s32 0, %v785
        %v787 = vrot.slane %v754, %v786
        %v789 = vadd.f32 %v782, %v787
        %v790 = vpack.c.bf16 %v789, %v789
        %v791 = vld [vmem:[%s608] sm:$0xff]
        %v792 = vld [vmem:[%s608 + $0x8] sm:$0xf]
        %v793 = vld [vmem:[%s608 + $0xc] sm:$0xff]
        %v794 = vld [vmem:[%s608 + $0x14] sm:$0xf]
        %v795 = vld [vmem:[%s608 + $0x18] sm:$0xff]
        %v796 = vld [vmem:[%s608 + $0x20] sm:$0xf]
        %v797 = vld [vmem:[%s608 + $0x24] sm:$0xff]
        %v798 = vld [vmem:[%s608 + $0x2c] sm:$0xf]
        %v799 = vld [vmem:[%s608 + $0x30] sm:$0xff]
        %v800 = vld [vmem:[%s608 + $0x38] sm:$0xf]
        %v801 = vld [vmem:[%s608 + $0x3c] sm:$0xff]
        %v802 = vld [vmem:[%s608 + $0x44] sm:$0xf]
        %v803 = vld [vmem:[%s608 + $0x48] sm:$0xff]
        %v804 = vld [vmem:[%s608 + $0x50] sm:$0xf]
        %v805 = vld [vmem:[%s608 + $0x54] sm:$0xff]
        %v806 = vld [vmem:[%s608 + $0x5c] sm:$0xf]
        %v807 = vld [vmem:[%s608 + $0x60] sm:$0xff]
        %v808 = vld [vmem:[%s608 + $0x68] sm:$0xf]
        %v809 = vld [vmem:[%s608 + $0x6c] sm:$0xff]
        %v810 = vld [vmem:[%s608 + $0x74] sm:$0xf]
        %v811 = vld [vmem:[%s608 + $0x78] sm:$0xff]
        %v812 = vld [vmem:[%s608 + $0x80] sm:$0xf]
        %v813 = vld [vmem:[%s608 + $0x84] sm:$0xff]
        %v814 = vld [vmem:[%s608 + $0x8c] sm:$0xf]
        %v815 = vld [vmem:[%s608 + $0x90] sm:$0xff]
        %v816 = vld [vmem:[%s608 + $0x98] sm:$0xf]
        %v817 = vld [vmem:[%s608 + $0x9c] sm:$0xff]
        %v818 = vld [vmem:[%s608 + $0xa4] sm:$0xf]
        %v819 = vld [vmem:[%s608 + $0xa8] sm:$0xff]
        %v820 = vld [vmem:[%s608 + $0xb0] sm:$0xf]
        %v821 = vld [vmem:[%s608 + $0xb4] sm:$0xff]
        %v822 = vld [vmem:[%s608 + $0xbc] sm:$0xf]
        %v855 = vunpack.c.l.b16 %v791
        %v856 = vunpack.c.h.b16 %v791
        %v857 = vunpack.c.l.b16 %v792
        %v858 = vunpack.c.l.b16 %v793
        %v859 = vunpack.c.h.b16 %v793
        %v860 = vunpack.c.l.b16 %v794
        %v861 = vunpack.c.l.b16 %v795
        %v862 = vunpack.c.h.b16 %v795
        %v863 = vunpack.c.l.b16 %v796
        %v864 = vunpack.c.l.b16 %v797
        %v865 = vunpack.c.h.b16 %v797
        %v866 = vunpack.c.l.b16 %v798
        %v867 = vunpack.c.l.b16 %v799
        %v868 = vunpack.c.h.b16 %v799
        %v869 = vunpack.c.l.b16 %v800
        %v870 = vunpack.c.l.b16 %v801
        %v871 = vunpack.c.h.b16 %v801
        %v872 = vunpack.c.l.b16 %v802
        %v873 = vunpack.c.l.b16 %v803
        %v874 = vunpack.c.h.b16 %v803
        %v875 = vunpack.c.l.b16 %v804
        %v876 = vunpack.c.l.b16 %v805
        %v877 = vunpack.c.h.b16 %v805
        %v878 = vunpack.c.l.b16 %v806
        %v879 = vunpack.c.l.b16 %v807
        %v880 = vunpack.c.h.b16 %v807
        %v881 = vunpack.c.l.b16 %v808
        %v882 = vunpack.c.l.b16 %v809
        %v883 = vunpack.c.h.b16 %v809
        %v884 = vunpack.c.l.b16 %v810
        %v885 = vunpack.c.l.b16 %v811
        %v886 = vunpack.c.h.b16 %v811
        %v887 = vunpack.c.l.b16 %v812
        %v888 = vunpack.c.l.b16 %v813
        %v889 = vunpack.c.h.b16 %v813
        %v890 = vunpack.c.l.b16 %v814
        %v891 = vunpack.c.l.b16 %v815
        %v892 = vunpack.c.h.b16 %v815
        %v893 = vunpack.c.l.b16 %v816
        %v894 = vunpack.c.l.b16 %v817
        %v895 = vunpack.c.h.b16 %v817
        %v896 = vunpack.c.l.b16 %v818
        %v897 = vunpack.c.l.b16 %v819
        %v898 = vunpack.c.h.b16 %v819
        %v899 = vunpack.c.l.b16 %v820
        %v900 = vunpack.c.l.b16 %v821
        %v901 = vunpack.c.h.b16 %v821
        %v902 = vunpack.c.l.b16 %v822
        %v903 = vpack.c.b16 %v858, %v855
        %v904 = vpack.c.b16 %v859, %v856
        %v905 = vpack.c.b16 %v860, %v857
        %v906 = vpack.c.b16 %v864, %v861
        %v907 = vpack.c.b16 %v865, %v862
        %v908 = vpack.c.b16 %v866, %v863
        %v909 = vpack.c.b16 %v870, %v867
        %v910 = vpack.c.b16 %v871, %v868
        %v911 = vpack.c.b16 %v872, %v869
        %v912 = vpack.c.b16 %v876, %v873
        %v913 = vpack.c.b16 %v877, %v874
        %v914 = vpack.c.b16 %v878, %v875
        %v915 = vpack.c.b16 %v882, %v879
        %v916 = vpack.c.b16 %v883, %v880
        %v917 = vpack.c.b16 %v884, %v881
        %v918 = vpack.c.b16 %v888, %v885
        %v919 = vpack.c.b16 %v889, %v886
        %v920 = vpack.c.b16 %v890, %v887
        %v921 = vpack.c.b16 %v894, %v891
        %v922 = vpack.c.b16 %v895, %v892
        %v923 = vpack.c.b16 %v896, %v893
        %v924 = vpack.c.b16 %v900, %v897
        %v925 = vpack.c.b16 %v901, %v898
        %v926 = vpack.c.b16 %v902, %v899
        %951 = vmatprep.subr.bf16.mxu0 %v925
        %952 = vmatpush1.bf16.msra.mxu0 %v924
        %953 = vmatprep.subr.bf16.mxu0 %v922
        %954 = vmatpush1.bf16.msra.mxu0 %v921
        %955 = vmatprep.subr.bf16.mxu0 %v919
        %956 = vmatpush1.bf16.msra.mxu0 %v918
        %957 = vmatprep.subr.bf16.mxu0 %v916
        %958 = vmatpush1.bf16.msra.mxu0 %v915
        %959 = vmatprep.subr.bf16.mxu0 %v913
        %960 = vmatpush1.bf16.msra.mxu0 %v912
        %961 = vmatprep.subr.bf16.mxu0 %v910
        %962 = vmatpush1.bf16.msra.mxu0 %v909
        %963 = vmatprep.subr.bf16.mxu0 %v907
        %964 = vmatpush1.bf16.msra.mxu0 %v906
        %965 = vmatprep.subr.bf16.mxu0 %v904
        %966 = vmatpush1.bf16.msra.mxu0 %v903
        %967 = vmatprep.subr.bf16.mxu0 0
        %968 = vmatpush2.bf16.msra.mxu0 0
        %969 = vmatprep.subr.bf16.mxu0 0
        %970 = vmatpush2.bf16.msra.mxu0 0
        %971 = vmatprep.subr.bf16.mxu0 0
        %972 = vmatpush2.bf16.msra.mxu0 0
        %973 = vmatprep.subr.bf16.mxu0 0
        %974 = vmatpush2.bf16.msra.mxu0 0
        %975 = vmatprep.subr.bf16.mxu0 0
        %976 = vmatpush2.bf16.msra.mxu0 0
        %977 = vmatprep.subr.bf16.mxu0 0
        %978 = vmatpush2.bf16.msra.mxu0 0
        %979 = vmatprep.subr.bf16.mxu0 0
        %980 = vmatpush2.bf16.msra.mxu0 0
        %981 = vmatprep.subr.bf16.mxu0 0
        %982 = vmatpush2.bf16.msra.mxu0 0
        %983 = vmatprep.mubr.bf16.mxu0 0
        %984 = vmatmul.mubr.bf16.gmra.mxu0 %v790
        %v985 = vpop.f32.mrf.mxu0
        %v986 = vadd.f32 0.0, %v985
        %v987 = vpop.f32.mrf.mxu0
        %v988 = vadd.f32 0.0, %v987
        %v989 = vpop.f32.mrf.mxu0
        %v990 = vpop.f32.mrf.mxu0
        %991 = vdwg.mxu0
        %992 = vmatprep.subr.bf16.mxu0 0
        %993 = vmatpush1.bf16.msra.mxu0 %v926
        %994 = vmatprep.subr.bf16.mxu0 0
        %995 = vmatpush1.bf16.msra.mxu0 %v923
        %996 = vmatprep.subr.bf16.mxu0 0
        %997 = vmatpush1.bf16.msra.mxu0 %v920
        %998 = vmatprep.subr.bf16.mxu0 0
        %999 = vmatpush1.bf16.msra.mxu0 %v917
        %1000 = vmatprep.subr.bf16.mxu0 0
        %1001 = vmatpush1.bf16.msra.mxu0 %v914
        %1002 = vmatprep.subr.bf16.mxu0 0
        %1003 = vmatpush1.bf16.msra.mxu0 %v911
        %1004 = vmatprep.subr.bf16.mxu0 0
        %1005 = vmatpush1.bf16.msra.mxu0 %v908
        %1006 = vmatprep.subr.bf16.mxu0 0
        %1007 = vmatpush1.bf16.msra.mxu0 %v905
        %1008 = vmatprep.subr.bf16.mxu0 0
        %1009 = vmatpush2.bf16.msra.mxu0 0
        %1010 = vmatprep.subr.bf16.mxu0 0
        %1011 = vmatpush2.bf16.msra.mxu0 0
        %1012 = vmatprep.subr.bf16.mxu0 0
        %1013 = vmatpush2.bf16.msra.mxu0 0
        %1014 = vmatprep.subr.bf16.mxu0 0
        %1015 = vmatpush2.bf16.msra.mxu0 0
        %1016 = vmatprep.subr.bf16.mxu0 0
        %1017 = vmatpush2.bf16.msra.mxu0 0
        %1018 = vmatprep.subr.bf16.mxu0 0
        %1019 = vmatpush2.bf16.msra.mxu0 0
        %1020 = vmatprep.subr.bf16.mxu0 0
        %1021 = vmatpush2.bf16.msra.mxu0 0
        %1022 = vmatprep.subr.bf16.mxu0 0
        %1023 = vmatpush2.bf16.msra.mxu0 0
        %1024 = vmatprep.mubr.bf16.mxu0 0
        %1025 = vmatmul.mubr.bf16.gmra.mxu0 %v790
        %v1026 = vpop.f32.mrf.mxu0
        %v1027 = vadd.f32 0.0, %v1026
        %v1028 = vpop.f32.mrf.mxu0
        %v1029 = vpop.f32.mrf.mxu0
        %v1030 = vpop.f32.mrf.mxu0
        %1031 = vdwg.mxu0
        %1033 = vrot.lane.b32.xlu0 %v986, 112
        %v1034 = vpop.permute.xlu0 %1033
        %1036 = vrot.lane.b32.xlu0 %v986, 96
        %v1037 = vpop.permute.xlu0 %1036
        %1039 = vrot.lane.b32.xlu0 %v986, 80
        %v1040 = vpop.permute.xlu0 %1039
        %1042 = vrot.lane.b32.xlu0 %v986, 64
        %v1043 = vpop.permute.xlu0 %1042
        %1045 = vrot.lane.b32.xlu0 %v986, 48
        %v1046 = vpop.permute.xlu0 %1045
        %1048 = vrot.lane.b32.xlu0 %v986, 32
        %v1049 = vpop.permute.xlu0 %1048
        %1051 = vrot.lane.b32.xlu0 %v986, 16
        %v1052 = vpop.permute.xlu0 %1051
        %v1054 = vcombine.low %v986, %v1037
        %v1055 = vcombine.high %v986, %v1037
        %v1057 = vunpack.c.l.s4 1983009808
        %v1058 = vunpack.c.0.s8 %v1057
        %v1059 = vlaneseq
        %v1060 = vshrl.u32 %v1059, 7
        %v1061 = vsub.s32 %v1058, %v1060
        %v1062 = vrot.slane %v1054, %v1061
        %v1064 = vunpack.c.l.s4 1983009808
        %v1065 = vunpack.c.0.s8 %v1064
        %v1066 = vlaneseq
        %v1067 = vshrl.u32 %v1066, 7
        %v1068 = vsub.s32 %v1065, %v1067
        %v1069 = vrot.slane %v1055, %v1068
        %v1070 = vcombine.low %v1034, %v1040
        %v1071 = vcombine.high %v1034, %v1040
        %v1073 = vunpack.c.l.s4 1983009808
        %v1074 = vunpack.c.0.s8 %v1073
        %v1075 = vlaneseq
        %v1076 = vshrl.u32 %v1075, 7
        %v1077 = vsub.s32 %v1074, %v1076
        %v1078 = vrot.slane %v1070, %v1077
        %v1080 = vunpack.c.l.s4 1983009808
        %v1081 = vunpack.c.0.s8 %v1080
        %v1082 = vlaneseq
        %v1083 = vshrl.u32 %v1082, 7
        %v1084 = vsub.s32 %v1081, %v1083
        %v1085 = vrot.slane %v1071, %v1084
        %v1086 = vcombine.low %v1043, %v1049
        %v1087 = vcombine.high %v1043, %v1049
        %v1089 = vunpack.c.l.s4 1983009808
        %v1090 = vunpack.c.0.s8 %v1089
        %v1091 = vlaneseq
        %v1092 = vshrl.u32 %v1091, 7
        %v1093 = vsub.s32 %v1090, %v1092
        %v1094 = vrot.slane %v1086, %v1093
        %v1096 = vunpack.c.l.s4 1983009808
        %v1097 = vunpack.c.0.s8 %v1096
        %v1098 = vlaneseq
        %v1099 = vshrl.u32 %v1098, 7
        %v1100 = vsub.s32 %v1097, %v1099
        %v1101 = vrot.slane %v1087, %v1100
        %v1102 = vcombine.low %v1046, %v1052
        %v1103 = vcombine.high %v1046, %v1052
        %v1105 = vunpack.c.l.s4 1983009808
        %v1106 = vunpack.c.0.s8 %v1105
        %v1107 = vlaneseq
        %v1108 = vshrl.u32 %v1107, 7
        %v1109 = vsub.s32 %v1106, %v1108
        %v1110 = vrot.slane %v1102, %v1109
        %v1112 = vunpack.c.l.s4 1983009808
        %v1113 = vunpack.c.0.s8 %v1112
        %v1114 = vlaneseq
        %v1115 = vshrl.u32 %v1114, 7
        %v1116 = vsub.s32 %v1113, %v1115
        %v1117 = vrot.slane %v1103, %v1116
        %v1118 = vcombine.low %v1062, %v1078
        %v1119 = vcombine.high %v1062, %v1078
        %v1121 = vunpack.c.l.s4 1934713408
        %v1122 = vunpack.c.0.s8 %v1121
        %v1123 = vlaneseq
        %v1124 = vshrl.u32 %v1123, 7
        %v1125 = vsub.s32 %v1122, %v1124
        %v1126 = vrot.slane %v1118, %v1125
        %v1128 = vunpack.c.l.s4 1934713408
        %v1129 = vunpack.c.0.s8 %v1128
        %v1130 = vlaneseq
        %v1131 = vshrl.u32 %v1130, 7
        %v1132 = vsub.s32 %v1129, %v1131
        %v1133 = vrot.slane %v1119, %v1132
        %v1134 = vcombine.low %v1069, %v1085
        %v1135 = vcombine.high %v1069, %v1085
        %v1137 = vunpack.c.l.s4 1934713408
        %v1138 = vunpack.c.0.s8 %v1137
        %v1139 = vlaneseq
        %v1140 = vshrl.u32 %v1139, 7
        %v1141 = vsub.s32 %v1138, %v1140
        %v1142 = vrot.slane %v1134, %v1141
        %v1144 = vunpack.c.l.s4 1934713408
        %v1145 = vunpack.c.0.s8 %v1144
        %v1146 = vlaneseq
        %v1147 = vshrl.u32 %v1146, 7
        %v1148 = vsub.s32 %v1145, %v1147
        %v1149 = vrot.slane %v1135, %v1148
        %v1150 = vcombine.low %v1094, %v1110
        %v1151 = vcombine.high %v1094, %v1110
        %v1153 = vunpack.c.l.s4 1934713408
        %v1154 = vunpack.c.0.s8 %v1153
        %v1155 = vlaneseq
        %v1156 = vshrl.u32 %v1155, 7
        %v1157 = vsub.s32 %v1154, %v1156
        %v1158 = vrot.slane %v1150, %v1157
        %v1160 = vunpack.c.l.s4 1934713408
        %v1161 = vunpack.c.0.s8 %v1160
        %v1162 = vlaneseq
        %v1163 = vshrl.u32 %v1162, 7
        %v1164 = vsub.s32 %v1161, %v1163
        %v1165 = vrot.slane %v1151, %v1164
        %v1166 = vcombine.low %v1101, %v1117
        %v1167 = vcombine.high %v1101, %v1117
        %v1169 = vunpack.c.l.s4 1934713408
        %v1170 = vunpack.c.0.s8 %v1169
        %v1171 = vlaneseq
        %v1172 = vshrl.u32 %v1171, 7
        %v1173 = vsub.s32 %v1170, %v1172
        %v1174 = vrot.slane %v1166, %v1173
        %v1176 = vunpack.c.l.s4 1934713408
        %v1177 = vunpack.c.0.s8 %v1176
        %v1178 = vlaneseq
        %v1179 = vshrl.u32 %v1178, 7
        %v1180 = vsub.s32 %v1177, %v1179
        %v1181 = vrot.slane %v1167, %v1180
        %v1182 = vcombine.low %v1126, %v1158
        %v1183 = vcombine.high %v1126, %v1158
        %v1184 = vcombine.low %v1133, %v1165
        %v1185 = vcombine.high %v1133, %v1165
        %v1186 = vcombine.low %v1142, %v1174
        %v1187 = vcombine.high %v1142, %v1174
        %v1188 = vcombine.low %v1149, %v1181
        %v1189 = vcombine.high %v1149, %v1181
        %v1190 = vcombine.low %v1182, %v1184
        %v1191 = vcombine.high %v1182, %v1184
        %v1193 = vunpack.c.l.s4 1983009808
        %v1194 = vunpack.c.0.s8 %v1193
        %v1195 = vlaneseq
        %v1196 = vshrl.u32 %v1195, 7
        %v1197 = vsub.s32 %v1194, %v1196
        %v1198 = vrot.slane %v1190, %v1197
        %v1200 = vunpack.c.l.s4 1983009808
        %v1201 = vunpack.c.0.s8 %v1200
        %v1202 = vlaneseq
        %v1203 = vshrl.u32 %v1202, 7
        %v1204 = vsub.s32 %v1201, %v1203
        %v1205 = vrot.slane %v1191, %v1204
        %v1206 = vcombine.low %v1183, %v1185
        %v1207 = vcombine.high %v1183, %v1185
        %v1209 = vunpack.c.l.s4 1983009808
        %v1210 = vunpack.c.0.s8 %v1209
        %v1211 = vlaneseq
        %v1212 = vshrl.u32 %v1211, 7
        %v1213 = vsub.s32 %v1210, %v1212
        %v1214 = vrot.slane %v1206, %v1213
        %v1216 = vunpack.c.l.s4 1983009808
        %v1217 = vunpack.c.0.s8 %v1216
        %v1218 = vlaneseq
        %v1219 = vshrl.u32 %v1218, 7
        %v1220 = vsub.s32 %v1217, %v1219
        %v1221 = vrot.slane %v1207, %v1220
        %v1222 = vcombine.low %v1186, %v1188
        %v1223 = vcombine.high %v1186, %v1188
        %v1225 = vunpack.c.l.s4 1983009808
        %v1226 = vunpack.c.0.s8 %v1225
        %v1227 = vlaneseq
        %v1228 = vshrl.u32 %v1227, 7
        %v1229 = vsub.s32 %v1226, %v1228
        %v1230 = vrot.slane %v1222, %v1229
        %v1232 = vunpack.c.l.s4 1983009808
        %v1233 = vunpack.c.0.s8 %v1232
        %v1234 = vlaneseq
        %v1235 = vshrl.u32 %v1234, 7
        %v1236 = vsub.s32 %v1233, %v1235
        %v1237 = vrot.slane %v1223, %v1236
        %v1238 = vcombine.low %v1187, %v1189
        %v1239 = vcombine.high %v1187, %v1189
        %v1241 = vunpack.c.l.s4 1983009808
        %v1242 = vunpack.c.0.s8 %v1241
        %v1243 = vlaneseq
        %v1244 = vshrl.u32 %v1243, 7
        %v1245 = vsub.s32 %v1242, %v1244
        %v1246 = vrot.slane %v1238, %v1245
        %v1248 = vunpack.c.l.s4 1983009808
        %v1249 = vunpack.c.0.s8 %v1248
        %v1250 = vlaneseq
        %v1251 = vshrl.u32 %v1250, 7
        %v1252 = vsub.s32 %v1249, %v1251
        %v1253 = vrot.slane %v1239, %v1252
        %v1254 = vcombine.low %v1198, %v1214
        %v1255 = vcombine.high %v1198, %v1214
        %v1257 = vunpack.c.l.s4 1934713408
        %v1258 = vunpack.c.0.s8 %v1257
        %v1259 = vlaneseq
        %v1260 = vshrl.u32 %v1259, 7
        %v1261 = vsub.s32 %v1258, %v1260
        %v1262 = vrot.slane %v1254, %v1261
        %v1264 = vunpack.c.l.s4 1934713408
        %v1265 = vunpack.c.0.s8 %v1264
        %v1266 = vlaneseq
        %v1267 = vshrl.u32 %v1266, 7
        %v1268 = vsub.s32 %v1265, %v1267
        %v1269 = vrot.slane %v1255, %v1268
        %v1270 = vcombine.low %v1205, %v1221
        %v1271 = vcombine.high %v1205, %v1221
        %v1273 = vunpack.c.l.s4 1934713408
        %v1274 = vunpack.c.0.s8 %v1273
        %v1275 = vlaneseq
        %v1276 = vshrl.u32 %v1275, 7
        %v1277 = vsub.s32 %v1274, %v1276
        %v1278 = vrot.slane %v1270, %v1277
        %v1280 = vunpack.c.l.s4 1934713408
        %v1281 = vunpack.c.0.s8 %v1280
        %v1282 = vlaneseq
        %v1283 = vshrl.u32 %v1282, 7
        %v1284 = vsub.s32 %v1281, %v1283
        %v1285 = vrot.slane %v1271, %v1284
        %v1286 = vcombine.low %v1230, %v1246
        %v1287 = vcombine.high %v1230, %v1246
        %v1289 = vunpack.c.l.s4 1934713408
        %v1290 = vunpack.c.0.s8 %v1289
        %v1291 = vlaneseq
        %v1292 = vshrl.u32 %v1291, 7
        %v1293 = vsub.s32 %v1290, %v1292
        %v1294 = vrot.slane %v1286, %v1293
        %v1296 = vunpack.c.l.s4 1934713408
        %v1297 = vunpack.c.0.s8 %v1296
        %v1298 = vlaneseq
        %v1299 = vshrl.u32 %v1298, 7
        %v1300 = vsub.s32 %v1297, %v1299
        %v1301 = vrot.slane %v1287, %v1300
        %v1302 = vcombine.low %v1237, %v1253
        %v1303 = vcombine.high %v1237, %v1253
        %v1305 = vunpack.c.l.s4 1934713408
        %v1306 = vunpack.c.0.s8 %v1305
        %v1307 = vlaneseq
        %v1308 = vshrl.u32 %v1307, 7
        %v1309 = vsub.s32 %v1306, %v1308
        %v1310 = vrot.slane %v1302, %v1309
        %v1312 = vunpack.c.l.s4 1934713408
        %v1313 = vunpack.c.0.s8 %v1312
        %v1314 = vlaneseq
        %v1315 = vshrl.u32 %v1314, 7
        %v1316 = vsub.s32 %v1313, %v1315
        %v1317 = vrot.slane %v1303, %v1316
        %v1318 = vcombine.low %v1262, %v1294
        %v1319 = vcombine.high %v1262, %v1294
        %v1320 = vcombine.low %v1269, %v1301
        %v1321 = vcombine.high %v1269, %v1301
        %v1322 = vcombine.low %v1278, %v1310
        %v1323 = vcombine.high %v1278, %v1310
        %v1324 = vcombine.low %v1285, %v1317
        %v1325 = vcombine.high %v1285, %v1317
        %1327 = vrot.lane.b32.xlu0 %v988, 112
        %v1328 = vpop.permute.xlu0 %1327
        %1330 = vrot.lane.b32.xlu0 %v988, 96
        %v1331 = vpop.permute.xlu0 %1330
        %1333 = vrot.lane.b32.xlu0 %v988, 80
        %v1334 = vpop.permute.xlu0 %1333
        %1336 = vrot.lane.b32.xlu0 %v988, 64
        %v1337 = vpop.permute.xlu0 %1336
        %1339 = vrot.lane.b32.xlu0 %v988, 48
        %v1340 = vpop.permute.xlu0 %1339
        %1342 = vrot.lane.b32.xlu0 %v988, 32
        %v1343 = vpop.permute.xlu0 %1342
        %1345 = vrot.lane.b32.xlu0 %v988, 16
        %v1346 = vpop.permute.xlu0 %1345
        %v1348 = vcombine.low %v988, %v1331
        %v1349 = vcombine.high %v988, %v1331
        %v1351 = vunpack.c.l.s4 1983009808
        %v1352 = vunpack.c.0.s8 %v1351
        %v1353 = vlaneseq
        %v1354 = vshrl.u32 %v1353, 7
        %v1355 = vsub.s32 %v1352, %v1354
        %v1356 = vrot.slane %v1348, %v1355
        %v1358 = vunpack.c.l.s4 1983009808
        %v1359 = vunpack.c.0.s8 %v1358
        %v1360 = vlaneseq
        %v1361 = vshrl.u32 %v1360, 7
        %v1362 = vsub.s32 %v1359, %v1361
        %v1363 = vrot.slane %v1349, %v1362
        %v1364 = vcombine.low %v1328, %v1334
        %v1365 = vcombine.high %v1328, %v1334
        %v1367 = vunpack.c.l.s4 1983009808
        %v1368 = vunpack.c.0.s8 %v1367
        %v1369 = vlaneseq
        %v1370 = vshrl.u32 %v1369, 7
        %v1371 = vsub.s32 %v1368, %v1370
        %v1372 = vrot.slane %v1364, %v1371
        %v1374 = vunpack.c.l.s4 1983009808
        %v1375 = vunpack.c.0.s8 %v1374
        %v1376 = vlaneseq
        %v1377 = vshrl.u32 %v1376, 7
        %v1378 = vsub.s32 %v1375, %v1377
        %v1379 = vrot.slane %v1365, %v1378
        %v1380 = vcombine.low %v1337, %v1343
        %v1381 = vcombine.high %v1337, %v1343
        %v1383 = vunpack.c.l.s4 1983009808
        %v1384 = vunpack.c.0.s8 %v1383
        %v1385 = vlaneseq
        %v1386 = vshrl.u32 %v1385, 7
        %v1387 = vsub.s32 %v1384, %v1386
        %v1388 = vrot.slane %v1380, %v1387
        %v1390 = vunpack.c.l.s4 1983009808
        %v1391 = vunpack.c.0.s8 %v1390
        %v1392 = vlaneseq
        %v1393 = vshrl.u32 %v1392, 7
        %v1394 = vsub.s32 %v1391, %v1393
        %v1395 = vrot.slane %v1381, %v1394
        %v1396 = vcombine.low %v1340, %v1346
        %v1397 = vcombine.high %v1340, %v1346
        %v1399 = vunpack.c.l.s4 1983009808
        %v1400 = vunpack.c.0.s8 %v1399
        %v1401 = vlaneseq
        %v1402 = vshrl.u32 %v1401, 7
        %v1403 = vsub.s32 %v1400, %v1402
        %v1404 = vrot.slane %v1396, %v1403
        %v1406 = vunpack.c.l.s4 1983009808
        %v1407 = vunpack.c.0.s8 %v1406
        %v1408 = vlaneseq
        %v1409 = vshrl.u32 %v1408, 7
        %v1410 = vsub.s32 %v1407, %v1409
        %v1411 = vrot.slane %v1397, %v1410
        %v1412 = vcombine.low %v1356, %v1372
        %v1413 = vcombine.high %v1356, %v1372
        %v1415 = vunpack.c.l.s4 1934713408
        %v1416 = vunpack.c.0.s8 %v1415
        %v1417 = vlaneseq
        %v1418 = vshrl.u32 %v1417, 7
        %v1419 = vsub.s32 %v1416, %v1418
        %v1420 = vrot.slane %v1412, %v1419
        %v1422 = vunpack.c.l.s4 1934713408
        %v1423 = vunpack.c.0.s8 %v1422
        %v1424 = vlaneseq
        %v1425 = vshrl.u32 %v1424, 7
        %v1426 = vsub.s32 %v1423, %v1425
        %v1427 = vrot.slane %v1413, %v1426
        %v1428 = vcombine.low %v1363, %v1379
        %v1429 = vcombine.high %v1363, %v1379
        %v1431 = vunpack.c.l.s4 1934713408
        %v1432 = vunpack.c.0.s8 %v1431
        %v1433 = vlaneseq
        %v1434 = vshrl.u32 %v1433, 7
        %v1435 = vsub.s32 %v1432, %v1434
        %v1436 = vrot.slane %v1428, %v1435
        %v1438 = vunpack.c.l.s4 1934713408
        %v1439 = vunpack.c.0.s8 %v1438
        %v1440 = vlaneseq
        %v1441 = vshrl.u32 %v1440, 7
        %v1442 = vsub.s32 %v1439, %v1441
        %v1443 = vrot.slane %v1429, %v1442
        %v1444 = vcombine.low %v1388, %v1404
        %v1445 = vcombine.high %v1388, %v1404
        %v1447 = vunpack.c.l.s4 1934713408
        %v1448 = vunpack.c.0.s8 %v1447
        %v1449 = vlaneseq
        %v1450 = vshrl.u32 %v1449, 7
        %v1451 = vsub.s32 %v1448, %v1450
        %v1452 = vrot.slane %v1444, %v1451
        %v1454 = vunpack.c.l.s4 1934713408
        %v1455 = vunpack.c.0.s8 %v1454
        %v1456 = vlaneseq
        %v1457 = vshrl.u32 %v1456, 7
        %v1458 = vsub.s32 %v1455, %v1457
        %v1459 = vrot.slane %v1445, %v1458
        %v1460 = vcombine.low %v1395, %v1411
        %v1461 = vcombine.high %v1395, %v1411
        %v1463 = vunpack.c.l.s4 1934713408
        %v1464 = vunpack.c.0.s8 %v1463
        %v1465 = vlaneseq
        %v1466 = vshrl.u32 %v1465, 7
        %v1467 = vsub.s32 %v1464, %v1466
        %v1468 = vrot.slane %v1460, %v1467
        %v1470 = vunpack.c.l.s4 1934713408
        %v1471 = vunpack.c.0.s8 %v1470
        %v1472 = vlaneseq
        %v1473 = vshrl.u32 %v1472, 7
        %v1474 = vsub.s32 %v1471, %v1473
        %v1475 = vrot.slane %v1461, %v1474
        %v1476 = vcombine.low %v1420, %v1452
        %v1477 = vcombine.high %v1420, %v1452
        %v1478 = vcombine.low %v1427, %v1459
        %v1479 = vcombine.high %v1427, %v1459
        %v1480 = vcombine.low %v1436, %v1468
        %v1481 = vcombine.high %v1436, %v1468
        %v1482 = vcombine.low %v1443, %v1475
        %v1483 = vcombine.high %v1443, %v1475
        %v1484 = vcombine.low %v1476, %v1478
        %v1485 = vcombine.high %v1476, %v1478
        %v1487 = vunpack.c.l.s4 1983009808
        %v1488 = vunpack.c.0.s8 %v1487
        %v1489 = vlaneseq
        %v1490 = vshrl.u32 %v1489, 7
        %v1491 = vsub.s32 %v1488, %v1490
        %v1492 = vrot.slane %v1484, %v1491
        %v1494 = vunpack.c.l.s4 1983009808
        %v1495 = vunpack.c.0.s8 %v1494
        %v1496 = vlaneseq
        %v1497 = vshrl.u32 %v1496, 7
        %v1498 = vsub.s32 %v1495, %v1497
        %v1499 = vrot.slane %v1485, %v1498
        %v1500 = vcombine.low %v1477, %v1479
        %v1501 = vcombine.high %v1477, %v1479
        %v1503 = vunpack.c.l.s4 1983009808
        %v1504 = vunpack.c.0.s8 %v1503
        %v1505 = vlaneseq
        %v1506 = vshrl.u32 %v1505, 7
        %v1507 = vsub.s32 %v1504, %v1506
        %v1508 = vrot.slane %v1500, %v1507
        %v1510 = vunpack.c.l.s4 1983009808
        %v1511 = vunpack.c.0.s8 %v1510
        %v1512 = vlaneseq
        %v1513 = vshrl.u32 %v1512, 7
        %v1514 = vsub.s32 %v1511, %v1513
        %v1515 = vrot.slane %v1501, %v1514
        %v1516 = vcombine.low %v1480, %v1482
        %v1517 = vcombine.high %v1480, %v1482
        %v1519 = vunpack.c.l.s4 1983009808
        %v1520 = vunpack.c.0.s8 %v1519
        %v1521 = vlaneseq
        %v1522 = vshrl.u32 %v1521, 7
        %v1523 = vsub.s32 %v1520, %v1522
        %v1524 = vrot.slane %v1516, %v1523
        %v1526 = vunpack.c.l.s4 1983009808
        %v1527 = vunpack.c.0.s8 %v1526
        %v1528 = vlaneseq
        %v1529 = vshrl.u32 %v1528, 7
        %v1530 = vsub.s32 %v1527, %v1529
        %v1531 = vrot.slane %v1517, %v1530
        %v1532 = vcombine.low %v1481, %v1483
        %v1533 = vcombine.high %v1481, %v1483
        %v1535 = vunpack.c.l.s4 1983009808
        %v1536 = vunpack.c.0.s8 %v1535
        %v1537 = vlaneseq
        %v1538 = vshrl.u32 %v1537, 7
        %v1539 = vsub.s32 %v1536, %v1538
        %v1540 = vrot.slane %v1532, %v1539
        %v1542 = vunpack.c.l.s4 1983009808
        %v1543 = vunpack.c.0.s8 %v1542
        %v1544 = vlaneseq
        %v1545 = vshrl.u32 %v1544, 7
        %v1546 = vsub.s32 %v1543, %v1545
        %v1547 = vrot.slane %v1533, %v1546
        %v1548 = vcombine.low %v1492, %v1508
        %v1549 = vcombine.high %v1492, %v1508
        %v1551 = vunpack.c.l.s4 1934713408
        %v1552 = vunpack.c.0.s8 %v1551
        %v1553 = vlaneseq
        %v1554 = vshrl.u32 %v1553, 7
        %v1555 = vsub.s32 %v1552, %v1554
        %v1556 = vrot.slane %v1548, %v1555
        %v1558 = vunpack.c.l.s4 1934713408
        %v1559 = vunpack.c.0.s8 %v1558
        %v1560 = vlaneseq
        %v1561 = vshrl.u32 %v1560, 7
        %v1562 = vsub.s32 %v1559, %v1561
        %v1563 = vrot.slane %v1549, %v1562
        %v1564 = vcombine.low %v1499, %v1515
        %v1565 = vcombine.high %v1499, %v1515
        %v1567 = vunpack.c.l.s4 1934713408
        %v1568 = vunpack.c.0.s8 %v1567
        %v1569 = vlaneseq
        %v1570 = vshrl.u32 %v1569, 7
        %v1571 = vsub.s32 %v1568, %v1570
        %v1572 = vrot.slane %v1564, %v1571
        %v1574 = vunpack.c.l.s4 1934713408
        %v1575 = vunpack.c.0.s8 %v1574
        %v1576 = vlaneseq
        %v1577 = vshrl.u32 %v1576, 7
        %v1578 = vsub.s32 %v1575, %v1577
        %v1579 = vrot.slane %v1565, %v1578
        %v1580 = vcombine.low %v1524, %v1540
        %v1581 = vcombine.high %v1524, %v1540
        %v1583 = vunpack.c.l.s4 1934713408
        %v1584 = vunpack.c.0.s8 %v1583
        %v1585 = vlaneseq
        %v1586 = vshrl.u32 %v1585, 7
        %v1587 = vsub.s32 %v1584, %v1586
        %v1588 = vrot.slane %v1580, %v1587
        %v1590 = vunpack.c.l.s4 1934713408
        %v1591 = vunpack.c.0.s8 %v1590
        %v1592 = vlaneseq
        %v1593 = vshrl.u32 %v1592, 7
        %v1594 = vsub.s32 %v1591, %v1593
        %v1595 = vrot.slane %v1581, %v1594
        %v1596 = vcombine.low %v1531, %v1547
        %v1597 = vcombine.high %v1531, %v1547
        %v1599 = vunpack.c.l.s4 1934713408
        %v1600 = vunpack.c.0.s8 %v1599
        %v1601 = vlaneseq
        %v1602 = vshrl.u32 %v1601, 7
        %v1603 = vsub.s32 %v1600, %v1602
        %v1604 = vrot.slane %v1596, %v1603
        %v1606 = vunpack.c.l.s4 1934713408
        %v1607 = vunpack.c.0.s8 %v1606
        %v1608 = vlaneseq
        %v1609 = vshrl.u32 %v1608, 7
        %v1610 = vsub.s32 %v1607, %v1609
        %v1611 = vrot.slane %v1597, %v1610
        %v1612 = vcombine.low %v1556, %v1588
        %v1613 = vcombine.high %v1556, %v1588
        %v1614 = vcombine.low %v1563, %v1595
        %v1615 = vcombine.high %v1563, %v1595
        %v1616 = vcombine.low %v1572, %v1604
        %v1617 = vcombine.high %v1572, %v1604
        %v1618 = vcombine.low %v1579, %v1611
        %v1619 = vcombine.high %v1579, %v1611
        %1621 = vrot.lane.b32.xlu0 %v1027, 112
        %v1622 = vpop.permute.xlu0 %1621
        %1624 = vrot.lane.b32.xlu0 %v1027, 96
        %v1625 = vpop.permute.xlu0 %1624
        %1627 = vrot.lane.b32.xlu0 %v1027, 80
        %v1628 = vpop.permute.xlu0 %1627
        %1630 = vrot.lane.b32.xlu0 %v1027, 64
        %v1631 = vpop.permute.xlu0 %1630
        %1633 = vrot.lane.b32.xlu0 %v1027, 48
        %v1634 = vpop.permute.xlu0 %1633
        %1636 = vrot.lane.b32.xlu0 %v1027, 32
        %v1637 = vpop.permute.xlu0 %1636
        %1639 = vrot.lane.b32.xlu0 %v1027, 16
        %v1640 = vpop.permute.xlu0 %1639
        %v1642 = vcombine.low %v1027, %v1625
        %v1643 = vcombine.high %v1027, %v1625
        %v1645 = vunpack.c.l.s4 1983009808
        %v1646 = vunpack.c.0.s8 %v1645
        %v1647 = vlaneseq
        %v1648 = vshrl.u32 %v1647, 7
        %v1649 = vsub.s32 %v1646, %v1648
        %v1650 = vrot.slane %v1642, %v1649
        %v1652 = vunpack.c.l.s4 1983009808
        %v1653 = vunpack.c.0.s8 %v1652
        %v1654 = vlaneseq
        %v1655 = vshrl.u32 %v1654, 7
        %v1656 = vsub.s32 %v1653, %v1655
        %v1657 = vrot.slane %v1643, %v1656
        %v1658 = vcombine.low %v1622, %v1628
        %v1659 = vcombine.high %v1622, %v1628
        %v1661 = vunpack.c.l.s4 1983009808
        %v1662 = vunpack.c.0.s8 %v1661
        %v1663 = vlaneseq
        %v1664 = vshrl.u32 %v1663, 7
        %v1665 = vsub.s32 %v1662, %v1664
        %v1666 = vrot.slane %v1658, %v1665
        %v1668 = vunpack.c.l.s4 1983009808
        %v1669 = vunpack.c.0.s8 %v1668
        %v1670 = vlaneseq
        %v1671 = vshrl.u32 %v1670, 7
        %v1672 = vsub.s32 %v1669, %v1671
        %v1673 = vrot.slane %v1659, %v1672
        %v1674 = vcombine.low %v1631, %v1637
        %v1675 = vcombine.high %v1631, %v1637
        %v1677 = vunpack.c.l.s4 1983009808
        %v1678 = vunpack.c.0.s8 %v1677
        %v1679 = vlaneseq
        %v1680 = vshrl.u32 %v1679, 7
        %v1681 = vsub.s32 %v1678, %v1680
        %v1682 = vrot.slane %v1674, %v1681
        %v1684 = vunpack.c.l.s4 1983009808
        %v1685 = vunpack.c.0.s8 %v1684
        %v1686 = vlaneseq
        %v1687 = vshrl.u32 %v1686, 7
        %v1688 = vsub.s32 %v1685, %v1687
        %v1689 = vrot.slane %v1675, %v1688
        %v1690 = vcombine.low %v1634, %v1640
        %v1691 = vcombine.high %v1634, %v1640
        %v1693 = vunpack.c.l.s4 1983009808
        %v1694 = vunpack.c.0.s8 %v1693
        %v1695 = vlaneseq
        %v1696 = vshrl.u32 %v1695, 7
        %v1697 = vsub.s32 %v1694, %v1696
        %v1698 = vrot.slane %v1690, %v1697
        %v1700 = vunpack.c.l.s4 1983009808
        %v1701 = vunpack.c.0.s8 %v1700
        %v1702 = vlaneseq
        %v1703 = vshrl.u32 %v1702, 7
        %v1704 = vsub.s32 %v1701, %v1703
        %v1705 = vrot.slane %v1691, %v1704
        %v1706 = vcombine.low %v1650, %v1666
        %v1707 = vcombine.high %v1650, %v1666
        %v1709 = vunpack.c.l.s4 1934713408
        %v1710 = vunpack.c.0.s8 %v1709
        %v1711 = vlaneseq
        %v1712 = vshrl.u32 %v1711, 7
        %v1713 = vsub.s32 %v1710, %v1712
        %v1714 = vrot.slane %v1706, %v1713
        %v1716 = vunpack.c.l.s4 1934713408
        %v1717 = vunpack.c.0.s8 %v1716
        %v1718 = vlaneseq
        %v1719 = vshrl.u32 %v1718, 7
        %v1720 = vsub.s32 %v1717, %v1719
        %v1721 = vrot.slane %v1707, %v1720
        %v1722 = vcombine.low %v1657, %v1673
        %v1723 = vcombine.high %v1657, %v1673
        %v1725 = vunpack.c.l.s4 1934713408
        %v1726 = vunpack.c.0.s8 %v1725
        %v1727 = vlaneseq
        %v1728 = vshrl.u32 %v1727, 7
        %v1729 = vsub.s32 %v1726, %v1728
        %v1730 = vrot.slane %v1722, %v1729
        %v1732 = vunpack.c.l.s4 1934713408
        %v1733 = vunpack.c.0.s8 %v1732
        %v1734 = vlaneseq
        %v1735 = vshrl.u32 %v1734, 7
        %v1736 = vsub.s32 %v1733, %v1735
        %v1737 = vrot.slane %v1723, %v1736
        %v1738 = vcombine.low %v1682, %v1698
        %v1739 = vcombine.high %v1682, %v1698
        %v1741 = vunpack.c.l.s4 1934713408
        %v1742 = vunpack.c.0.s8 %v1741
        %v1743 = vlaneseq
        %v1744 = vshrl.u32 %v1743, 7
        %v1745 = vsub.s32 %v1742, %v1744
        %v1746 = vrot.slane %v1738, %v1745
        %v1748 = vunpack.c.l.s4 1934713408
        %v1749 = vunpack.c.0.s8 %v1748
        %v1750 = vlaneseq
        %v1751 = vshrl.u32 %v1750, 7
        %v1752 = vsub.s32 %v1749, %v1751
        %v1753 = vrot.slane %v1739, %v1752
        %v1754 = vcombine.low %v1689, %v1705
        %v1755 = vcombine.high %v1689, %v1705
        %v1757 = vunpack.c.l.s4 1934713408
        %v1758 = vunpack.c.0.s8 %v1757
        %v1759 = vlaneseq
        %v1760 = vshrl.u32 %v1759, 7
        %v1761 = vsub.s32 %v1758, %v1760
        %v1762 = vrot.slane %v1754, %v1761
        %v1764 = vunpack.c.l.s4 1934713408
        %v1765 = vunpack.c.0.s8 %v1764
        %v1766 = vlaneseq
        %v1767 = vshrl.u32 %v1766, 7
        %v1768 = vsub.s32 %v1765, %v1767
        %v1769 = vrot.slane %v1755, %v1768
        %v1770 = vcombine.low %v1714, %v1746
        %v1771 = vcombine.high %v1714, %v1746
        %v1772 = vcombine.low %v1721, %v1753
        %v1773 = vcombine.high %v1721, %v1753
        %v1774 = vcombine.low %v1730, %v1762
        %v1775 = vcombine.high %v1730, %v1762
        %v1776 = vcombine.low %v1737, %v1769
        %v1777 = vcombine.high %v1737, %v1769
        %v1778 = vcombine.low %v1770, %v1772
        %v1779 = vcombine.high %v1770, %v1772
        %v1781 = vunpack.c.l.s4 1983009808
        %v1782 = vunpack.c.0.s8 %v1781
        %v1783 = vlaneseq
        %v1784 = vshrl.u32 %v1783, 7
        %v1785 = vsub.s32 %v1782, %v1784
        %v1786 = vrot.slane %v1778, %v1785
        %v1788 = vunpack.c.l.s4 1983009808
        %v1789 = vunpack.c.0.s8 %v1788
        %v1790 = vlaneseq
        %v1791 = vshrl.u32 %v1790, 7
        %v1792 = vsub.s32 %v1789, %v1791
        %v1793 = vrot.slane %v1779, %v1792
        %v1794 = vcombine.low %v1771, %v1773
        %v1795 = vcombine.high %v1771, %v1773
        %v1797 = vunpack.c.l.s4 1983009808
        %v1798 = vunpack.c.0.s8 %v1797
        %v1799 = vlaneseq
        %v1800 = vshrl.u32 %v1799, 7
        %v1801 = vsub.s32 %v1798, %v1800
        %v1802 = vrot.slane %v1794, %v1801
        %v1804 = vunpack.c.l.s4 1983009808
        %v1805 = vunpack.c.0.s8 %v1804
        %v1806 = vlaneseq
        %v1807 = vshrl.u32 %v1806, 7
        %v1808 = vsub.s32 %v1805, %v1807
        %v1809 = vrot.slane %v1795, %v1808
        %v1810 = vcombine.low %v1774, %v1776
        %v1811 = vcombine.high %v1774, %v1776
        %v1813 = vunpack.c.l.s4 1983009808
        %v1814 = vunpack.c.0.s8 %v1813
        %v1815 = vlaneseq
        %v1816 = vshrl.u32 %v1815, 7
        %v1817 = vsub.s32 %v1814, %v1816
        %v1818 = vrot.slane %v1810, %v1817
        %v1820 = vunpack.c.l.s4 1983009808
        %v1821 = vunpack.c.0.s8 %v1820
        %v1822 = vlaneseq
        %v1823 = vshrl.u32 %v1822, 7
        %v1824 = vsub.s32 %v1821, %v1823
        %v1825 = vrot.slane %v1811, %v1824
        %v1826 = vcombine.low %v1775, %v1777
        %v1827 = vcombine.high %v1775, %v1777
        %v1829 = vunpack.c.l.s4 1983009808
        %v1830 = vunpack.c.0.s8 %v1829
        %v1831 = vlaneseq
        %v1832 = vshrl.u32 %v1831, 7
        %v1833 = vsub.s32 %v1830, %v1832
        %v1834 = vrot.slane %v1826, %v1833
        %v1836 = vunpack.c.l.s4 1983009808
        %v1837 = vunpack.c.0.s8 %v1836
        %v1838 = vlaneseq
        %v1839 = vshrl.u32 %v1838, 7
        %v1840 = vsub.s32 %v1837, %v1839
        %v1841 = vrot.slane %v1827, %v1840
        %v1842 = vcombine.low %v1786, %v1802
        %v1843 = vcombine.high %v1786, %v1802
        %v1845 = vunpack.c.l.s4 1934713408
        %v1846 = vunpack.c.0.s8 %v1845
        %v1847 = vlaneseq
        %v1848 = vshrl.u32 %v1847, 7
        %v1849 = vsub.s32 %v1846, %v1848
        %v1850 = vrot.slane %v1842, %v1849
        %v1852 = vunpack.c.l.s4 1934713408
        %v1853 = vunpack.c.0.s8 %v1852
        %v1854 = vlaneseq
        %v1855 = vshrl.u32 %v1854, 7
        %v1856 = vsub.s32 %v1853, %v1855
        %v1857 = vrot.slane %v1843, %v1856
        %v1858 = vcombine.low %v1793, %v1809
        %v1859 = vcombine.high %v1793, %v1809
        %v1861 = vunpack.c.l.s4 1934713408
        %v1862 = vunpack.c.0.s8 %v1861
        %v1863 = vlaneseq
        %v1864 = vshrl.u32 %v1863, 7
        %v1865 = vsub.s32 %v1862, %v1864
        %v1866 = vrot.slane %v1858, %v1865
        %v1868 = vunpack.c.l.s4 1934713408
        %v1869 = vunpack.c.0.s8 %v1868
        %v1870 = vlaneseq
        %v1871 = vshrl.u32 %v1870, 7
        %v1872 = vsub.s32 %v1869, %v1871
        %v1873 = vrot.slane %v1859, %v1872
        %v1874 = vcombine.low %v1818, %v1834
        %v1875 = vcombine.high %v1818, %v1834
        %v1877 = vunpack.c.l.s4 1934713408
        %v1878 = vunpack.c.0.s8 %v1877
        %v1879 = vlaneseq
        %v1880 = vshrl.u32 %v1879, 7
        %v1881 = vsub.s32 %v1878, %v1880
        %v1882 = vrot.slane %v1874, %v1881
        %v1884 = vunpack.c.l.s4 1934713408
        %v1885 = vunpack.c.0.s8 %v1884
        %v1886 = vlaneseq
        %v1887 = vshrl.u32 %v1886, 7
        %v1888 = vsub.s32 %v1885, %v1887
        %v1889 = vrot.slane %v1875, %v1888
        %v1890 = vcombine.low %v1825, %v1841
        %v1891 = vcombine.high %v1825, %v1841
        %v1893 = vunpack.c.l.s4 1934713408
        %v1894 = vunpack.c.0.s8 %v1893
        %v1895 = vlaneseq
        %v1896 = vshrl.u32 %v1895, 7
        %v1897 = vsub.s32 %v1894, %v1896
        %v1898 = vrot.slane %v1890, %v1897
        %v1900 = vunpack.c.l.s4 1934713408
        %v1901 = vunpack.c.0.s8 %v1900
        %v1902 = vlaneseq
        %v1903 = vshrl.u32 %v1902, 7
        %v1904 = vsub.s32 %v1901, %v1903
        %v1905 = vrot.slane %v1891, %v1904
        %v1906 = vcombine.low %v1850, %v1882
        %v1907 = vcombine.high %v1850, %v1882
        %v1908 = vcombine.low %v1857, %v1889
        %v1909 = vcombine.high %v1857, %v1889
        %v1910 = vcombine.low %v1866, %v1898
        %v1911 = vcombine.high %v1866, %v1898
        %v1912 = vcombine.low %v1873, %v1905
        %v1913 = vcombine.high %v1873, %v1905
        %v1914 = vpack.c.bf16 %v1318, %v1318
        %v1915 = vpack.c.bf16 %v1319, %v1319
        %v1916 = vpack.c.bf16 %v1320, %v1320
        %v1917 = vpack.c.bf16 %v1321, %v1321
        %v1918 = vpack.c.bf16 %v1322, %v1322
        %v1919 = vpack.c.bf16 %v1323, %v1323
        %v1920 = vpack.c.bf16 %v1324, %v1324
        %v1921 = vpack.c.bf16 %v1325, %v1325
        %v1922 = vpack.c.bf16 %v1612, %v1612
        %v1923 = vpack.c.bf16 %v1613, %v1613
        %v1924 = vpack.c.bf16 %v1614, %v1614
        %v1925 = vpack.c.bf16 %v1615, %v1615
        %v1926 = vpack.c.bf16 %v1616, %v1616
        %v1927 = vpack.c.bf16 %v1617, %v1617
        %v1928 = vpack.c.bf16 %v1618, %v1618
        %v1929 = vpack.c.bf16 %v1619, %v1619
        %vm1930 = vcmask 130048
        %v1932 = vsel %vm1930, %v1914, 0
        %v1935 = vsel %vm1930, %v1922, 0
        %1937 = vmatprep.subr.bf16.mxu0 0
        %1938 = vmatpush1.bf16.xpose.msra.mxu0 0
        %1939 = vmatprep.subr.bf16.mxu0 0
        %1940 = vmatpush1.bf16.xpose.msra.mxu0 0
        %1941 = vmatprep.subr.bf16.mxu0 0
        %1942 = vmatpush1.bf16.xpose.msra.mxu0 0
        %1943 = vmatprep.subr.bf16.mxu0 0
        %1944 = vmatpush1.bf16.xpose.msra.mxu0 0
        %1945 = vmatprep.subr.bf16.mxu0 0
        %1946 = vmatpush1.bf16.xpose.msra.mxu0 0
        %1947 = vmatprep.subr.bf16.mxu0 0
        %1948 = vmatpush1.bf16.xpose.msra.mxu0 0
        %1949 = vmatprep.subr.bf16.mxu0 0
        %1950 = vmatpush1.bf16.xpose.msra.mxu0 0
        %1951 = vmatprep.subr.bf16.mxu0 0
        %1952 = vmatpush1.bf16.xpose.msra.mxu0 %v1935
        %1953 = vmatprep.subr.bf16.mxu0 0
        %1954 = vmatpush2.bf16.xpose.msra.mxu0 0
        %1955 = vmatprep.subr.bf16.mxu0 0
        %1956 = vmatpush2.bf16.xpose.msra.mxu0 0
        %1957 = vmatprep.subr.bf16.mxu0 0
        %1958 = vmatpush2.bf16.xpose.msra.mxu0 0
        %1959 = vmatprep.subr.bf16.mxu0 0
        %1960 = vmatpush2.bf16.xpose.msra.mxu0 0
        %1961 = vmatprep.subr.bf16.mxu0 0
        %1962 = vmatpush2.bf16.xpose.msra.mxu0 0
        %1963 = vmatprep.subr.bf16.mxu0 0
        %1964 = vmatpush2.bf16.xpose.msra.mxu0 0
        %1965 = vmatprep.subr.bf16.mxu0 0
        %1966 = vmatpush2.bf16.xpose.msra.mxu0 0
        %1967 = vmatprep.subr.bf16.mxu0 0
        %1968 = vmatpush2.bf16.xpose.msra.mxu0 0
        %1969 = vmatprep.mubr.bf16.mxu0 0
        %1970 = vmatmul.mubr.bf16.gmra.mxu0 %v1932
        %v1971 = vpop.f32.mrf.mxu0
        %v1972 = vadd.f32 %v749, %v1971
        %v1973 = vpop.f32.mrf.mxu0
        %v1974 = vpop.f32.mrf.mxu0
        %v1975 = vpop.f32.mrf.mxu0
        %1976 = vdwg.mxu0
        %v1978 = vsel %vm1930, %v1915, 0
        %v1981 = vsel %vm1930, %v1923, 0
        %1983 = vmatprep.subr.bf16.mxu0 0
        %1984 = vmatpush1.bf16.xpose.msra.mxu0 0
        %1985 = vmatprep.subr.bf16.mxu0 0
        %1986 = vmatpush1.bf16.xpose.msra.mxu0 0
        %1987 = vmatprep.subr.bf16.mxu0 0
        %1988 = vmatpush1.bf16.xpose.msra.mxu0 0
        %1989 = vmatprep.subr.bf16.mxu0 0
        %1990 = vmatpush1.bf16.xpose.msra.mxu0 0
        %1991 = vmatprep.subr.bf16.mxu0 0
        %1992 = vmatpush1.bf16.xpose.msra.mxu0 0
        %1993 = vmatprep.subr.bf16.mxu0 0
        %1994 = vmatpush1.bf16.xpose.msra.mxu0 0
        %1995 = vmatprep.subr.bf16.mxu0 0
        %1996 = vmatpush1.bf16.xpose.msra.mxu0 0
        %1997 = vmatprep.subr.bf16.mxu0 0
        %1998 = vmatpush1.bf16.xpose.msra.mxu0 %v1981
        %1999 = vmatprep.subr.bf16.mxu0 0
        %2000 = vmatpush2.bf16.xpose.msra.mxu0 0
        %2001 = vmatprep.subr.bf16.mxu0 0
        %2002 = vmatpush2.bf16.xpose.msra.mxu0 0
        %2003 = vmatprep.subr.bf16.mxu0 0
        %2004 = vmatpush2.bf16.xpose.msra.mxu0 0
        %2005 = vmatprep.subr.bf16.mxu0 0
        %2006 = vmatpush2.bf16.xpose.msra.mxu0 0
        %2007 = vmatprep.subr.bf16.mxu0 0
        %2008 = vmatpush2.bf16.xpose.msra.mxu0 0
        %2009 = vmatprep.subr.bf16.mxu0 0
        %2010 = vmatpush2.bf16.xpose.msra.mxu0 0
        %2011 = vmatprep.subr.bf16.mxu0 0
        %2012 = vmatpush2.bf16.xpose.msra.mxu0 0
        %2013 = vmatprep.subr.bf16.mxu0 0
        %2014 = vmatpush2.bf16.xpose.msra.mxu0 0
        %2015 = vmatprep.mubr.bf16.mxu0 0
        %2016 = vmatmul.mubr.bf16.gmra.mxu0 %v1978
        %v2017 = vpop.f32.mrf.mxu0
        %v2018 = vadd.f32 %v749, %v2017
        %v2019 = vpop.f32.mrf.mxu0
        %v2020 = vpop.f32.mrf.mxu0
        %v2021 = vpop.f32.mrf.mxu0
        %2022 = vdwg.mxu0
        %v2024 = vsel %vm1930, %v1916, 0
        %v2027 = vsel %vm1930, %v1924, 0
        %2029 = vmatprep.subr.bf16.mxu0 0
        %2030 = vmatpush1.bf16.xpose.msra.mxu0 0
        %2031 = vmatprep.subr.bf16.mxu0 0
        %2032 = vmatpush1.bf16.xpose.msra.mxu0 0
        %2033 = vmatprep.subr.bf16.mxu0 0
        %2034 = vmatpush1.bf16.xpose.msra.mxu0 0
        %2035 = vmatprep.subr.bf16.mxu0 0
        %2036 = vmatpush1.bf16.xpose.msra.mxu0 0
        %2037 = vmatprep.subr.bf16.mxu0 0
        %2038 = vmatpush1.bf16.xpose.msra.mxu0 0
        %2039 = vmatprep.subr.bf16.mxu0 0
        %2040 = vmatpush1.bf16.xpose.msra.mxu0 0
        %2041 = vmatprep.subr.bf16.mxu0 0
        %2042 = vmatpush1.bf16.xpose.msra.mxu0 0
        %2043 = vmatprep.subr.bf16.mxu0 0
        %2044 = vmatpush1.bf16.xpose.msra.mxu0 %v2027
        %2045 = vmatprep.subr.bf16.mxu0 0
        %2046 = vmatpush2.bf16.xpose.msra.mxu0 0
        %2047 = vmatprep.subr.bf16.mxu0 0
        %2048 = vmatpush2.bf16.xpose.msra.mxu0 0
        %2049 = vmatprep.subr.bf16.mxu0 0
        %2050 = vmatpush2.bf16.xpose.msra.mxu0 0
        %2051 = vmatprep.subr.bf16.mxu0 0
        %2052 = vmatpush2.bf16.xpose.msra.mxu0 0
        %2053 = vmatprep.subr.bf16.mxu0 0
        %2054 = vmatpush2.bf16.xpose.msra.mxu0 0
        %2055 = vmatprep.subr.bf16.mxu0 0
        %2056 = vmatpush2.bf16.xpose.msra.mxu0 0
        %2057 = vmatprep.subr.bf16.mxu0 0
        %2058 = vmatpush2.bf16.xpose.msra.mxu0 0
        %2059 = vmatprep.subr.bf16.mxu0 0
        %2060 = vmatpush2.bf16.xpose.msra.mxu0 0
        %2061 = vmatprep.mubr.bf16.mxu0 0
        %2062 = vmatmul.mubr.bf16.gmra.mxu0 %v2024
        %v2063 = vpop.f32.mrf.mxu0
        %v2064 = vadd.f32 %v749, %v2063
        %v2065 = vpop.f32.mrf.mxu0
        %v2066 = vpop.f32.mrf.mxu0
        %v2067 = vpop.f32.mrf.mxu0
        %2068 = vdwg.mxu0
        %v2070 = vsel %vm1930, %v1917, 0
        %v2073 = vsel %vm1930, %v1925, 0
        %2075 = vmatprep.subr.bf16.mxu0 0
        %2076 = vmatpush1.bf16.xpose.msra.mxu0 0
        %2077 = vmatprep.subr.bf16.mxu0 0
        %2078 = vmatpush1.bf16.xpose.msra.mxu0 0
        %2079 = vmatprep.subr.bf16.mxu0 0
        %2080 = vmatpush1.bf16.xpose.msra.mxu0 0
        %2081 = vmatprep.subr.bf16.mxu0 0
        %2082 = vmatpush1.bf16.xpose.msra.mxu0 0
        %2083 = vmatprep.subr.bf16.mxu0 0
        %2084 = vmatpush1.bf16.xpose.msra.mxu0 0
        %2085 = vmatprep.subr.bf16.mxu0 0
        %2086 = vmatpush1.bf16.xpose.msra.mxu0 0
        %2087 = vmatprep.subr.bf16.mxu0 0
        %2088 = vmatpush1.bf16.xpose.msra.mxu0 0
        %2089 = vmatprep.subr.bf16.mxu0 0
        %2090 = vmatpush1.bf16.xpose.msra.mxu0 %v2073
        %2091 = vmatprep.subr.bf16.mxu0 0
        %2092 = vmatpush2.bf16.xpose.msra.mxu0 0
        %2093 = vmatprep.subr.bf16.mxu0 0
        %2094 = vmatpush2.bf16.xpose.msra.mxu0 0
        %2095 = vmatprep.subr.bf16.mxu0 0
        %2096 = vmatpush2.bf16.xpose.msra.mxu0 0
        %2097 = vmatprep.subr.bf16.mxu0 0
        %2098 = vmatpush2.bf16.xpose.msra.mxu0 0
        %2099 = vmatprep.subr.bf16.mxu0 0
        %2100 = vmatpush2.bf16.xpose.msra.mxu0 0
        %2101 = vmatprep.subr.bf16.mxu0 0
        %2102 = vmatpush2.bf16.xpose.msra.mxu0 0
        %2103 = vmatprep.subr.bf16.mxu0 0
        %2104 = vmatpush2.bf16.xpose.msra.mxu0 0
        %2105 = vmatprep.subr.bf16.mxu0 0
        %2106 = vmatpush2.bf16.xpose.msra.mxu0 0
        %2107 = vmatprep.mubr.bf16.mxu0 0
        %2108 = vmatmul.mubr.bf16.gmra.mxu0 %v2070
        %v2109 = vpop.f32.mrf.mxu0
        %v2110 = vadd.f32 %v749, %v2109
        %v2111 = vpop.f32.mrf.mxu0
        %v2112 = vpop.f32.mrf.mxu0
        %v2113 = vpop.f32.mrf.mxu0
        %2114 = vdwg.mxu0
        %v2116 = vsel %vm1930, %v1918, 0
        %v2119 = vsel %vm1930, %v1926, 0
        %2121 = vmatprep.subr.bf16.mxu0 0
        %2122 = vmatpush1.bf16.xpose.msra.mxu0 0
        %2123 = vmatprep.subr.bf16.mxu0 0
        %2124 = vmatpush1.bf16.xpose.msra.mxu0 0
        %2125 = vmatprep.subr.bf16.mxu0 0
        %2126 = vmatpush1.bf16.xpose.msra.mxu0 0
        %2127 = vmatprep.subr.bf16.mxu0 0
        %2128 = vmatpush1.bf16.xpose.msra.mxu0 0
        %2129 = vmatprep.subr.bf16.mxu0 0
        %2130 = vmatpush1.bf16.xpose.msra.mxu0 0
        %2131 = vmatprep.subr.bf16.mxu0 0
        %2132 = vmatpush1.bf16.xpose.msra.mxu0 0
        %2133 = vmatprep.subr.bf16.mxu0 0
        %2134 = vmatpush1.bf16.xpose.msra.mxu0 0
        %2135 = vmatprep.subr.bf16.mxu0 0
        %2136 = vmatpush1.bf16.xpose.msra.mxu0 %v2119
        %2137 = vmatprep.subr.bf16.mxu0 0
        %2138 = vmatpush2.bf16.xpose.msra.mxu0 0
        %2139 = vmatprep.subr.bf16.mxu0 0
        %2140 = vmatpush2.bf16.xpose.msra.mxu0 0
        %2141 = vmatprep.subr.bf16.mxu0 0
        %2142 = vmatpush2.bf16.xpose.msra.mxu0 0
        %2143 = vmatprep.subr.bf16.mxu0 0
        %2144 = vmatpush2.bf16.xpose.msra.mxu0 0
        %2145 = vmatprep.subr.bf16.mxu0 0
        %2146 = vmatpush2.bf16.xpose.msra.mxu0 0
        %2147 = vmatprep.subr.bf16.mxu0 0
        %2148 = vmatpush2.bf16.xpose.msra.mxu0 0
        %2149 = vmatprep.subr.bf16.mxu0 0
        %2150 = vmatpush2.bf16.xpose.msra.mxu0 0
        %2151 = vmatprep.subr.bf16.mxu0 0
        %2152 = vmatpush2.bf16.xpose.msra.mxu0 0
        %2153 = vmatprep.mubr.bf16.mxu0 0
        %2154 = vmatmul.mubr.bf16.gmra.mxu0 %v2116
        %v2155 = vpop.f32.mrf.mxu0
        %v2156 = vadd.f32 %v749, %v2155
        %v2157 = vpop.f32.mrf.mxu0
        %v2158 = vpop.f32.mrf.mxu0
        %v2159 = vpop.f32.mrf.mxu0
        %2160 = vdwg.mxu0
        %v2162 = vsel %vm1930, %v1919, 0
        %v2165 = vsel %vm1930, %v1927, 0
        %2167 = vmatprep.subr.bf16.mxu0 0
        %2168 = vmatpush1.bf16.xpose.msra.mxu0 0
        %2169 = vmatprep.subr.bf16.mxu0 0
        %2170 = vmatpush1.bf16.xpose.msra.mxu0 0
        %2171 = vmatprep.subr.bf16.mxu0 0
        %2172 = vmatpush1.bf16.xpose.msra.mxu0 0
        %2173 = vmatprep.subr.bf16.mxu0 0
        %2174 = vmatpush1.bf16.xpose.msra.mxu0 0
        %2175 = vmatprep.subr.bf16.mxu0 0
        %2176 = vmatpush1.bf16.xpose.msra.mxu0 0
        %2177 = vmatprep.subr.bf16.mxu0 0
        %2178 = vmatpush1.bf16.xpose.msra.mxu0 0
        %2179 = vmatprep.subr.bf16.mxu0 0
        %2180 = vmatpush1.bf16.xpose.msra.mxu0 0
        %2181 = vmatprep.subr.bf16.mxu0 0
        %2182 = vmatpush1.bf16.xpose.msra.mxu0 %v2165
        %2183 = vmatprep.subr.bf16.mxu0 0
        %2184 = vmatpush2.bf16.xpose.msra.mxu0 0
        %2185 = vmatprep.subr.bf16.mxu0 0
        %2186 = vmatpush2.bf16.xpose.msra.mxu0 0
        %2187 = vmatprep.subr.bf16.mxu0 0
        %2188 = vmatpush2.bf16.xpose.msra.mxu0 0
        %2189 = vmatprep.subr.bf16.mxu0 0
        %2190 = vmatpush2.bf16.xpose.msra.mxu0 0
        %2191 = vmatprep.subr.bf16.mxu0 0
        %2192 = vmatpush2.bf16.xpose.msra.mxu0 0
        %2193 = vmatprep.subr.bf16.mxu0 0
        %2194 = vmatpush2.bf16.xpose.msra.mxu0 0
        %2195 = vmatprep.subr.bf16.mxu0 0
        %2196 = vmatpush2.bf16.xpose.msra.mxu0 0
        %2197 = vmatprep.subr.bf16.mxu0 0
        %2198 = vmatpush2.bf16.xpose.msra.mxu0 0
        %2199 = vmatprep.mubr.bf16.mxu0 0
        %2200 = vmatmul.mubr.bf16.gmra.mxu0 %v2162
        %v2201 = vpop.f32.mrf.mxu0
        %v2202 = vadd.f32 %v749, %v2201
        %v2203 = vpop.f32.mrf.mxu0
        %v2204 = vpop.f32.mrf.mxu0
        %v2205 = vpop.f32.mrf.mxu0
        %2206 = vdwg.mxu0
        %v2208 = vsel %vm1930, %v1920, 0
        %v2211 = vsel %vm1930, %v1928, 0
        %2213 = vmatprep.subr.bf16.mxu0 0
        %2214 = vmatpush1.bf16.xpose.msra.mxu0 0
        %2215 = vmatprep.subr.bf16.mxu0 0
        %2216 = vmatpush1.bf16.xpose.msra.mxu0 0
        %2217 = vmatprep.subr.bf16.mxu0 0
        %2218 = vmatpush1.bf16.xpose.msra.mxu0 0
        %2219 = vmatprep.subr.bf16.mxu0 0
        %2220 = vmatpush1.bf16.xpose.msra.mxu0 0
        %2221 = vmatprep.subr.bf16.mxu0 0
        %2222 = vmatpush1.bf16.xpose.msra.mxu0 0
        %2223 = vmatprep.subr.bf16.mxu0 0
        %2224 = vmatpush1.bf16.xpose.msra.mxu0 0
        %2225 = vmatprep.subr.bf16.mxu0 0
        %2226 = vmatpush1.bf16.xpose.msra.mxu0 0
        %2227 = vmatprep.subr.bf16.mxu0 0
        %2228 = vmatpush1.bf16.xpose.msra.mxu0 %v2211
        %2229 = vmatprep.subr.bf16.mxu0 0
        %2230 = vmatpush2.bf16.xpose.msra.mxu0 0
        %2231 = vmatprep.subr.bf16.mxu0 0
        %2232 = vmatpush2.bf16.xpose.msra.mxu0 0
        %2233 = vmatprep.subr.bf16.mxu0 0
        %2234 = vmatpush2.bf16.xpose.msra.mxu0 0
        %2235 = vmatprep.subr.bf16.mxu0 0
        %2236 = vmatpush2.bf16.xpose.msra.mxu0 0
        %2237 = vmatprep.subr.bf16.mxu0 0
        %2238 = vmatpush2.bf16.xpose.msra.mxu0 0
        %2239 = vmatprep.subr.bf16.mxu0 0
        %2240 = vmatpush2.bf16.xpose.msra.mxu0 0
        %2241 = vmatprep.subr.bf16.mxu0 0
        %2242 = vmatpush2.bf16.xpose.msra.mxu0 0
        %2243 = vmatprep.subr.bf16.mxu0 0
        %2244 = vmatpush2.bf16.xpose.msra.mxu0 0
        %2245 = vmatprep.mubr.bf16.mxu0 0
        %2246 = vmatmul.mubr.bf16.gmra.mxu0 %v2208
        %v2247 = vpop.f32.mrf.mxu0
        %v2248 = vadd.f32 %v749, %v2247
        %v2249 = vpop.f32.mrf.mxu0
        %v2250 = vpop.f32.mrf.mxu0
        %v2251 = vpop.f32.mrf.mxu0
        %2252 = vdwg.mxu0
        %v2254 = vsel %vm1930, %v1921, 0
        %v2257 = vsel %vm1930, %v1929, 0
        %2259 = vmatprep.subr.bf16.mxu0 0
        %2260 = vmatpush1.bf16.xpose.msra.mxu0 0
        %2261 = vmatprep.subr.bf16.mxu0 0
        %2262 = vmatpush1.bf16.xpose.msra.mxu0 0
        %2263 = vmatprep.subr.bf16.mxu0 0
        %2264 = vmatpush1.bf16.xpose.msra.mxu0 0
        %2265 = vmatprep.subr.bf16.mxu0 0
        %2266 = vmatpush1.bf16.xpose.msra.mxu0 0
        %2267 = vmatprep.subr.bf16.mxu0 0
        %2268 = vmatpush1.bf16.xpose.msra.mxu0 0
        %2269 = vmatprep.subr.bf16.mxu0 0
        %2270 = vmatpush1.bf16.xpose.msra.mxu0 0
        %2271 = vmatprep.subr.bf16.mxu0 0
        %2272 = vmatpush1.bf16.xpose.msra.mxu0 0
        %2273 = vmatprep.subr.bf16.mxu0 0
        %2274 = vmatpush1.bf16.xpose.msra.mxu0 %v2257
        %2275 = vmatprep.subr.bf16.mxu0 0
        %2276 = vmatpush2.bf16.xpose.msra.mxu0 0
        %2277 = vmatprep.subr.bf16.mxu0 0
        %2278 = vmatpush2.bf16.xpose.msra.mxu0 0
        %2279 = vmatprep.subr.bf16.mxu0 0
        %2280 = vmatpush2.bf16.xpose.msra.mxu0 0
        %2281 = vmatprep.subr.bf16.mxu0 0
        %2282 = vmatpush2.bf16.xpose.msra.mxu0 0
        %2283 = vmatprep.subr.bf16.mxu0 0
        %2284 = vmatpush2.bf16.xpose.msra.mxu0 0
        %2285 = vmatprep.subr.bf16.mxu0 0
        %2286 = vmatpush2.bf16.xpose.msra.mxu0 0
        %2287 = vmatprep.subr.bf16.mxu0 0
        %2288 = vmatpush2.bf16.xpose.msra.mxu0 0
        %2289 = vmatprep.subr.bf16.mxu0 0
        %2290 = vmatpush2.bf16.xpose.msra.mxu0 0
        %2291 = vmatprep.mubr.bf16.mxu0 0
        %2292 = vmatmul.mubr.bf16.gmra.mxu0 %v2254
        %v2293 = vpop.f32.mrf.mxu0
        %v2294 = vadd.f32 %v749, %v2293
        %v2295 = vpop.f32.mrf.mxu0
        %v2296 = vpop.f32.mrf.mxu0
        %v2297 = vpop.f32.mrf.mxu0
        %2298 = vdwg.mxu0
        %vm2299 = vcmask 64512
        %v2300 = vsel %vm2299, %v1972, -inf
        %2301 = vmax.xlane.f32.xlu0 %v2300
        %v2302 = vpop.xlane.xlu0 %2301
        %v2303 = vsel %vm2299, %v2018, -inf
        %2304 = vmax.xlane.f32.xlu0 %v2303
        %v2305 = vpop.xlane.xlu0 %2304
        %v2306 = vsel %vm2299, %v2064, -inf
        %2307 = vmax.xlane.f32.xlu0 %v2306
        %v2308 = vpop.xlane.xlu0 %2307
        %v2309 = vsel %vm2299, %v2110, -inf
        %2310 = vmax.xlane.f32.xlu0 %v2309
        %v2311 = vpop.xlane.xlu0 %2310
        %v2312 = vsel %vm2299, %v2156, -inf
        %2313 = vmax.xlane.f32.xlu0 %v2312
        %v2314 = vpop.xlane.xlu0 %2313
        %v2315 = vsel %vm2299, %v2202, -inf
        %2316 = vmax.xlane.f32.xlu0 %v2315
        %v2317 = vpop.xlane.xlu0 %2316
        %v2318 = vsel %vm2299, %v2248, -inf
        %2319 = vmax.xlane.f32.xlu0 %v2318
        %v2320 = vpop.xlane.xlu0 %2319
        %v2321 = vsel %vm2299, %v2294, -inf
        %2322 = vmax.xlane.f32.xlu0 %v2321
        %v2323 = vpop.xlane.xlu0 %2322
        %v2324 = vsub.f32 %v1972, %v2302
        %v2325 = vsub.f32 %v2018, %v2305
        %v2326 = vsub.f32 %v2064, %v2308
        %v2327 = vsub.f32 %v2110, %v2311
        %v2328 = vsub.f32 %v2156, %v2314
        %v2329 = vsub.f32 %v2202, %v2317
        %v2330 = vsub.f32 %v2248, %v2320
        %v2331 = vsub.f32 %v2294, %v2323
        %v2332 = vmul.f32 %v2324, 1.442695
        %v2333 = vpow.pop %v2332
        %v2334 = vmul.f32 %v2325, 1.442695
        %v2335 = vpow.pop %v2334
        %v2336 = vmul.f32 %v2326, 1.442695
        %v2337 = vpow.pop %v2336
        %v2338 = vmul.f32 %v2327, 1.442695
        %v2339 = vpow.pop %v2338
        %v2340 = vmul.f32 %v2328, 1.442695
        %v2341 = vpow.pop %v2340
        %v2342 = vmul.f32 %v2329, 1.442695
        %v2343 = vpow.pop %v2342
        %v2344 = vmul.f32 %v2330, 1.442695
        %v2345 = vpow.pop %v2344
        %v2346 = vmul.f32 %v2331, 1.442695
        %v2347 = vpow.pop %v2346
        %v2348 = vsel %vm2299, %v2333, 0.0
        %2349 = vadd.xlane.f32.xlu0 %v2348
        %v2350 = vpop.xlane.xlu0 %2349
        %v2351 = vsel %vm2299, %v2335, 0.0
        %2352 = vadd.xlane.f32.xlu0 %v2351
        %v2353 = vpop.xlane.xlu0 %2352
        %v2354 = vsel %vm2299, %v2337, 0.0
        %2355 = vadd.xlane.f32.xlu0 %v2354
        %v2356 = vpop.xlane.xlu0 %2355
        %v2357 = vsel %vm2299, %v2339, 0.0
        %2358 = vadd.xlane.f32.xlu0 %v2357
        %v2359 = vpop.xlane.xlu0 %2358
        %v2360 = vsel %vm2299, %v2341, 0.0
        %2361 = vadd.xlane.f32.xlu0 %v2360
        %v2362 = vpop.xlane.xlu0 %2361
        %v2363 = vsel %vm2299, %v2343, 0.0
        %2364 = vadd.xlane.f32.xlu0 %v2363
        %v2365 = vpop.xlane.xlu0 %2364
        %v2366 = vsel %vm2299, %v2345, 0.0
        %2367 = vadd.xlane.f32.xlu0 %v2366
        %v2368 = vpop.xlane.xlu0 %2367
        %v2369 = vsel %vm2299, %v2347, 0.0
        %2370 = vadd.xlane.f32.xlu0 %v2369
        %v2371 = vpop.xlane.xlu0 %2370
        %v2372 = vrcp.pop %v2350
        %v2373 = vrcp.pop %v2353
        %v2374 = vrcp.pop %v2356
        %v2375 = vrcp.pop %v2359
        %v2376 = vrcp.pop %v2362
        %v2377 = vrcp.pop %v2365
        %v2378 = vrcp.pop %v2368
        %v2379 = vrcp.pop %v2371
        %v2380 = vmul.f32 %v2333, %v2372
        %v2381 = vmul.f32 %v2335, %v2373
        %v2382 = vmul.f32 %v2337, %v2374
        %v2383 = vmul.f32 %v2339, %v2375
        %v2384 = vmul.f32 %v2341, %v2376
        %v2385 = vmul.f32 %v2343, %v2377
        %v2386 = vmul.f32 %v2345, %v2378
        %v2387 = vmul.f32 %v2347, %v2379
        %v2388 = vmul.f32 %v2380, %v752
        %v2389 = vmul.f32 %v2381, %v752
        %v2390 = vmul.f32 %v2382, %v752
        %v2391 = vmul.f32 %v2383, %v752
        %v2392 = vmul.f32 %v2384, %v752
        %v2393 = vmul.f32 %v2385, %v752
        %v2394 = vmul.f32 %v2386, %v752
        %v2395 = vmul.f32 %v2387, %v752
        %v2396 = vpack.c.bf16 %v2388, %v2388
        %v2397 = vpack.c.bf16 %v2389, %v2389
        %v2398 = vpack.c.bf16 %v2390, %v2390
        %v2399 = vpack.c.bf16 %v2391, %v2391
        %v2400 = vpack.c.bf16 %v2392, %v2392
        %v2401 = vpack.c.bf16 %v2393, %v2393
        %v2402 = vpack.c.bf16 %v2394, %v2394
        %v2403 = vpack.c.bf16 %v2395, %v2395
        %v2404 = vpack.c.bf16 %v1906, %v1906
        %v2405 = vpack.c.bf16 %v1907, %v1907
        %v2406 = vpack.c.bf16 %v1908, %v1908
        %v2407 = vpack.c.bf16 %v1909, %v1909
        %v2408 = vpack.c.bf16 %v1910, %v1910
        %v2409 = vpack.c.bf16 %v1911, %v1911
        %v2410 = vpack.c.bf16 %v1912, %v1912
        %v2411 = vpack.c.bf16 %v1913, %v1913
        %v2413 = vsel %vm2299, %v2396, 0
        %vm2415 = vcmask 1043456
        %v2417 = vsel %vm2415, %v2404, 0
        %2419 = vmatprep.subr.bf16.mxu0 0
        %2420 = vmatpush1.bf16.msra.mxu0 0
        %2421 = vmatprep.subr.bf16.mxu0 0
        %2422 = vmatpush1.bf16.msra.mxu0 0
        %2423 = vmatprep.subr.bf16.mxu0 0
        %2424 = vmatpush1.bf16.msra.mxu0 0
        %2425 = vmatprep.subr.bf16.mxu0 0
        %2426 = vmatpush1.bf16.msra.mxu0 0
        %2427 = vmatprep.subr.bf16.mxu0 0
        %2428 = vmatpush1.bf16.msra.mxu0 0
        %2429 = vmatprep.subr.bf16.mxu0 0
        %2430 = vmatpush1.bf16.msra.mxu0 0
        %2431 = vmatprep.subr.bf16.mxu0 0
        %2432 = vmatpush1.bf16.msra.mxu0 0
        %2433 = vmatprep.subr.bf16.mxu0 0
        %2434 = vmatpush1.bf16.msra.mxu0 %v2417
        %2435 = vmatprep.subr.bf16.mxu0 0
        %2436 = vmatpush2.bf16.msra.mxu0 0
        %2437 = vmatprep.subr.bf16.mxu0 0
        %2438 = vmatpush2.bf16.msra.mxu0 0
        %2439 = vmatprep.subr.bf16.mxu0 0
        %2440 = vmatpush2.bf16.msra.mxu0 0
        %2441 = vmatprep.subr.bf16.mxu0 0
        %2442 = vmatpush2.bf16.msra.mxu0 0
        %2443 = vmatprep.subr.bf16.mxu0 0
        %2444 = vmatpush2.bf16.msra.mxu0 0
        %2445 = vmatprep.subr.bf16.mxu0 0
        %2446 = vmatpush2.bf16.msra.mxu0 0
        %2447 = vmatprep.subr.bf16.mxu0 0
        %2448 = vmatpush2.bf16.msra.mxu0 0
        %2449 = vmatprep.subr.bf16.mxu0 0
        %2450 = vmatpush2.bf16.msra.mxu0 0
        %2451 = vmatprep.mubr.bf16.mxu0 0
        %2452 = vmatmul.mubr.bf16.gmra.mxu0 %v2413
        %v2453 = vpop.f32.mrf.mxu0
        %v2454 = vadd.f32 0.0, %v2453
        %v2455 = vpop.f32.mrf.mxu0
        %v2456 = vpop.f32.mrf.mxu0
        %v2457 = vpop.f32.mrf.mxu0
        %2458 = vdwg.mxu0
        %v2460 = vsel %vm2299, %v2397, 0
        %v2463 = vsel %vm2415, %v2405, 0
        %2465 = vmatprep.subr.bf16.mxu0 0
        %2466 = vmatpush1.bf16.msra.mxu0 0
        %2467 = vmatprep.subr.bf16.mxu0 0
        %2468 = vmatpush1.bf16.msra.mxu0 0
        %2469 = vmatprep.subr.bf16.mxu0 0
        %2470 = vmatpush1.bf16.msra.mxu0 0
        %2471 = vmatprep.subr.bf16.mxu0 0
        %2472 = vmatpush1.bf16.msra.mxu0 0
        %2473 = vmatprep.subr.bf16.mxu0 0
        %2474 = vmatpush1.bf16.msra.mxu0 0
        %2475 = vmatprep.subr.bf16.mxu0 0
        %2476 = vmatpush1.bf16.msra.mxu0 0
        %2477 = vmatprep.subr.bf16.mxu0 0
        %2478 = vmatpush1.bf16.msra.mxu0 0
        %2479 = vmatprep.subr.bf16.mxu0 0
        %2480 = vmatpush1.bf16.msra.mxu0 %v2463
        %2481 = vmatprep.subr.bf16.mxu0 0
        %2482 = vmatpush2.bf16.msra.mxu0 0
        %2483 = vmatprep.subr.bf16.mxu0 0
        %2484 = vmatpush2.bf16.msra.mxu0 0
        %2485 = vmatprep.subr.bf16.mxu0 0
        %2486 = vmatpush2.bf16.msra.mxu0 0
        %2487 = vmatprep.subr.bf16.mxu0 0
        %2488 = vmatpush2.bf16.msra.mxu0 0
        %2489 = vmatprep.subr.bf16.mxu0 0
        %2490 = vmatpush2.bf16.msra.mxu0 0
        %2491 = vmatprep.subr.bf16.mxu0 0
        %2492 = vmatpush2.bf16.msra.mxu0 0
        %2493 = vmatprep.subr.bf16.mxu0 0
        %2494 = vmatpush2.bf16.msra.mxu0 0
        %2495 = vmatprep.subr.bf16.mxu0 0
        %2496 = vmatpush2.bf16.msra.mxu0 0
        %2497 = vmatprep.mubr.bf16.mxu0 0
        %2498 = vmatmul.mubr.bf16.gmra.mxu0 %v2460
        %v2499 = vpop.f32.mrf.mxu0
        %v2500 = vadd.f32 0.0, %v2499
        %v2501 = vpop.f32.mrf.mxu0
        %v2502 = vpop.f32.mrf.mxu0
        %v2503 = vpop.f32.mrf.mxu0
        %2504 = vdwg.mxu0
        %v2506 = vsel %vm2299, %v2398, 0
        %v2509 = vsel %vm2415, %v2406, 0
        %2511 = vmatprep.subr.bf16.mxu0 0
        %2512 = vmatpush1.bf16.msra.mxu0 0
        %2513 = vmatprep.subr.bf16.mxu0 0
        %2514 = vmatpush1.bf16.msra.mxu0 0
        %2515 = vmatprep.subr.bf16.mxu0 0
        %2516 = vmatpush1.bf16.msra.mxu0 0
        %2517 = vmatprep.subr.bf16.mxu0 0
        %2518 = vmatpush1.bf16.msra.mxu0 0
        %2519 = vmatprep.subr.bf16.mxu0 0
        %2520 = vmatpush1.bf16.msra.mxu0 0
        %2521 = vmatprep.subr.bf16.mxu0 0
        %2522 = vmatpush1.bf16.msra.mxu0 0
        %2523 = vmatprep.subr.bf16.mxu0 0
        %2524 = vmatpush1.bf16.msra.mxu0 0
        %2525 = vmatprep.subr.bf16.mxu0 0
        %2526 = vmatpush1.bf16.msra.mxu0 %v2509
        %2527 = vmatprep.subr.bf16.mxu0 0
        %2528 = vmatpush2.bf16.msra.mxu0 0
        %2529 = vmatprep.subr.bf16.mxu0 0
        %2530 = vmatpush2.bf16.msra.mxu0 0
        %2531 = vmatprep.subr.bf16.mxu0 0
        %2532 = vmatpush2.bf16.msra.mxu0 0
        %2533 = vmatprep.subr.bf16.mxu0 0
        %2534 = vmatpush2.bf16.msra.mxu0 0
        %2535 = vmatprep.subr.bf16.mxu0 0
        %2536 = vmatpush2.bf16.msra.mxu0 0
        %2537 = vmatprep.subr.bf16.mxu0 0
        %2538 = vmatpush2.bf16.msra.mxu0 0
        %2539 = vmatprep.subr.bf16.mxu0 0
        %2540 = vmatpush2.bf16.msra.mxu0 0
        %2541 = vmatprep.subr.bf16.mxu0 0
        %2542 = vmatpush2.bf16.msra.mxu0 0
        %2543 = vmatprep.mubr.bf16.mxu0 0
        %2544 = vmatmul.mubr.bf16.gmra.mxu0 %v2506
        %v2545 = vpop.f32.mrf.mxu0
        %v2546 = vadd.f32 0.0, %v2545
        %v2547 = vpop.f32.mrf.mxu0
        %v2548 = vpop.f32.mrf.mxu0
        %v2549 = vpop.f32.mrf.mxu0
        %2550 = vdwg.mxu0
        %v2552 = vsel %vm2299, %v2399, 0
        %v2555 = vsel %vm2415, %v2407, 0
        %2557 = vmatprep.subr.bf16.mxu0 0
        %2558 = vmatpush1.bf16.msra.mxu0 0
        %2559 = vmatprep.subr.bf16.mxu0 0
        %2560 = vmatpush1.bf16.msra.mxu0 0
        %2561 = vmatprep.subr.bf16.mxu0 0
        %2562 = vmatpush1.bf16.msra.mxu0 0
        %2563 = vmatprep.subr.bf16.mxu0 0
        %2564 = vmatpush1.bf16.msra.mxu0 0
        %2565 = vmatprep.subr.bf16.mxu0 0
        %2566 = vmatpush1.bf16.msra.mxu0 0
        %2567 = vmatprep.subr.bf16.mxu0 0
        %2568 = vmatpush1.bf16.msra.mxu0 0
        %2569 = vmatprep.subr.bf16.mxu0 0
        %2570 = vmatpush1.bf16.msra.mxu0 0
        %2571 = vmatprep.subr.bf16.mxu0 0
        %2572 = vmatpush1.bf16.msra.mxu0 %v2555
        %2573 = vmatprep.subr.bf16.mxu0 0
        %2574 = vmatpush2.bf16.msra.mxu0 0
        %2575 = vmatprep.subr.bf16.mxu0 0
        %2576 = vmatpush2.bf16.msra.mxu0 0
        %2577 = vmatprep.subr.bf16.mxu0 0
        %2578 = vmatpush2.bf16.msra.mxu0 0
        %2579 = vmatprep.subr.bf16.mxu0 0
        %2580 = vmatpush2.bf16.msra.mxu0 0
        %2581 = vmatprep.subr.bf16.mxu0 0
        %2582 = vmatpush2.bf16.msra.mxu0 0
        %2583 = vmatprep.subr.bf16.mxu0 0
        %2584 = vmatpush2.bf16.msra.mxu0 0
        %2585 = vmatprep.subr.bf16.mxu0 0
        %2586 = vmatpush2.bf16.msra.mxu0 0
        %2587 = vmatprep.subr.bf16.mxu0 0
        %2588 = vmatpush2.bf16.msra.mxu0 0
        %2589 = vmatprep.mubr.bf16.mxu0 0
        %2590 = vmatmul.mubr.bf16.gmra.mxu0 %v2552
        %v2591 = vpop.f32.mrf.mxu0
        %v2592 = vadd.f32 0.0, %v2591
        %v2593 = vpop.f32.mrf.mxu0
        %v2594 = vpop.f32.mrf.mxu0
        %v2595 = vpop.f32.mrf.mxu0
        %2596 = vdwg.mxu0
        %v2598 = vsel %vm2299, %v2400, 0
        %v2601 = vsel %vm2415, %v2408, 0
        %2603 = vmatprep.subr.bf16.mxu0 0
        %2604 = vmatpush1.bf16.msra.mxu0 0
        %2605 = vmatprep.subr.bf16.mxu0 0
        %2606 = vmatpush1.bf16.msra.mxu0 0
        %2607 = vmatprep.subr.bf16.mxu0 0
        %2608 = vmatpush1.bf16.msra.mxu0 0
        %2609 = vmatprep.subr.bf16.mxu0 0
        %2610 = vmatpush1.bf16.msra.mxu0 0
        %2611 = vmatprep.subr.bf16.mxu0 0
        %2612 = vmatpush1.bf16.msra.mxu0 0
        %2613 = vmatprep.subr.bf16.mxu0 0
        %2614 = vmatpush1.bf16.msra.mxu0 0
        %2615 = vmatprep.subr.bf16.mxu0 0
        %2616 = vmatpush1.bf16.msra.mxu0 0
        %2617 = vmatprep.subr.bf16.mxu0 0
        %2618 = vmatpush1.bf16.msra.mxu0 %v2601
        %2619 = vmatprep.subr.bf16.mxu0 0
        %2620 = vmatpush2.bf16.msra.mxu0 0
        %2621 = vmatprep.subr.bf16.mxu0 0
        %2622 = vmatpush2.bf16.msra.mxu0 0
        %2623 = vmatprep.subr.bf16.mxu0 0
        %2624 = vmatpush2.bf16.msra.mxu0 0
        %2625 = vmatprep.subr.bf16.mxu0 0
        %2626 = vmatpush2.bf16.msra.mxu0 0
        %2627 = vmatprep.subr.bf16.mxu0 0
        %2628 = vmatpush2.bf16.msra.mxu0 0
        %2629 = vmatprep.subr.bf16.mxu0 0
        %2630 = vmatpush2.bf16.msra.mxu0 0
        %2631 = vmatprep.subr.bf16.mxu0 0
        %2632 = vmatpush2.bf16.msra.mxu0 0
        %2633 = vmatprep.subr.bf16.mxu0 0
        %2634 = vmatpush2.bf16.msra.mxu0 0
        %2635 = vmatprep.mubr.bf16.mxu0 0
        %2636 = vmatmul.mubr.bf16.gmra.mxu0 %v2598
        %v2637 = vpop.f32.mrf.mxu0
        %v2638 = vadd.f32 0.0, %v2637
        %v2639 = vpop.f32.mrf.mxu0
        %v2640 = vpop.f32.mrf.mxu0
        %v2641 = vpop.f32.mrf.mxu0
        %2642 = vdwg.mxu0
        %v2644 = vsel %vm2299, %v2401, 0
        %v2647 = vsel %vm2415, %v2409, 0
        %2649 = vmatprep.subr.bf16.mxu0 0
        %2650 = vmatpush1.bf16.msra.mxu0 0
        %2651 = vmatprep.subr.bf16.mxu0 0
        %2652 = vmatpush1.bf16.msra.mxu0 0
        %2653 = vmatprep.subr.bf16.mxu0 0
        %2654 = vmatpush1.bf16.msra.mxu0 0
        %2655 = vmatprep.subr.bf16.mxu0 0
        %2656 = vmatpush1.bf16.msra.mxu0 0
        %2657 = vmatprep.subr.bf16.mxu0 0
        %2658 = vmatpush1.bf16.msra.mxu0 0
        %2659 = vmatprep.subr.bf16.mxu0 0
        %2660 = vmatpush1.bf16.msra.mxu0 0
        %2661 = vmatprep.subr.bf16.mxu0 0
        %2662 = vmatpush1.bf16.msra.mxu0 0
        %2663 = vmatprep.subr.bf16.mxu0 0
        %2664 = vmatpush1.bf16.msra.mxu0 %v2647
        %2665 = vmatprep.subr.bf16.mxu0 0
        %2666 = vmatpush2.bf16.msra.mxu0 0
        %2667 = vmatprep.subr.bf16.mxu0 0
        %2668 = vmatpush2.bf16.msra.mxu0 0
        %2669 = vmatprep.subr.bf16.mxu0 0
        %2670 = vmatpush2.bf16.msra.mxu0 0
        %2671 = vmatprep.subr.bf16.mxu0 0
        %2672 = vmatpush2.bf16.msra.mxu0 0
        %2673 = vmatprep.subr.bf16.mxu0 0
        %2674 = vmatpush2.bf16.msra.mxu0 0
        %2675 = vmatprep.subr.bf16.mxu0 0
        %2676 = vmatpush2.bf16.msra.mxu0 0
        %2677 = vmatprep.subr.bf16.mxu0 0
        %2678 = vmatpush2.bf16.msra.mxu0 0
        %2679 = vmatprep.subr.bf16.mxu0 0
        %2680 = vmatpush2.bf16.msra.mxu0 0
        %2681 = vmatprep.mubr.bf16.mxu0 0
        %2682 = vmatmul.mubr.bf16.gmra.mxu0 %v2644
        %v2683 = vpop.f32.mrf.mxu0
        %v2684 = vadd.f32 0.0, %v2683
        %v2685 = vpop.f32.mrf.mxu0
        %v2686 = vpop.f32.mrf.mxu0
        %v2687 = vpop.f32.mrf.mxu0
        %2688 = vdwg.mxu0
        %v2690 = vsel %vm2299, %v2402, 0
        %v2693 = vsel %vm2415, %v2410, 0
        %2695 = vmatprep.subr.bf16.mxu0 0
        %2696 = vmatpush1.bf16.msra.mxu0 0
        %2697 = vmatprep.subr.bf16.mxu0 0
        %2698 = vmatpush1.bf16.msra.mxu0 0
        %2699 = vmatprep.subr.bf16.mxu0 0
        %2700 = vmatpush1.bf16.msra.mxu0 0
        %2701 = vmatprep.subr.bf16.mxu0 0
        %2702 = vmatpush1.bf16.msra.mxu0 0
        %2703 = vmatprep.subr.bf16.mxu0 0
        %2704 = vmatpush1.bf16.msra.mxu0 0
        %2705 = vmatprep.subr.bf16.mxu0 0
        %2706 = vmatpush1.bf16.msra.mxu0 0
        %2707 = vmatprep.subr.bf16.mxu0 0
        %2708 = vmatpush1.bf16.msra.mxu0 0
        %2709 = vmatprep.subr.bf16.mxu0 0
        %2710 = vmatpush1.bf16.msra.mxu0 %v2693
        %2711 = vmatprep.subr.bf16.mxu0 0
        %2712 = vmatpush2.bf16.msra.mxu0 0
        %2713 = vmatprep.subr.bf16.mxu0 0
        %2714 = vmatpush2.bf16.msra.mxu0 0
        %2715 = vmatprep.subr.bf16.mxu0 0
        %2716 = vmatpush2.bf16.msra.mxu0 0
        %2717 = vmatprep.subr.bf16.mxu0 0
        %2718 = vmatpush2.bf16.msra.mxu0 0
        %2719 = vmatprep.subr.bf16.mxu0 0
        %2720 = vmatpush2.bf16.msra.mxu0 0
        %2721 = vmatprep.subr.bf16.mxu0 0
        %2722 = vmatpush2.bf16.msra.mxu0 0
        %2723 = vmatprep.subr.bf16.mxu0 0
        %2724 = vmatpush2.bf16.msra.mxu0 0
        %2725 = vmatprep.subr.bf16.mxu0 0
        %2726 = vmatpush2.bf16.msra.mxu0 0
        %2727 = vmatprep.mubr.bf16.mxu0 0
        %2728 = vmatmul.mubr.bf16.gmra.mxu0 %v2690
        %v2729 = vpop.f32.mrf.mxu0
        %v2730 = vadd.f32 0.0, %v2729
        %v2731 = vpop.f32.mrf.mxu0
        %v2732 = vpop.f32.mrf.mxu0
        %v2733 = vpop.f32.mrf.mxu0
        %2734 = vdwg.mxu0
        %v2736 = vsel %vm2299, %v2403, 0
        %v2739 = vsel %vm2415, %v2411, 0
        %2741 = vmatprep.subr.bf16.mxu0 0
        %2742 = vmatpush1.bf16.msra.mxu0 0
        %2743 = vmatprep.subr.bf16.mxu0 0
        %2744 = vmatpush1.bf16.msra.mxu0 0
        %2745 = vmatprep.subr.bf16.mxu0 0
        %2746 = vmatpush1.bf16.msra.mxu0 0
        %2747 = vmatprep.subr.bf16.mxu0 0
        %2748 = vmatpush1.bf16.msra.mxu0 0
        %2749 = vmatprep.subr.bf16.mxu0 0
        %2750 = vmatpush1.bf16.msra.mxu0 0
        %2751 = vmatprep.subr.bf16.mxu0 0
        %2752 = vmatpush1.bf16.msra.mxu0 0
        %2753 = vmatprep.subr.bf16.mxu0 0
        %2754 = vmatpush1.bf16.msra.mxu0 0
        %2755 = vmatprep.subr.bf16.mxu0 0
        %2756 = vmatpush1.bf16.msra.mxu0 %v2739
        %2757 = vmatprep.subr.bf16.mxu0 0
        %2758 = vmatpush2.bf16.msra.mxu0 0
        %2759 = vmatprep.subr.bf16.mxu0 0
        %2760 = vmatpush2.bf16.msra.mxu0 0
        %2761 = vmatprep.subr.bf16.mxu0 0
        %2762 = vmatpush2.bf16.msra.mxu0 0
        %2763 = vmatprep.subr.bf16.mxu0 0
        %2764 = vmatpush2.bf16.msra.mxu0 0
        %2765 = vmatprep.subr.bf16.mxu0 0
        %2766 = vmatpush2.bf16.msra.mxu0 0
        %2767 = vmatprep.subr.bf16.mxu0 0
        %2768 = vmatpush2.bf16.msra.mxu0 0
        %2769 = vmatprep.subr.bf16.mxu0 0
        %2770 = vmatpush2.bf16.msra.mxu0 0
        %2771 = vmatprep.subr.bf16.mxu0 0
        %2772 = vmatpush2.bf16.msra.mxu0 0
        %2773 = vmatprep.mubr.bf16.mxu0 0
        %2774 = vmatmul.mubr.bf16.gmra.mxu0 %v2736
        %v2775 = vpop.f32.mrf.mxu0
        %v2776 = vadd.f32 0.0, %v2775
        %v2777 = vpop.f32.mrf.mxu0
        %v2778 = vpop.f32.mrf.mxu0
        %v2779 = vpop.f32.mrf.mxu0
        %2780 = vdwg.mxu0
        %v2781 = vcombine.low %v2454, %v2546
        %v2782 = vcombine.high %v2454, %v2546
        %v2784 = vunpack.c.l.s4 1983009808
        %v2785 = vunpack.c.0.s8 %v2784
        %v2786 = vlaneseq
        %v2787 = vshrl.u32 %v2786, 7
        %v2788 = vsub.s32 %v2785, %v2787
        %v2789 = vrot.slane %v2781, %v2788
        %v2791 = vunpack.c.l.s4 1983009808
        %v2792 = vunpack.c.0.s8 %v2791
        %v2793 = vlaneseq
        %v2794 = vshrl.u32 %v2793, 7
        %v2795 = vsub.s32 %v2792, %v2794
        %v2796 = vrot.slane %v2782, %v2795
        %v2797 = vcombine.low %v2500, %v2592
        %v2798 = vcombine.high %v2500, %v2592
        %v2800 = vunpack.c.l.s4 1983009808
        %v2801 = vunpack.c.0.s8 %v2800
        %v2802 = vlaneseq
        %v2803 = vshrl.u32 %v2802, 7
        %v2804 = vsub.s32 %v2801, %v2803
        %v2805 = vrot.slane %v2797, %v2804
        %v2807 = vunpack.c.l.s4 1983009808
        %v2808 = vunpack.c.0.s8 %v2807
        %v2809 = vlaneseq
        %v2810 = vshrl.u32 %v2809, 7
        %v2811 = vsub.s32 %v2808, %v2810
        %v2812 = vrot.slane %v2798, %v2811
        %v2813 = vcombine.low %v2638, %v2730
        %v2814 = vcombine.high %v2638, %v2730
        %v2816 = vunpack.c.l.s4 1983009808
        %v2817 = vunpack.c.0.s8 %v2816
        %v2818 = vlaneseq
        %v2819 = vshrl.u32 %v2818, 7
        %v2820 = vsub.s32 %v2817, %v2819
        %v2821 = vrot.slane %v2813, %v2820
        %v2823 = vunpack.c.l.s4 1983009808
        %v2824 = vunpack.c.0.s8 %v2823
        %v2825 = vlaneseq
        %v2826 = vshrl.u32 %v2825, 7
        %v2827 = vsub.s32 %v2824, %v2826
        %v2828 = vrot.slane %v2814, %v2827
        %v2829 = vcombine.low %v2684, %v2776
        %v2830 = vcombine.high %v2684, %v2776
        %v2832 = vunpack.c.l.s4 1983009808
        %v2833 = vunpack.c.0.s8 %v2832
        %v2834 = vlaneseq
        %v2835 = vshrl.u32 %v2834, 7
        %v2836 = vsub.s32 %v2833, %v2835
        %v2837 = vrot.slane %v2829, %v2836
        %v2839 = vunpack.c.l.s4 1983009808
        %v2840 = vunpack.c.0.s8 %v2839
        %v2841 = vlaneseq
        %v2842 = vshrl.u32 %v2841, 7
        %v2843 = vsub.s32 %v2840, %v2842
        %v2844 = vrot.slane %v2830, %v2843
        %v2845 = vcombine.low %v2789, %v2805
        %v2846 = vcombine.high %v2789, %v2805
        %v2848 = vunpack.c.l.s4 1934713408
        %v2849 = vunpack.c.0.s8 %v2848
        %v2850 = vlaneseq
        %v2851 = vshrl.u32 %v2850, 7
        %v2852 = vsub.s32 %v2849, %v2851
        %v2853 = vrot.slane %v2845, %v2852
        %v2855 = vunpack.c.l.s4 1934713408
        %v2856 = vunpack.c.0.s8 %v2855
        %v2857 = vlaneseq
        %v2858 = vshrl.u32 %v2857, 7
        %v2859 = vsub.s32 %v2856, %v2858
        %v2860 = vrot.slane %v2846, %v2859
        %v2861 = vcombine.low %v2796, %v2812
        %v2862 = vcombine.high %v2796, %v2812
        %v2864 = vunpack.c.l.s4 1934713408
        %v2865 = vunpack.c.0.s8 %v2864
        %v2866 = vlaneseq
        %v2867 = vshrl.u32 %v2866, 7
        %v2868 = vsub.s32 %v2865, %v2867
        %v2869 = vrot.slane %v2861, %v2868
        %v2871 = vunpack.c.l.s4 1934713408
        %v2872 = vunpack.c.0.s8 %v2871
        %v2873 = vlaneseq
        %v2874 = vshrl.u32 %v2873, 7
        %v2875 = vsub.s32 %v2872, %v2874
        %v2876 = vrot.slane %v2862, %v2875
        %v2877 = vcombine.low %v2821, %v2837
        %v2878 = vcombine.high %v2821, %v2837
        %v2880 = vunpack.c.l.s4 1934713408
        %v2881 = vunpack.c.0.s8 %v2880
        %v2882 = vlaneseq
        %v2883 = vshrl.u32 %v2882, 7
        %v2884 = vsub.s32 %v2881, %v2883
        %v2885 = vrot.slane %v2877, %v2884
        %v2887 = vunpack.c.l.s4 1934713408
        %v2888 = vunpack.c.0.s8 %v2887
        %v2889 = vlaneseq
        %v2890 = vshrl.u32 %v2889, 7
        %v2891 = vsub.s32 %v2888, %v2890
        %v2892 = vrot.slane %v2878, %v2891
        %v2893 = vcombine.low %v2828, %v2844
        %v2894 = vcombine.high %v2828, %v2844
        %v2896 = vunpack.c.l.s4 1934713408
        %v2897 = vunpack.c.0.s8 %v2896
        %v2898 = vlaneseq
        %v2899 = vshrl.u32 %v2898, 7
        %v2900 = vsub.s32 %v2897, %v2899
        %v2901 = vrot.slane %v2893, %v2900
        %v2903 = vunpack.c.l.s4 1934713408
        %v2904 = vunpack.c.0.s8 %v2903
        %v2905 = vlaneseq
        %v2906 = vshrl.u32 %v2905, 7
        %v2907 = vsub.s32 %v2904, %v2906
        %v2908 = vrot.slane %v2894, %v2907
        %v2909 = vcombine.low %v2853, %v2885
        %v2910 = vcombine.high %v2853, %v2885
        %v2911 = vcombine.low %v2860, %v2892
        %v2912 = vcombine.high %v2860, %v2892
        %v2913 = vcombine.low %v2869, %v2901
        %v2914 = vcombine.high %v2869, %v2901
        %v2915 = vcombine.low %v2876, %v2908
        %v2916 = vcombine.high %v2876, %v2908
        %v2917 = vcombine.low %v2909, %v2911
        %v2918 = vcombine.high %v2909, %v2911
        %v2920 = vunpack.c.l.s4 1983009808
        %v2921 = vunpack.c.0.s8 %v2920
        %v2922 = vlaneseq
        %v2923 = vshrl.u32 %v2922, 7
        %v2924 = vsub.s32 %v2921, %v2923
        %v2925 = vrot.slane %v2917, %v2924
        %v2927 = vunpack.c.l.s4 1983009808
        %v2928 = vunpack.c.0.s8 %v2927
        %v2929 = vlaneseq
        %v2930 = vshrl.u32 %v2929, 7
        %v2931 = vsub.s32 %v2928, %v2930
        %v2932 = vrot.slane %v2918, %v2931
        %v2933 = vcombine.low %v2910, %v2912
        %v2934 = vcombine.high %v2910, %v2912
        %v2936 = vunpack.c.l.s4 1983009808
        %v2937 = vunpack.c.0.s8 %v2936
        %v2938 = vlaneseq
        %v2939 = vshrl.u32 %v2938, 7
        %v2940 = vsub.s32 %v2937, %v2939
        %v2941 = vrot.slane %v2933, %v2940
        %v2943 = vunpack.c.l.s4 1983009808
        %v2944 = vunpack.c.0.s8 %v2943
        %v2945 = vlaneseq
        %v2946 = vshrl.u32 %v2945, 7
        %v2947 = vsub.s32 %v2944, %v2946
        %v2948 = vrot.slane %v2934, %v2947
        %v2949 = vcombine.low %v2913, %v2915
        %v2950 = vcombine.high %v2913, %v2915
        %v2952 = vunpack.c.l.s4 1983009808
        %v2953 = vunpack.c.0.s8 %v2952
        %v2954 = vlaneseq
        %v2955 = vshrl.u32 %v2954, 7
        %v2956 = vsub.s32 %v2953, %v2955
        %v2957 = vrot.slane %v2949, %v2956
        %v2959 = vunpack.c.l.s4 1983009808
        %v2960 = vunpack.c.0.s8 %v2959
        %v2961 = vlaneseq
        %v2962 = vshrl.u32 %v2961, 7
        %v2963 = vsub.s32 %v2960, %v2962
        %v2964 = vrot.slane %v2950, %v2963
        %v2965 = vcombine.low %v2914, %v2916
        %v2966 = vcombine.high %v2914, %v2916
        %v2968 = vunpack.c.l.s4 1983009808
        %v2969 = vunpack.c.0.s8 %v2968
        %v2970 = vlaneseq
        %v2971 = vshrl.u32 %v2970, 7
        %v2972 = vsub.s32 %v2969, %v2971
        %v2973 = vrot.slane %v2965, %v2972
        %v2975 = vunpack.c.l.s4 1983009808
        %v2976 = vunpack.c.0.s8 %v2975
        %v2977 = vlaneseq
        %v2978 = vshrl.u32 %v2977, 7
        %v2979 = vsub.s32 %v2976, %v2978
        %v2980 = vrot.slane %v2966, %v2979
        %v2981 = vcombine.low %v2925, %v2941
        %v2982 = vcombine.high %v2925, %v2941
        %v2984 = vunpack.c.l.s4 1934713408
        %v2985 = vunpack.c.0.s8 %v2984
        %v2986 = vlaneseq
        %v2987 = vshrl.u32 %v2986, 7
        %v2988 = vsub.s32 %v2985, %v2987
        %v2989 = vrot.slane %v2981, %v2988
        %v2991 = vunpack.c.l.s4 1934713408
        %v2992 = vunpack.c.0.s8 %v2991
        %v2993 = vlaneseq
        %v2994 = vshrl.u32 %v2993, 7
        %v2995 = vsub.s32 %v2992, %v2994
        %v2996 = vrot.slane %v2982, %v2995
        %v2997 = vcombine.low %v2932, %v2948
        %v2998 = vcombine.high %v2932, %v2948
        %v3000 = vunpack.c.l.s4 1934713408
        %v3001 = vunpack.c.0.s8 %v3000
        %v3002 = vlaneseq
        %v3003 = vshrl.u32 %v3002, 7
        %v3004 = vsub.s32 %v3001, %v3003
        %v3005 = vrot.slane %v2997, %v3004
        %v3007 = vunpack.c.l.s4 1934713408
        %v3008 = vunpack.c.0.s8 %v3007
        %v3009 = vlaneseq
        %v3010 = vshrl.u32 %v3009, 7
        %v3011 = vsub.s32 %v3008, %v3010
        %v3012 = vrot.slane %v2998, %v3011
        %v3013 = vcombine.low %v2957, %v2973
        %v3014 = vcombine.high %v2957, %v2973
        %v3016 = vunpack.c.l.s4 1934713408
        %v3017 = vunpack.c.0.s8 %v3016
        %v3018 = vlaneseq
        %v3019 = vshrl.u32 %v3018, 7
        %v3020 = vsub.s32 %v3017, %v3019
        %v3021 = vrot.slane %v3013, %v3020
        %v3023 = vunpack.c.l.s4 1934713408
        %v3024 = vunpack.c.0.s8 %v3023
        %v3025 = vlaneseq
        %v3026 = vshrl.u32 %v3025, 7
        %v3027 = vsub.s32 %v3024, %v3026
        %v3028 = vrot.slane %v3014, %v3027
        %v3029 = vcombine.low %v2964, %v2980
        %v3030 = vcombine.high %v2964, %v2980
        %v3032 = vunpack.c.l.s4 1934713408
        %v3033 = vunpack.c.0.s8 %v3032
        %v3034 = vlaneseq
        %v3035 = vshrl.u32 %v3034, 7
        %v3036 = vsub.s32 %v3033, %v3035
        %v3037 = vrot.slane %v3029, %v3036
        %v3039 = vunpack.c.l.s4 1934713408
        %v3040 = vunpack.c.0.s8 %v3039
        %v3041 = vlaneseq
        %v3042 = vshrl.u32 %v3041, 7
        %v3043 = vsub.s32 %v3040, %v3042
        %v3044 = vrot.slane %v3030, %v3043
        %v3045 = vcombine.low %v2989, %v3021
        %v3046 = vcombine.high %v2989, %v3021
        %v3047 = vcombine.low %v2996, %v3028
        %v3048 = vcombine.high %v2996, %v3028
        %v3049 = vcombine.low %v3005, %v3037
        %v3050 = vcombine.high %v3005, %v3037
        %v3051 = vcombine.low %v3012, %v3044
        %v3052 = vcombine.high %v3012, %v3044
        %3054 = vrot.lane.b32.xlu0 %v3046, 16
        %v3055 = vpop.permute.xlu0 %3054
        %3058 = vrot.lane.b32.xlu0 %v3047, 32
        %v3059 = vpop.permute.xlu0 %3058
        %3062 = vrot.lane.b32.xlu0 %v3048, 48
        %v3063 = vpop.permute.xlu0 %3062
        %3066 = vrot.lane.b32.xlu0 %v3049, 64
        %v3067 = vpop.permute.xlu0 %3066
        %3070 = vrot.lane.b32.xlu0 %v3050, 80
        %v3071 = vpop.permute.xlu0 %3070
        %3074 = vrot.lane.b32.xlu0 %v3051, 96
        %v3075 = vpop.permute.xlu0 %3074
        %3078 = vrot.lane.b32.xlu0 %v3052, 112
        %v3079 = vpop.permute.xlu0 %3078
        %v3081 = vsel %vm1930, %v3045, %v3055
        %vm3082 = vcmask 261120
        %v3083 = vsel %vm3082, %v3081, %v3059
        %vm3084 = vcmask 392192
        %v3085 = vsel %vm3084, %v3083, %v3063
        %vm3086 = vcmask 523264
        %v3087 = vsel %vm3086, %v3085, %v3067
        %vm3088 = vcmask 654336
        %v3089 = vsel %vm3088, %v3087, %v3071
        %vm3090 = vcmask 785408
        %v3091 = vsel %vm3090, %v3089, %v3075
        %vm3092 = vcmask 916480
        %v3093 = vsel %vm3092, %v3091, %v3079
        %v3094 = vpack.c.bf16 %v3093, %v3093
        %v3095 = vld [vmem:[%s617] sm:$0xf]
        %v3096 = vld [vmem:[%s617 + $0x4] sm:$0xf]
        %v3097 = vld [vmem:[%s617 + $0x8] sm:$0xf]
        %v3098 = vld [vmem:[%s617 + $0xc] sm:$0xf]
        %v3099 = vld [vmem:[%s617 + $0x10] sm:$0xf]
        %v3100 = vld [vmem:[%s617 + $0x14] sm:$0xf]
        %v3101 = vld [vmem:[%s617 + $0x18] sm:$0xf]
        %v3102 = vld [vmem:[%s617 + $0x1c] sm:$0xf]
        %v3103 = vld [vmem:[%s617 + $0x20] sm:$0xf]
        %v3104 = vld [vmem:[%s617 + $0x24] sm:$0xf]
        %v3105 = vld [vmem:[%s617 + $0x28] sm:$0xf]
        %v3106 = vld [vmem:[%s617 + $0x2c] sm:$0xf]
        %v3107 = vld [vmem:[%s617 + $0x30] sm:$0xf]
        %v3108 = vld [vmem:[%s617 + $0x34] sm:$0xf]
        %v3109 = vld [vmem:[%s617 + $0x38] sm:$0xf]
        %v3110 = vld [vmem:[%s617 + $0x3c] sm:$0xf]
        %v3127 = vunpack.c.l.b16 %v3095
        %v3128 = vunpack.c.l.b16 %v3096
        %v3129 = vunpack.c.l.b16 %v3097
        %v3130 = vunpack.c.l.b16 %v3098
        %v3131 = vunpack.c.l.b16 %v3099
        %v3132 = vunpack.c.l.b16 %v3100
        %v3133 = vunpack.c.l.b16 %v3101
        %v3134 = vunpack.c.l.b16 %v3102
        %v3135 = vunpack.c.l.b16 %v3103
        %v3136 = vunpack.c.l.b16 %v3104
        %v3137 = vunpack.c.l.b16 %v3105
        %v3138 = vunpack.c.l.b16 %v3106
        %v3139 = vunpack.c.l.b16 %v3107
        %v3140 = vunpack.c.l.b16 %v3108
        %v3141 = vunpack.c.l.b16 %v3109
        %v3142 = vunpack.c.l.b16 %v3110
        %v3143 = vpack.c.b16 %v3128, %v3127
        %v3144 = vpack.c.b16 %v3130, %v3129
        %v3145 = vpack.c.b16 %v3132, %v3131
        %v3146 = vpack.c.b16 %v3134, %v3133
        %v3147 = vpack.c.b16 %v3136, %v3135
        %v3148 = vpack.c.b16 %v3138, %v3137
        %v3149 = vpack.c.b16 %v3140, %v3139
        %v3150 = vpack.c.b16 %v3142, %v3141
        %3159 = vmatprep.subr.bf16.mxu0 0
        %3160 = vmatpush1.bf16.msra.mxu0 %v3150
        %3161 = vmatprep.subr.bf16.mxu0 0
        %3162 = vmatpush1.bf16.msra.mxu0 %v3149
        %3163 = vmatprep.subr.bf16.mxu0 0
        %3164 = vmatpush1.bf16.msra.mxu0 %v3148
        %3165 = vmatprep.subr.bf16.mxu0 0
        %3166 = vmatpush1.bf16.msra.mxu0 %v3147
        %3167 = vmatprep.subr.bf16.mxu0 0
        %3168 = vmatpush1.bf16.msra.mxu0 %v3146
        %3169 = vmatprep.subr.bf16.mxu0 0
        %3170 = vmatpush1.bf16.msra.mxu0 %v3145
        %3171 = vmatprep.subr.bf16.mxu0 0
        %3172 = vmatpush1.bf16.msra.mxu0 %v3144
        %3173 = vmatprep.subr.bf16.mxu0 0
        %3174 = vmatpush1.bf16.msra.mxu0 %v3143
        %3175 = vmatprep.subr.bf16.mxu0 0
        %3176 = vmatpush2.bf16.msra.mxu0 0
        %3177 = vmatprep.subr.bf16.mxu0 0
        %3178 = vmatpush2.bf16.msra.mxu0 0
        %3179 = vmatprep.subr.bf16.mxu0 0
        %3180 = vmatpush2.bf16.msra.mxu0 0
        %3181 = vmatprep.subr.bf16.mxu0 0
        %3182 = vmatpush2.bf16.msra.mxu0 0
        %3183 = vmatprep.subr.bf16.mxu0 0
        %3184 = vmatpush2.bf16.msra.mxu0 0
        %3185 = vmatprep.subr.bf16.mxu0 0
        %3186 = vmatpush2.bf16.msra.mxu0 0
        %3187 = vmatprep.subr.bf16.mxu0 0
        %3188 = vmatpush2.bf16.msra.mxu0 0
        %3189 = vmatprep.subr.bf16.mxu0 0
        %3190 = vmatpush2.bf16.msra.mxu0 0
        %3191 = vmatprep.mubr.bf16.mxu0 0
        %3192 = vmatmul.mubr.bf16.gmra.mxu0 %v3094
        %v3193 = vpop.f32.mrf.mxu0
        %v3194 = vadd.f32 0.0, %v3193
        %v3195 = vpop.f32.mrf.mxu0
        %v3196 = vpop.f32.mrf.mxu0
        %v3197 = vpop.f32.mrf.mxu0
        %3198 = vdwg.mxu0
        %v3199 = vadd.f32 %v741, %v3194
        %v3200 = vld [vmem:[%s723] sm:$0x1]
        %v3201 = vld [vmem:[%s726] sm:$0x1]
        %3202 = vadd.xlane.f32.xlu0 %v3199
        %v3203 = vpop.xlane.xlu0 %3202
        %v3204 = vmul.f32 %v3199, %v3199
        %3205 = vadd.xlane.f32.xlu0 %v3204
        %v3206 = vpop.xlane.xlu0 %3205
        %v3207 = vmul.f32 %v3203, 0.0078125
        %v3208 = vmul.f32 %v3203, %v3207
        %v3209 = vsub.f32 %v3206, %v3208
        %v3210 = vmul.f32 %v3209, 0.007874016
        %v3211 = vmax.f32 %v3210, 0.0
        %v3212 = vrsqrt.pop %v3211
        %v3213 = vmul.f32 %v3211, %v3212
        %vm3214 = vcmp.eq.f32.partialorder %v3211, inf
        %v3215 = vsel %vm3214, %v3211, %v3213
        %vm3216 = vcmp.eq.f32.partialorder %v3211, 0.0
        %v3217 = vand.u32 %v3211, 2147483648
        %v3218 = vsel %vm3216, %v3217, %v3215
        %v3219 = vadd.f32 %v3218, 0.001
        %v3220 = vrcp.pop %v3219
        %v3221 = vsub.f32 %v3199, %v3207
        %v3222 = vmul.f32 %v3221, %v3220
        %v3224 = vlaneseq
        %v3225 = vshrl.u32 %v3224, 7
        %v3226 = vsub.s32 0, %v3225
        %v3227 = vrot.slane %v3200, %v3226
        %v3229 = vmul.f32 %v3227, %v3222
        %v3231 = vlaneseq
        %v3232 = vshrl.u32 %v3231, 7
        %v3233 = vsub.s32 0, %v3232
        %v3234 = vrot.slane %v3201, %v3233
        %v3236 = vadd.f32 %v3229, %v3234
        %v3237 = vpack.c.bf16 %v3236, %v3236
        %v3238 = vld [vmem:[%s626] sm:$0xff]
        %v3239 = vld [vmem:[%s626 + $0x8] sm:$0xff]
        %v3240 = vld [vmem:[%s626 + $0x10] sm:$0xff]
        %v3241 = vld [vmem:[%s626 + $0x18] sm:$0xff]
        %v3242 = vld [vmem:[%s626 + $0x20] sm:$0xff]
        %v3243 = vld [vmem:[%s626 + $0x28] sm:$0xff]
        %v3244 = vld [vmem:[%s626 + $0x30] sm:$0xff]
        %v3245 = vld [vmem:[%s626 + $0x38] sm:$0xff]
        %v3246 = vld [vmem:[%s626 + $0x40] sm:$0xff]
        %v3247 = vld [vmem:[%s626 + $0x48] sm:$0xff]
        %v3248 = vld [vmem:[%s626 + $0x50] sm:$0xff]
        %v3249 = vld [vmem:[%s626 + $0x58] sm:$0xff]
        %v3250 = vld [vmem:[%s626 + $0x60] sm:$0xff]
        %v3251 = vld [vmem:[%s626 + $0x68] sm:$0xff]
        %v3252 = vld [vmem:[%s626 + $0x70] sm:$0xff]
        %v3253 = vld [vmem:[%s626 + $0x78] sm:$0xff]
        %v3254 = vld [vmem:[%s730] sm:$0x3]
        %v3256 = vlaneseq
        %v3257 = vshrl.u32 %v3256, 7
        %v3258 = vsub.s32 0, %v3257
        %v3259 = vrot.slane %v3254, %v3258
        %v3260 = vlaneseq
        %v3261 = vshrl.u32 %v3260, 7
        %v3262 = vsub.s32 1, %v3261
        %v3263 = vrot.slane %v3254, %v3262
        %v3282 = vunpack.c.l.b16 %v3238
        %v3283 = vunpack.c.h.b16 %v3238
        %v3284 = vunpack.c.l.b16 %v3239
        %v3285 = vunpack.c.h.b16 %v3239
        %v3286 = vunpack.c.l.b16 %v3240
        %v3287 = vunpack.c.h.b16 %v3240
        %v3288 = vunpack.c.l.b16 %v3241
        %v3289 = vunpack.c.h.b16 %v3241
        %v3290 = vunpack.c.l.b16 %v3242
        %v3291 = vunpack.c.h.b16 %v3242
        %v3292 = vunpack.c.l.b16 %v3243
        %v3293 = vunpack.c.h.b16 %v3243
        %v3294 = vunpack.c.l.b16 %v3244
        %v3295 = vunpack.c.h.b16 %v3244
        %v3296 = vunpack.c.l.b16 %v3245
        %v3297 = vunpack.c.h.b16 %v3245
        %v3298 = vunpack.c.l.b16 %v3246
        %v3299 = vunpack.c.h.b16 %v3246
        %v3300 = vunpack.c.l.b16 %v3247
        %v3301 = vunpack.c.h.b16 %v3247
        %v3302 = vunpack.c.l.b16 %v3248
        %v3303 = vunpack.c.h.b16 %v3248
        %v3304 = vunpack.c.l.b16 %v3249
        %v3305 = vunpack.c.h.b16 %v3249
        %v3306 = vunpack.c.l.b16 %v3250
        %v3307 = vunpack.c.h.b16 %v3250
        %v3308 = vunpack.c.l.b16 %v3251
        %v3309 = vunpack.c.h.b16 %v3251
        %v3310 = vunpack.c.l.b16 %v3252
        %v3311 = vunpack.c.h.b16 %v3252
        %v3312 = vunpack.c.l.b16 %v3253
        %v3313 = vunpack.c.h.b16 %v3253
        %v3314 = vpack.c.b16 %v3284, %v3282
        %v3315 = vpack.c.b16 %v3285, %v3283
        %v3316 = vpack.c.b16 %v3288, %v3286
        %v3317 = vpack.c.b16 %v3289, %v3287
        %v3318 = vpack.c.b16 %v3292, %v3290
        %v3319 = vpack.c.b16 %v3293, %v3291
        %v3320 = vpack.c.b16 %v3296, %v3294
        %v3321 = vpack.c.b16 %v3297, %v3295
        %v3322 = vpack.c.b16 %v3300, %v3298
        %v3323 = vpack.c.b16 %v3301, %v3299
        %v3324 = vpack.c.b16 %v3304, %v3302
        %v3325 = vpack.c.b16 %v3305, %v3303
        %v3326 = vpack.c.b16 %v3308, %v3306
        %v3327 = vpack.c.b16 %v3309, %v3307
        %v3328 = vpack.c.b16 %v3312, %v3310
        %v3329 = vpack.c.b16 %v3313, %v3311
        %3346 = vmatprep.subr.bf16.mxu0 %v3329
        %3347 = vmatpush1.bf16.msra.mxu0 %v3328
        %3348 = vmatprep.subr.bf16.mxu0 %v3327
        %3349 = vmatpush1.bf16.msra.mxu0 %v3326
        %3350 = vmatprep.subr.bf16.mxu0 %v3325
        %3351 = vmatpush1.bf16.msra.mxu0 %v3324
        %3352 = vmatprep.subr.bf16.mxu0 %v3323
        %3353 = vmatpush1.bf16.msra.mxu0 %v3322
        %3354 = vmatprep.subr.bf16.mxu0 %v3321
        %3355 = vmatpush1.bf16.msra.mxu0 %v3320
        %3356 = vmatprep.subr.bf16.mxu0 %v3319
        %3357 = vmatpush1.bf16.msra.mxu0 %v3318
        %3358 = vmatprep.subr.bf16.mxu0 %v3317
        %3359 = vmatpush1.bf16.msra.mxu0 %v3316
        %3360 = vmatprep.subr.bf16.mxu0 %v3315
        %3361 = vmatpush1.bf16.msra.mxu0 %v3314
        %3362 = vmatprep.subr.bf16.mxu0 0
        %3363 = vmatpush2.bf16.msra.mxu0 0
        %3364 = vmatprep.subr.bf16.mxu0 0
        %3365 = vmatpush2.bf16.msra.mxu0 0
        %3366 = vmatprep.subr.bf16.mxu0 0
        %3367 = vmatpush2.bf16.msra.mxu0 0
        %3368 = vmatprep.subr.bf16.mxu0 0
        %3369 = vmatpush2.bf16.msra.mxu0 0
        %3370 = vmatprep.subr.bf16.mxu0 0
        %3371 = vmatpush2.bf16.msra.mxu0 0
        %3372 = vmatprep.subr.bf16.mxu0 0
        %3373 = vmatpush2.bf16.msra.mxu0 0
        %3374 = vmatprep.subr.bf16.mxu0 0
        %3375 = vmatpush2.bf16.msra.mxu0 0
        %3376 = vmatprep.subr.bf16.mxu0 0
        %3377 = vmatpush2.bf16.msra.mxu0 0
        %3378 = vmatprep.mubr.bf16.mxu0 0
        %3379 = vmatmul.mubr.bf16.gmra.mxu0 %v3237
        %v3380 = vpop.f32.mrf.mxu0
        %v3381 = vadd.f32 %v3259, %v3380
        %v3382 = vpop.f32.mrf.mxu0
        %v3383 = vadd.f32 %v3263, %v3382
        %v3384 = vpop.f32.mrf.mxu0
        %v3385 = vpop.f32.mrf.mxu0
        %3386 = vdwg.mxu0
        %v3387 = vmax.f32 %v3381, 0.0
        %v3388 = vmax.f32 %v3383, 0.0
        %v3389 = vpack.c.bf16 %v3387, %v3387
        %v3390 = vpack.c.bf16 %v3388, %v3388
        %v3391 = vld [vmem:[%s635] sm:$0xf]
        %v3392 = vld [vmem:[%s635 + $0x4] sm:$0xf]
        %v3393 = vld [vmem:[%s635 + $0x8] sm:$0xf]
        %v3394 = vld [vmem:[%s635 + $0xc] sm:$0xf]
        %v3395 = vld [vmem:[%s635 + $0x10] sm:$0xf]
        %v3396 = vld [vmem:[%s635 + $0x14] sm:$0xf]
        %v3397 = vld [vmem:[%s635 + $0x18] sm:$0xf]
        %v3398 = vld [vmem:[%s635 + $0x1c] sm:$0xf]
        %v3399 = vld [vmem:[%s635 + $0x20] sm:$0xf]
        %v3400 = vld [vmem:[%s635 + $0x24] sm:$0xf]
        %v3401 = vld [vmem:[%s635 + $0x28] sm:$0xf]
        %v3402 = vld [vmem:[%s635 + $0x2c] sm:$0xf]
        %v3403 = vld [vmem:[%s635 + $0x30] sm:$0xf]
        %v3404 = vld [vmem:[%s635 + $0x34] sm:$0xf]
        %v3405 = vld [vmem:[%s635 + $0x38] sm:$0xf]
        %v3406 = vld [vmem:[%s635 + $0x3c] sm:$0xf]
        %v3407 = vld [vmem:[%s635 + $0x40] sm:$0xf]
        %v3408 = vld [vmem:[%s635 + $0x44] sm:$0xf]
        %v3409 = vld [vmem:[%s635 + $0x48] sm:$0xf]
        %v3410 = vld [vmem:[%s635 + $0x4c] sm:$0xf]
        %v3411 = vld [vmem:[%s635 + $0x50] sm:$0xf]
        %v3412 = vld [vmem:[%s635 + $0x54] sm:$0xf]
        %v3413 = vld [vmem:[%s635 + $0x58] sm:$0xf]
        %v3414 = vld [vmem:[%s635 + $0x5c] sm:$0xf]
        %v3415 = vld [vmem:[%s635 + $0x60] sm:$0xf]
        %v3416 = vld [vmem:[%s635 + $0x64] sm:$0xf]
        %v3417 = vld [vmem:[%s635 + $0x68] sm:$0xf]
        %v3418 = vld [vmem:[%s635 + $0x6c] sm:$0xf]
        %v3419 = vld [vmem:[%s635 + $0x70] sm:$0xf]
        %v3420 = vld [vmem:[%s635 + $0x74] sm:$0xf]
        %v3421 = vld [vmem:[%s635 + $0x78] sm:$0xf]
        %v3422 = vld [vmem:[%s635 + $0x7c] sm:$0xf]
        %v3423 = vld [vmem:[%s733] sm:$0x1]
        %v3425 = vlaneseq
        %v3426 = vshrl.u32 %v3425, 7
        %v3427 = vsub.s32 0, %v3426
        %v3428 = vrot.slane %v3423, %v3427
        %v3462 = vunpack.c.l.b16 %v3391
        %v3463 = vunpack.c.l.b16 %v3392
        %v3464 = vunpack.c.l.b16 %v3393
        %v3465 = vunpack.c.l.b16 %v3394
        %v3466 = vunpack.c.l.b16 %v3395
        %v3467 = vunpack.c.l.b16 %v3396
        %v3468 = vunpack.c.l.b16 %v3397
        %v3469 = vunpack.c.l.b16 %v3398
        %v3470 = vunpack.c.l.b16 %v3399
        %v3471 = vunpack.c.l.b16 %v3400
        %v3472 = vunpack.c.l.b16 %v3401
        %v3473 = vunpack.c.l.b16 %v3402
        %v3474 = vunpack.c.l.b16 %v3403
        %v3475 = vunpack.c.l.b16 %v3404
        %v3476 = vunpack.c.l.b16 %v3405
        %v3477 = vunpack.c.l.b16 %v3406
        %v3478 = vunpack.c.l.b16 %v3407
        %v3479 = vunpack.c.l.b16 %v3408
        %v3480 = vunpack.c.l.b16 %v3409
        %v3481 = vunpack.c.l.b16 %v3410
        %v3482 = vunpack.c.l.b16 %v3411
        %v3483 = vunpack.c.l.b16 %v3412
        %v3484 = vunpack.c.l.b16 %v3413
        %v3485 = vunpack.c.l.b16 %v3414
        %v3486 = vunpack.c.l.b16 %v3415
        %v3487 = vunpack.c.l.b16 %v3416
        %v3488 = vunpack.c.l.b16 %v3417
        %v3489 = vunpack.c.l.b16 %v3418
        %v3490 = vunpack.c.l.b16 %v3419
        %v3491 = vunpack.c.l.b16 %v3420
        %v3492 = vunpack.c.l.b16 %v3421
        %v3493 = vunpack.c.l.b16 %v3422
        %v3494 = vpack.c.b16 %v3463, %v3462
        %v3495 = vpack.c.b16 %v3465, %v3464
        %v3496 = vpack.c.b16 %v3467, %v3466
        %v3497 = vpack.c.b16 %v3469, %v3468
        %v3498 = vpack.c.b16 %v3471, %v3470
        %v3499 = vpack.c.b16 %v3473, %v3472
        %v3500 = vpack.c.b16 %v3475, %v3474
        %v3501 = vpack.c.b16 %v3477, %v3476
        %v3502 = vpack.c.b16 %v3479, %v3478
        %v3503 = vpack.c.b16 %v3481, %v3480
        %v3504 = vpack.c.b16 %v3483, %v3482
        %v3505 = vpack.c.b16 %v3485, %v3484
        %v3506 = vpack.c.b16 %v3487, %v3486
        %v3507 = vpack.c.b16 %v3489, %v3488
        %v3508 = vpack.c.b16 %v3491, %v3490
        %v3509 = vpack.c.b16 %v3493, %v3492
        %3526 = vmatprep.subr.bf16.mxu0 0
        %3527 = vmatpush1.bf16.msra.mxu0 %v3501
        %3528 = vmatprep.subr.bf16.mxu0 0
        %3529 = vmatpush1.bf16.msra.mxu0 %v3500
        %3530 = vmatprep.subr.bf16.mxu0 0
        %3531 = vmatpush1.bf16.msra.mxu0 %v3499
        %3532 = vmatprep.subr.bf16.mxu0 0
        %3533 = vmatpush1.bf16.msra.mxu0 %v3498
        %3534 = vmatprep.subr.bf16.mxu0 0
        %3535 = vmatpush1.bf16.msra.mxu0 %v3497
        %3536 = vmatprep.subr.bf16.mxu0 0
        %3537 = vmatpush1.bf16.msra.mxu0 %v3496
        %3538 = vmatprep.subr.bf16.mxu0 0
        %3539 = vmatpush1.bf16.msra.mxu0 %v3495
        %3540 = vmatprep.subr.bf16.mxu0 0
        %3541 = vmatpush1.bf16.msra.mxu0 %v3494
        %3542 = vmatprep.subr.bf16.mxu0 0
        %3543 = vmatpush2.bf16.msra.mxu0 %v3509
        %3544 = vmatprep.subr.bf16.mxu0 0
        %3545 = vmatpush2.bf16.msra.mxu0 %v3508
        %3546 = vmatprep.subr.bf16.mxu0 0
        %3547 = vmatpush2.bf16.msra.mxu0 %v3507
        %3548 = vmatprep.subr.bf16.mxu0 0
        %3549 = vmatpush2.bf16.msra.mxu0 %v3506
        %3550 = vmatprep.subr.bf16.mxu0 0
        %3551 = vmatpush2.bf16.msra.mxu0 %v3505
        %3552 = vmatprep.subr.bf16.mxu0 0
        %3553 = vmatpush2.bf16.msra.mxu0 %v3504
        %3554 = vmatprep.subr.bf16.mxu0 0
        %3555 = vmatpush2.bf16.msra.mxu0 %v3503
        %3556 = vmatprep.subr.bf16.mxu0 0
        %3557 = vmatpush2.bf16.msra.mxu0 %v3502
        %3558 = vmatprep.mubr.bf16.mxu0 %v3390
        %3559 = vmatmul.mubr.bf16.gmra.mxu0 %v3389
        %v3560 = vpop.f32.mrf.mxu0
        %v3561 = vadd.f32 %v3428, %v3560
        %v3562 = vpop.f32.mrf.mxu0
        %v3563 = vpop.f32.mrf.mxu0
        %v3564 = vpop.f32.mrf.mxu0
        %3565 = vdwg.mxu0
        %v3566 = vadd.f32 %v3199, %v3561
        %3567 = vst [vmem:[#allocation2] sm:$0xff] %v3566
        %p3568 = scmp.eq.s32.totalorder %s49, 1
        // Predicated region
        $region101: #{tpu_custom_call.1} parent=71 // pred_check
          %p3569 = pneg %p3568
        $region102: #{tpu_custom_call.1} parent=71 // pred_check_branch
          %3571 = sbr.rel (%p3569) target = $region104
        $region103: #{tpu_custom_call.1} parent=71 // pred_region
          %v3572 = vld [vmem:[%s12] sm:$0x1]
          %v3573 = vld [vmem:[%s13] sm:$0x1]
          %3574 = vadd.xlane.f32.xlu0 %v3566
          %v3575 = vpop.xlane.xlu0 %3574
          %v3576 = vmul.f32 %v3566, %v3566
          %3577 = vadd.xlane.f32.xlu0 %v3576
          %v3578 = vpop.xlane.xlu0 %3577
          %v3579 = vmul.f32 %v3575, 0.0078125
          %v3580 = vmul.f32 %v3575, %v3579
          %v3581 = vsub.f32 %v3578, %v3580
          %v3582 = vmul.f32 %v3581, 0.007874016
          %v3583 = vmax.f32 %v3582, 0.0
          %v3584 = vrsqrt.pop %v3583
          %v3585 = vmul.f32 %v3583, %v3584
          %vm3586 = vcmp.eq.f32.partialorder %v3583, inf
          %v3587 = vsel %vm3586, %v3583, %v3585
          %vm3588 = vcmp.eq.f32.partialorder %v3583, 0.0
          %v3589 = vand.u32 %v3583, 2147483648
          %v3590 = vsel %vm3588, %v3589, %v3587
          %v3591 = vadd.f32 %v3590, 0.001
          %v3592 = vrcp.pop %v3591
          %v3593 = vsub.f32 %v3566, %v3579
          %v3594 = vmul.f32 %v3593, %v3592
          %v3596 = vlaneseq
          %v3597 = vshrl.u32 %v3596, 7
          %v3598 = vsub.s32 0, %v3597
          %v3599 = vrot.slane %v3572, %v3598
          %v3601 = vmul.f32 %v3599, %v3594
          %v3603 = vlaneseq
          %v3604 = vshrl.u32 %v3603, 7
          %v3605 = vsub.s32 0, %v3604
          %v3606 = vrot.slane %v3573, %v3605
          %v3608 = vadd.f32 %v3601, %v3606
          %3609 = vst [vmem:[%s717] sm:$0xff] %v3608
        $region104: #{tpu_custom_call.1} parent=71 // pred_fallthru
          _
        %s3610 = sand.u32 %s392, 1
        %s3611 = scalar_lea.sflag [#allocation7], %s3610
        %s3612 = sand.u32 %s392, 1
        %s3613 = smul.addr %s3612, 8
        %s3614 = scalar_lea.vmem [#allocation16], %s3613
        // Predicated region
        $region105: #{tpu_custom_call.1} parent=71 // pred_check
          %p3615 = pneg %p402
        $region106: #{tpu_custom_call.1} parent=71 // pred_check_branch
          %3617 = sbr.rel (%p3615) target = $region108
        $region107: #{tpu_custom_call.1} parent=71 // pred_region
          %s3619 = ssub.s32 128, 128
          %3620 = vsyncadd %s3611, %s3619
          %s3621 = smul.addr %s48, 128
          %s3622 = scalar_lea.hbm %s14, %s3621
          %s3624 = sshll.u32 %s3614, 4
          %s3625 = int_to_ptr.vmem [resolvable:$true] %s3624
          %3627 = dma.vmem_to_hbm [thread:$0]  %s3625, 128, %s3622, %s3611
        $region108: #{tpu_custom_call.1} parent=71 // pred_fallthru
          _
      $region72: #{tpu_custom_call.1} parent=5 // pred_fallthru
        _
      %p3628 = scmp.le.s32.totalorder 2, %s39
      // Predicated region
      $region109: #{tpu_custom_call.1} parent=5 // pred_check
        %p3629 = pneg %p3628
      $region110: #{tpu_custom_call.1} parent=5 // pred_check_branch
        %3631 = sbr.rel (%p3629) target = $region112
      $region111: #{tpu_custom_call.1} parent=5 // pred_region
        %s3632 = ssub.s32 %s39, 2
        // Predicated region
        $region113: #{tpu_custom_call.1} parent=111 // pred_check
          %p3633 = pneg %p408
        $region114: #{tpu_custom_call.1} parent=111 // pred_check_branch
          %3635 = sbr.rel (%p3633) target = $region116
        $region115: #{tpu_custom_call.1} parent=111 // pred_region
          %s3636 = sand.u32 %s393, 1
          %s3637 = scalar_lea.sflag [#allocation7], %s3636
          %s3638 = sand.u32 %s393, 1
          %s3639 = smul.addr %s3638, 8
          %s3640 = scalar_lea.vmem [#allocation16], %s3639
          %3641 = dma.done %s3637, 128
        $region116: #{tpu_custom_call.1} parent=111 // pred_fallthru
          _
      $region112: #{tpu_custom_call.1} parent=5 // pred_fallthru
        _
    $region6: #{tpu_custom_call.1} parent=1 // loop_footer
      %s43 = sadd.s32 1, %s39
    $region7: #{tpu_custom_call.1} parent=1 // loop_footer_branch
      %38 = sbr.rel target = $region3
    $region8: #{tpu_custom_call.1} parent=1 // loop_exit
      _
    %3642 = vsyncpa [#allocation6], 1
    %s3643 = scalar_lea.sflag [#allocation6], 1
    %3644 = vsyncpa %s3643, 1
    %3645 = vsyncpa [#allocation9], 1
    %s3646 = scalar_lea.sflag [#allocation9], 1
    %3647 = vsyncpa %s3646, 1
    %3648 = vsyncpa [#allocation12], 1
    %s3649 = scalar_lea.sflag [#allocation12], 1
    %3650 = vsyncpa %s3649, 1
    %3651 = vsyncpa [#allocation15], 1
    %s3652 = scalar_lea.sflag [#allocation15], 1
    %3653 = vsyncpa %s3652, 1
    %3654 = vsyncpa [#allocation7], 1
    %s3655 = scalar_lea.sflag [#allocation7], 1
    %3656 = vsyncpa %s3655, 1

</llo_original>
